<compile_context>
chip_gen: v7x
topology: tpu7x:2x2x1
jax: 0.10.0
libtpu: 0.0.40
codegen_flags: <defaults>
</compile_context>

<pallas_src>
import math
import functools

import numpy as np
import jax
import jax.numpy as jnp
from jax.experimental import pallas as pl
from jax.experimental.pallas import tpu as pltpu


# ----------------------------- kernel ---------------------------------------

def _layernorm(x, g, b, eps=1e-5):
    mu = jnp.mean(x, axis=-1, keepdims=True)
    var = jnp.mean((x - mu) ** 2, axis=-1, keepdims=True)
    return (x - mu) * jax.lax.rsqrt(var + eps) * g + b


def transformer_block_kernel(
    x_ref, *rest,
    num_heads, head_dim, model_dim, q_chunk, t_valid, causal, compute_dtype,
):
    H, Dh, Dm = num_heads, head_dim, model_dim
    cdt = compute_dtype
    T_pad = x_ref.shape[1]

    if causal:
        (cos_ref, sn_ref,
         g1_ref, b1_ref, wqkv_ref, bqkv_ref,
         wo_ref, bo_ref, g2_ref, b2_ref,
         wup_ref, bup_ref, wdn_ref, bdn_ref,
         o_ref, rq_s, rk_s, v_s) = rest
        bias_ref = None
    else:
        (bias_ref, cos_ref, sn_ref,
         g1_ref, b1_ref, wqkv_ref, bqkv_ref,
         wo_ref, bo_ref, g2_ref, b2_ref,
         wup_ref, bup_ref, wdn_ref, bdn_ref,
         o_ref, rq_s, rk_s, v_s) = rest

    qi = pl.program_id(1)

    # ---- per-batch stage (runs once per b): LN -> fused QKV -> RoPE -> bf16 scratch
    @pl.when(qi == 0)
    def _():
        xf = x_ref[0]                                             # (T_pad, Dm) f32
        h1 = _layernorm(xf, g1_ref[...], b1_ref[...]).astype(cdt)
        # one weight-stationary MXU pass over the fused [Q|K|V] weight
        qkv = (jnp.dot(h1, wqkv_ref[...], preferred_element_type=jnp.float32)
               + bqkv_ref[...])                                   # (T_pad, 3*Dm) f32
        q = qkv[:, :Dm].reshape(T_pad, H, Dh)
        k = qkv[:, Dm:2 * Dm].reshape(T_pad, H, Dh)
        v = qkv[:, 2 * Dm:].reshape(T_pad, H, Dh)

        cos = cos_ref[...][:, None, :]                            # (T_pad, 1, Dh)
        sn = sn_ref[...][:, None, :]                              # sin * neg sign mask

        if Dh % 128 == 0:
            # lane-aligned head dim: XLU rotate (free slot)
            rot = lambda u: pltpu.roll(u, Dh // 2, axis=-1)
        else:
            # small / unaligned Dh (e.g. unit test): slice + concat
            rot = lambda u: jnp.concatenate(
                [u[..., Dh // 2:], u[..., :Dh // 2]], axis=-1)

        rq_s[...] = (cos * q + rot(q) * sn).astype(cdt)           # bf16 residents only
        rk_s[...] = (cos * k + rot(k) * sn).astype(cdt)
        v_s[...] = v.astype(cdt)

    # ---- per-q-chunk attention + MLP ----
    a = pl.multiple_of(qi * q_chunk, q_chunk)
    rq_c = rq_s[pl.ds(a, q_chunk), :, :]                          # (tq, H, Dh) bf16

    # 1/sqrt(Dh) already folded into Wq/bq in the wrapper.
    s = jnp.einsum('qhd,khd->hqk', rq_c, rk_s[...],
                   preferred_element_type=jnp.float32)            # (H, tq, T_pad) f32

    if causal:
        # causal + key-padding bias generated in-kernel (no (T,T) HBM/VMEM traffic)
        rows = a + jax.lax.broadcasted_iota(jnp.int32, (q_chunk, T_pad), 0)
        cols = jax.lax.broadcasted_iota(jnp.int32, (q_chunk, T_pad), 1)
        bias = jnp.where((cols > rows) | (cols >= t_valid),
                         jnp.float32(-1e30), jnp.float32(0.0))
    else:
        bias = bias_ref[...]                                      # (tq, T_pad) tile
    s = s + bias[None, :, :]

    m = jnp.max(s, axis=-1, keepdims=True)
    e = jnp.exp(s - m)
    l = jnp.sum(e, axis=-1, keepdims=True)
    p = e * pl.reciprocal(l, approx=True)                         # EUP reciprocal

    attn = jnp.einsum('hqk,khd->qhd', p.astype(cdt), v_s[...],
                      preferred_element_type=jnp.float32)         # (tq, H, Dh) f32
    # NOTE: a multi-contracting-dim dot against Wo reshaped to (H,Dh,Dm) would avoid
    # this relayout but its Mosaic lowering support is not guaranteed; keep reshape.
    attn = attn.reshape(q_chunk, Dm)

    proj = (jnp.dot(attn.astype(cdt), wo_ref[...],
                    preferred_element_type=jnp.float32) + bo_ref[...])
    x2 = proj + x_ref[0, pl.ds(a, q_chunk), :]                    # residual 1 (f32)

    h2 = _layernorm(x2, g2_ref[...], b2_ref[...]).astype(cdt)
    up = jnp.dot(h2, wup_ref[...], preferred_element_type=jnp.float32) + bup_ref[...]
    # TODO(synk): actfunc.GELU source unknown; using tanh-approx GELU.
    up = jax.nn.gelu(up, approximate=True).astype(cdt)
    dn = jnp.dot(up, wdn_ref[...], preferred_element_type=jnp.float32) + bdn_ref[...]

    o_ref[0, :, :] = (dn + x2).astype(o_ref.dtype)                # residual 2, full block


# ----------------------------- wrapper ---------------------------------------

def _vmem_capacity_bytes():
    try:
        return int(pltpu.get_tpu_info().vmem_capacity_bytes)
    except Exception:
        return 128 * 2 ** 20


def transformer_block(x, attn_mask, cos, sin, perm_mask, neg_mask, params, *,
                      num_heads, q_chunk=None, causal=False,
                      compute_dtype=jnp.bfloat16, single_buffer_consts=True):
    B, T, Dm = x.shape
    H = num_heads
    Dh = Dm // H
    cdt = compute_dtype

    # Only the standard rotate-half permutation is supported (checked only when the
    # perm is concrete, so this never forces a sync / concretization under jit).
    try:
        perm_np = np.asarray(perm_mask)
    except Exception:
        perm_np = None
    if perm_np is not None:
        expected = np.concatenate([np.arange(Dh // 2, Dh), np.arange(0, Dh // 2)])
        if not np.array_equal(perm_np, expected):
            # TODO(synk): arbitrary RoPE permutations would need an in-kernel gather.
            raise NotImplementedError("only rotate-half perm_mask is supported")

    vmem_cap = _vmem_capacity_bytes()
    if q_chunk is None:
        # generation-aware default: smaller chunk on 64 MiB-VMEM parts (v7x)
        q_chunk = 256 if vmem_cap > 96 * 2 ** 20 else 128
    q_chunk = max(8, ((min(q_chunk, T) + 7) // 8) * 8)            # multiple of 8
    n_q = (T + q_chunk - 1) // q_chunk
    T_pad = n_q * q_chunk
    pad = T_pad - T

    # ---- operand prep (one-off, outside the kernel) ----
    scale = 1.0 / math.sqrt(Dh)
    # de-interleave W_qkv columns (head,{q,k,v},dh) into contiguous [Q|K|V] blocks,
    # folding the softmax scale into Q (RoPE is linear, so this is exact).
    wqkv = params["wqkv"].reshape(Dm, H, 3, Dh)
    wq = wqkv[:, :, 0, :].reshape(Dm, Dm) * scale
    wk = wqkv[:, :, 1, :].reshape(Dm, Dm)
    wv = wqkv[:, :, 2, :].reshape(Dm, Dm)
    w_fused = jnp.concatenate([wq, wk, wv], axis=1).astype(cdt)   # (Dm, 3*Dm)
    bqkv = params["bqkv"].reshape(H, 3, Dh)
    b_fused = jnp.concatenate(
        [bqkv[:, 0, :].reshape(-1) * scale,
         bqkv[:, 1, :].reshape(-1),
         bqkv[:, 2, :].reshape(-1)]).reshape(1, 3 * Dm).astype(jnp.float32)

    wo = params["wo"].astype(cdt)
    wup = params["wup"].astype(cdt)
    wdn = params["wdn"].astype(cdt)

    sinneg = (sin * neg_mask[None, :]).astype(jnp.float32)        # sign folded into sin
    cosf = cos.astype(jnp.float32)
    x_in = x
    if pad:
        x_in = jnp.pad(x, ((0, 0), (0, pad), (0, 0)))
        cosf = jnp.pad(cosf, ((0, pad), (0, 0)))
        sinneg = jnp.pad(sinneg, ((0, pad), (0, 0)))

    operands = [x_in]
    if not causal:
        # General (module-faithful) mask path: additive bias, tiled per q-chunk.
        # NOTE: -1e30 (not -inf) so fully-masked rows stay finite.
        bias = jnp.where(attn_mask, jnp.float32(-1e30), jnp.float32(0.0))
        if pad:
            bias = jnp.pad(bias, ((0, pad), (0, pad)), constant_values=-1e30)
        operands.append(bias)
    operands += [
        cosf, sinneg,
        params["g1"].astype(jnp.float32), params["b1"].astype(jnp.float32),
        w_fused, b_fused,
        wo, params["bo"].astype(jnp.float32),
        params["g2"].astype(jnp.float32), params["b2"].astype(jnp.float32),
        wup, params["bup"].astype(jnp.float32),
        wdn, params["bdn"].astype(jnp.float32),
    ]

    def const_spec(shape):
        nd = len(shape)
        idx = lambda b, qi: (0,) * nd
        if single_buffer_consts:
            return pl.BlockSpec(shape, idx, pipeline_mode=pl.Buffered(1))
        return pl.BlockSpec(shape, idx)

    in_specs = [pl.BlockSpec((1, T_pad, Dm), lambda b, qi: (b, 0, 0))]   # x (full seq)
    if not causal:
        in_specs.append(pl.BlockSpec((q_chunk, T_pad), lambda b, qi: (qi, 0)))  # bias tile
    in_specs += [
        const_spec((T_pad, Dh)), const_spec((T_pad, Dh)),         # cos, sin*neg
        const_spec((1, Dm)), const_spec((1, Dm)),                 # g1, b1
        const_spec((Dm, 3 * Dm)), const_spec((1, 3 * Dm)),        # fused Wqkv, bqkv
        const_spec((Dm, Dm)), const_spec((1, Dm)),                # Wo, bo
        const_spec((1, Dm)), const_spec((1, Dm)),                 # g2, b2
        const_spec((Dm, 4 * Dm)), const_spec((1, 4 * Dm)),        # Wup, bup
        const_spec((4 * Dm, Dm)), const_spec((1, Dm)),            # Wdn, bdn
    ]
    out_spec = pl.BlockSpec((1, q_chunk, Dm), lambda b, qi: (b, qi, 0))

    scratch = [pltpu.VMEM((T_pad, H, Dh), cdt),                   # rq (bf16)
               pltpu.VMEM((T_pad, H, Dh), cdt),                   # rk (bf16)
               pltpu.VMEM((T_pad, H, Dh), cdt)]                   # v  (bf16)

    # ---- cost estimate + generation-aware VMEM budget ----
    itemw = jnp.dtype(cdt).itemsize
    lanes = max(Dh, 128)                                          # lane-padded scratch
    flops = 24 * B * T_pad * Dm * Dm + 4 * B * T_pad * T_pad * Dm
    transcendentals = B * H * T_pad * T_pad + 4 * B * T_pad * Dm + 4 * B * T_pad
    weight_bytes = 12 * Dm * Dm * itemw + 18 * Dm * 4
    table_bytes = 2 * T_pad * Dh * 4
    mask_hbm = 0 if causal else B * T_pad * T_pad * 4
    cost = pl.CostEstimate(
        flops=int(flops), transcendentals=int(transcendentals),
        bytes_accessed=int(weight_bytes + table_bytes + mask_hbm
                           + 2 * B * T_pad * Dm * 4))

    wbuf = 1 if single_buffer_consts else 2
    persistent = wbuf * (weight_bytes + 2 * T_pad * lanes * 4)
    scratch_bytes = 3 * T_pad * H * lanes * itemw
    x_bytes = 2 * T_pad * Dm * 4
    out_bytes = 2 * q_chunk * Dm * 4
    mask_buf = 0 if causal else 2 * q_chunk * T_pad * 4
    chunk_tmp = (H * q_chunk * T_pad * (3 * 4 + itemw)            # s / e / p + bf16 copy
                 + 3 * q_chunk * Dm * 4                           # attn / proj / x2
                 + q_chunk * 4 * Dm * (4 + itemw))                # MLP intermediate
    head_tmp = (T_pad * Dm * itemw + 3 * T_pad * Dm * 4           # h1 + fused qkv
                + 2 * T_pad * H * lanes * 4)                      # rope f32 temps
    vmem_need = int(1.3 * (persistent + scratch_bytes + x_bytes + out_bytes
                           + mask_buf + max(chunk_tmp, head_tmp))) + (1 << 20)
    vmem_limit = max(32 * 2 ** 20, min(vmem_need, int(0.9 * vmem_cap)))

    kernel = functools.partial(
        transformer_block_kernel,
        num_heads=H, head_dim=Dh, model_dim=Dm, q_chunk=q_chunk,
        t_valid=T, causal=causal, compute_dtype=cdt)

    out = pl.pallas_call(
        kernel,
        out_shape=jax.ShapeDtypeStruct((B, T_pad, Dm), jnp.float32),
        grid_spec=pltpu.PrefetchScalarGridSpec(
            num_scalar_prefetch=0,
            grid=(B, n_q),
            in_specs=in_specs,
            out_specs=out_spec,
            scratch_shapes=scratch),
        compiler_params=pltpu.CompilerParams(
            dimension_semantics=("parallel", "arbitrary"),
            vmem_limit_bytes=vmem_limit),
        cost_estimate=cost,
    )(*operands)

    return out[:, :T, :] if pad else out


# ----------------------------- pure-JAX reference -----------------------------

def reference(x, mask_bool, cos, sin, perm, neg, p, *, num_heads):
    B, T, Dm = x.shape
    Dh = Dm // num_heads

    def ln(v, g, b, eps=1e-5):
        mu = v.mean(-1, keepdims=True)
        var = ((v - mu) ** 2).mean(-1, keepdims=True)
        return (v - mu) / jnp.sqrt(var + eps) * g[0] + b[0]

    h1 = ln(x, p["g1"], p["b1"])
    qkv = h1 @ p["wqkv"] + p["bqkv"][0]
    qkv = qkv.reshape(B, T, num_heads, 3, Dh)
    q = jnp.transpose(qkv[:, :, :, 0, :], (0, 2, 1, 3))   # (B,H,T,Dh)
    k = jnp.transpose(qkv[:, :, :, 1, :], (0, 2, 1, 3))
    v = jnp.transpose(qkv[:, :, :, 2, :], (0, 2, 1, 3))
    rq = cos * q + (q[..., perm] * neg) * sin
    rk = cos * k + (k[..., perm] * neg) * sin
    s = rq @ jnp.swapaxes(rk, -1, -2) / math.sqrt(Dh)
    s = jnp.where(mask_bool, -jnp.inf, s)
    att = jax.nn.softmax(s, axis=-1) @ v
    att = jnp.transpose(att, (0, 2, 1, 3)).reshape(B, T, Dm)
    x2 = att @ p["wo"] + p["bo"][0] + x
    h2 = ln(x2, p["g2"], p["b2"])
    up = jax.nn.gelu(h2 @ p["wup"] + p["bup"][0], approximate=True)
    return up @ p["wdn"] + p["bdn"][0] + x2


# ----------------------------- main -------------------------------------------

if __name__ == "__main__":
    B, T, Dm, H = 2, 16, 32, 4
    Dh = Dm // H

    key = jax.random.PRNGKey(0)
    keys = jax.random.split(key, 10)

    x = jax.random.normal(keys[0], (B, T, Dm), jnp.float32)

    # causal mask: True above the diagonal => masked
    mask_bool = jnp.triu(jnp.ones((T, T), bool), k=1)

    # RoPE tables
    inv_freq = 1.0 / (10000.0 ** (jnp.arange(0, Dh, 2, dtype=jnp.float32) / Dh))
    angles = jnp.arange(T, dtype=jnp.float32)[:, None] * inv_freq[None, :]
    cos = jnp.concatenate([jnp.cos(angles)] * 2, axis=-1)     # (T, Dh)
    sin = jnp.concatenate([jnp.sin(angles)] * 2, axis=-1)

    # rotate-half permutation + sign mask
    perm = jnp.concatenate([jnp.arange(Dh // 2, Dh), jnp.arange(0, Dh // 2)])
    neg = jnp.concatenate([-jnp.ones(Dh // 2), jnp.ones(Dh // 2)]).astype(jnp.float32)

    s = 0.05
    params = {
        "g1": jnp.ones((1, Dm), jnp.float32),
        "b1": jnp.zeros((1, Dm), jnp.float32),
        "wqkv": s * jax.random.normal(keys[1], (Dm, 3 * Dm), jnp.float32),
        "bqkv": s * jax.random.normal(keys[2], (1, 3 * Dm), jnp.float32),
        "wo": s * jax.random.normal(keys[3], (Dm, Dm), jnp.float32),
        "bo": s * jax.random.normal(keys[4], (1, Dm), jnp.float32),
        "g2": jnp.ones((1, Dm), jnp.float32),
        "b2": jnp.zeros((1, Dm), jnp.float32),
        "wup": s * jax.random.normal(keys[5], (Dm, 4 * Dm), jnp.float32),
        "bup": s * jax.random.normal(keys[6], (1, 4 * Dm), jnp.float32),
        "wdn": s * jax.random.normal(keys[7], (4 * Dm, Dm), jnp.float32),
        "bdn": s * jax.random.normal(keys[8], (1, Dm), jnp.float32),
    }

    common = dict(num_heads=H, q_chunk=8)   # q_chunk=8 -> exercises the multi-chunk grid

    # fast path: causal bias generated in-kernel (no mask traffic at all)
    out_causal = transformer_block(x, mask_bool, cos, sin, perm, neg, params,
                                   causal=True, **common)
    # general path: arbitrary boolean mask, tiled per q-chunk (module-faithful)
    out_masked = transformer_block(x, mask_bool, cos, sin, perm, neg, params,
                                   causal=False, **common)
    out_causal, out_masked = jax.block_until_ready((out_causal, out_masked))

    ref = reference(x, mask_bool, cos, sin, perm, neg, params, num_heads=H)
    err_c = float(jnp.max(jnp.abs(out_causal - ref)))
    err_m = float(jnp.max(jnp.abs(out_masked - ref)))
    # bf16 matmul inputs (f32 accumulation) + approx reciprocal vs f32 reference
    assert err_c < 3e-2, err_c
    assert err_m < 3e-2, err_m

    print("KERNEL_OK")
</pallas_src>

<mosaic_0001>
module attributes {stable_mosaic.version = 11 : i64} {
  func.func @transformer_block_kernel(%arg0: i32, %arg1: i32, %arg2: memref<1x16x32xf32, #tpu.memory_space<vmem>>, %arg3: memref<16x8xf32, #tpu.memory_space<vmem>>, %arg4: memref<16x8xf32, #tpu.memory_space<vmem>>, %arg5: memref<1x32xf32, #tpu.memory_space<vmem>>, %arg6: memref<1x32xf32, #tpu.memory_space<vmem>>, %arg7: memref<32x96xbf16, #tpu.memory_space<vmem>>, %arg8: memref<1x96xf32, #tpu.memory_space<vmem>>, %arg9: memref<32x32xbf16, #tpu.memory_space<vmem>>, %arg10: memref<1x32xf32, #tpu.memory_space<vmem>>, %arg11: memref<1x32xf32, #tpu.memory_space<vmem>>, %arg12: memref<1x32xf32, #tpu.memory_space<vmem>>, %arg13: memref<32x128xbf16, #tpu.memory_space<vmem>>, %arg14: memref<1x128xf32, #tpu.memory_space<vmem>>, %arg15: memref<128x32xbf16, #tpu.memory_space<vmem>>, %arg16: memref<1x32xf32, #tpu.memory_space<vmem>>, %arg17: memref<1x8x32xf32, #tpu.memory_space<vmem>>, %arg18: memref<16x4x8xbf16, #tpu.memory_space<vmem>>, %arg19: memref<16x4x8xbf16, #tpu.memory_space<vmem>>, %arg20: memref<16x4x8xbf16, #tpu.memory_space<vmem>>) attributes {dimension_semantics = [#tpu.dimension_semantics<parallel>, #tpu.dimension_semantics<arbitrary>], iteration_bounds = array<i64: 2, 2>, scalar_prefetch = 0 : i64, scratch_operands = 3 : i64, tpu.core_type = #tpu.core_type<tc>, window_params = [{transform_indices = @transform_0, window_bounds = array<i64: 1, 16, 32>}, {pipeline_mode = #tpu.pipeline_mode<synchronous>, transform_indices = @transform_1, window_bounds = array<i64: 16, 8>}, {pipeline_mode = #tpu.pipeline_mode<synchronous>, transform_indices = @transform_2, window_bounds = array<i64: 16, 8>}, {pipeline_mode = #tpu.pipeline_mode<synchronous>, transform_indices = @transform_3, window_bounds = array<i64: 1, 32>}, {pipeline_mode = #tpu.pipeline_mode<synchronous>, transform_indices = @transform_4, window_bounds = array<i64: 1, 32>}, {pipeline_mode = #tpu.pipeline_mode<synchronous>, transform_indices = @transform_5, window_bounds = array<i64: 32, 96>}, {pipeline_mode = #tpu.pipeline_mode<synchronous>, transform_indices = @transform_6, window_bounds = array<i64: 1, 96>}, {pipeline_mode = #tpu.pipeline_mode<synchronous>, transform_indices = @transform_7, window_bounds = array<i64: 32, 32>}, {pipeline_mode = #tpu.pipeline_mode<synchronous>, transform_indices = @transform_8, window_bounds = array<i64: 1, 32>}, {pipeline_mode = #tpu.pipeline_mode<synchronous>, transform_indices = @transform_9, window_bounds = array<i64: 1, 32>}, {pipeline_mode = #tpu.pipeline_mode<synchronous>, transform_indices = @transform_10, window_bounds = array<i64: 1, 32>}, {pipeline_mode = #tpu.pipeline_mode<synchronous>, transform_indices = @transform_11, window_bounds = array<i64: 32, 128>}, {pipeline_mode = #tpu.pipeline_mode<synchronous>, transform_indices = @transform_12, window_bounds = array<i64: 1, 128>}, {pipeline_mode = #tpu.pipeline_mode<synchronous>, transform_indices = @transform_13, window_bounds = array<i64: 128, 32>}, {pipeline_mode = #tpu.pipeline_mode<synchronous>, transform_indices = @transform_14, window_bounds = array<i64: 1, 32>}, {transform_indices = @transform_15, window_bounds = array<i64: 1, 8, 32>}]} {
    %c0_i32 = arith.constant 0 : i32
    %0 = arith.cmpi eq, %arg1, %c0_i32 : i32
    %1 = arith.extui %0 : i1 to i32
    %c0_i32_0 = arith.constant 0 : i32
    %2 = arith.cmpi ne, %1, %c0_i32_0 : i32
    scf.if %2 {
      %c0_46 = arith.constant 0 : index
      %c0_47 = arith.constant 0 : index
      %c0_48 = arith.constant 0 : index
      %101 = vector.load %arg2[%c0_46, %c0_47, %c0_48] : memref<1x16x32xf32, #tpu.memory_space<vmem>>, vector<1x16x32xf32>
      %102 = vector.shape_cast %101 : vector<1x16x32xf32> to vector<16x32xf32>
      %c0_49 = arith.constant 0 : index
      %c0_50 = arith.constant 0 : index
      %103 = vector.load %arg5[%c0_49, %c0_50] : memref<1x32xf32, #tpu.memory_space<vmem>>, vector<1x32xf32>
      %c0_51 = arith.constant 0 : index
      %c0_52 = arith.constant 0 : index
      %104 = vector.load %arg6[%c0_51, %c0_52] : memref<1x32xf32, #tpu.memory_space<vmem>>, vector<1x32xf32>
      %cst_53 = arith.constant dense<0.000000e+00> : vector<16xf32>
      %105 = vector.multi_reduction <add>, %102, %cst_53 [1] : vector<16x32xf32> to vector<16xf32>
      %106 = vector.shape_cast %105 : vector<16xf32> to vector<16x1xf32>
      %cst_54 = arith.constant 3.200000e+01 : f32
      %107 = vector.broadcast %cst_54 : f32 to vector<16x1xf32>
      %108 = arith.divf %106, %107 : vector<16x1xf32>
      %109 = vector.broadcast %108 : vector<16x1xf32> to vector<16x32xf32>
      %110 = arith.subf %102, %109 : vector<16x32xf32>
      %111 = arith.mulf %110, %110 : vector<16x32xf32>
      %cst_55 = arith.constant dense<0.000000e+00> : vector<16xf32>
      %112 = vector.multi_reduction <add>, %111, %cst_55 [1] : vector<16x32xf32> to vector<16xf32>
      %113 = vector.shape_cast %112 : vector<16xf32> to vector<16x1xf32>
      %cst_56 = arith.constant 3.200000e+01 : f32
      %114 = vector.broadcast %cst_56 : f32 to vector<16x1xf32>
      %115 = arith.divf %113, %114 : vector<16x1xf32>
      %116 = vector.broadcast %108 : vector<16x1xf32> to vector<16x32xf32>
      %117 = arith.subf %102, %116 : vector<16x32xf32>
      %cst_57 = arith.constant 9.99999974E-6 : f32
      %118 = vector.broadcast %cst_57 : f32 to vector<16x1xf32>
      %119 = arith.addf %115, %118 : vector<16x1xf32>
      %120 = math.rsqrt %119 : vector<16x1xf32>
      %121 = vector.broadcast %120 : vector<16x1xf32> to vector<16x32xf32>
      %122 = arith.mulf %117, %121 : vector<16x32xf32>
      %123 = vector.broadcast %103 : vector<1x32xf32> to vector<16x32xf32>
      %124 = arith.mulf %122, %123 : vector<16x32xf32>
      %125 = vector.broadcast %104 : vector<1x32xf32> to vector<16x32xf32>
      %126 = arith.addf %124, %125 : vector<16x32xf32>
      %127 = arith.truncf %126 : vector<16x32xf32> to vector<16x32xbf16>
      %c0_58 = arith.constant 0 : index
      %c0_59 = arith.constant 0 : index
      %128 = vector.load %arg7[%c0_58, %c0_59] : memref<32x96xbf16, #tpu.memory_space<vmem>>, vector<32x96xbf16>
      %cst_60 = arith.constant dense<0.000000e+00> : vector<16x96xf32>
      %129 = tpu.matmul %127, %128, %cst_60 {dimension_numbers = #tpu.dot_dimension_numbers<[1], [0], [0], [1], [0, 0, 1, 1], [], []>} : vector<16x32xbf16>, vector<32x96xbf16>, vector<16x96xf32> -> vector<16x96xf32>
      %c0_61 = arith.constant 0 : index
      %c0_62 = arith.constant 0 : index
      %130 = vector.load %arg8[%c0_61, %c0_62] : memref<1x96xf32, #tpu.memory_space<vmem>>, vector<1x96xf32>
      %131 = vector.broadcast %130 : vector<1x96xf32> to vector<16x96xf32>
      %132 = arith.addf %129, %131 : vector<16x96xf32>
      %133 = vector.extract_strided_slice %132 {offsets = [0, 0], sizes = [16, 32], strides = [1, 1]} : vector<16x96xf32> to vector<16x32xf32>
      %134 = vector.shape_cast %133 : vector<16x32xf32> to vector<16x4x8xf32>
      %135 = vector.extract_strided_slice %132 {offsets = [0, 32], sizes = [16, 32], strides = [1, 1]} : vector<16x96xf32> to vector<16x32xf32>
      %136 = vector.shape_cast %135 : vector<16x32xf32> to vector<16x4x8xf32>
      %137 = vector.extract_strided_slice %132 {offsets = [0, 64], sizes = [16, 32], strides = [1, 1]} : vector<16x96xf32> to vector<16x32xf32>
      %138 = vector.shape_cast %137 : vector<16x32xf32> to vector<16x4x8xf32>
      %c0_63 = arith.constant 0 : index
      %c0_64 = arith.constant 0 : index
      %139 = vector.load %arg3[%c0_63, %c0_64] : memref<16x8xf32, #tpu.memory_space<vmem>>, vector<16x8xf32>
      %140 = vector.shape_cast %139 : vector<16x8xf32> to vector<16x1x8xf32>
      %c0_65 = arith.constant 0 : index
      %c0_66 = arith.constant 0 : index
      %141 = vector.load %arg4[%c0_65, %c0_66] : memref<16x8xf32, #tpu.memory_space<vmem>>, vector<16x8xf32>
      %142 = vector.shape_cast %141 : vector<16x8xf32> to vector<16x1x8xf32>
      %143 = vector.broadcast %140 : vector<16x1x8xf32> to vector<16x4x8xf32>
      %144 = arith.mulf %143, %134 : vector<16x4x8xf32>
      %145 = vector.extract_strided_slice %134 {offsets = [0, 0, 4], sizes = [16, 4, 4], strides = [1, 1, 1]} : vector<16x4x8xf32> to vector<16x4x4xf32>
      %146 = vector.extract_strided_slice %134 {offsets = [0, 0, 0], sizes = [16, 4, 4], strides = [1, 1, 1]} : vector<16x4x8xf32> to vector<16x4x4xf32>
      %147 = tpu.concatenate %145, %146 in 2 : vector<16x4x4xf32>, vector<16x4x4xf32> -> vector<16x4x8xf32>
      %148 = vector.broadcast %142 : vector<16x1x8xf32> to vector<16x4x8xf32>
      %149 = arith.mulf %147, %148 : vector<16x4x8xf32>
      %150 = arith.addf %144, %149 : vector<16x4x8xf32>
      %151 = arith.truncf %150 : vector<16x4x8xf32> to vector<16x4x8xbf16>
      %c0_67 = arith.constant 0 : index
      %c0_68 = arith.constant 0 : index
      %c0_69 = arith.constant 0 : index
      %152 = vector.load %arg18[%c0_67, %c0_68, %c0_69] : memref<16x4x8xbf16, #tpu.memory_space<vmem>>, vector<16x4x8xbf16>
      tpu.vector_store %arg18[%c0_67, %c0_68, %c0_69], %151 {strides = array<i32>} : memref<16x4x8xbf16, #tpu.memory_space<vmem>>, vector<16x4x8xbf16>,
      %153 = vector.broadcast %140 : vector<16x1x8xf32> to vector<16x4x8xf32>
      %154 = arith.mulf %153, %136 : vector<16x4x8xf32>
      %155 = vector.extract_strided_slice %136 {offsets = [0, 0, 4], sizes = [16, 4, 4], strides = [1, 1, 1]} : vector<16x4x8xf32> to vector<16x4x4xf32>
      %156 = vector.extract_strided_slice %136 {offsets = [0, 0, 0], sizes = [16, 4, 4], strides = [1, 1, 1]} : vector<16x4x8xf32> to vector<16x4x4xf32>
      %157 = tpu.concatenate %155, %156 in 2 : vector<16x4x4xf32>, vector<16x4x4xf32> -> vector<16x4x8xf32>
      %158 = vector.broadcast %142 : vector<16x1x8xf32> to vector<16x4x8xf32>
      %159 = arith.mulf %157, %158 : vector<16x4x8xf32>
      %160 = arith.addf %154, %159 : vector<16x4x8xf32>
      %161 = arith.truncf %160 : vector<16x4x8xf32> to vector<16x4x8xbf16>
      %c0_70 = arith.constant 0 : index
      %c0_71 = arith.constant 0 : index
      %c0_72 = arith.constant 0 : index
      %162 = vector.load %arg19[%c0_70, %c0_71, %c0_72] : memref<16x4x8xbf16, #tpu.memory_space<vmem>>, vector<16x4x8xbf16>
      tpu.vector_store %arg19[%c0_70, %c0_71, %c0_72], %161 {strides = array<i32>} : memref<16x4x8xbf16, #tpu.memory_space<vmem>>, vector<16x4x8xbf16>,
      %163 = arith.truncf %138 : vector<16x4x8xf32> to vector<16x4x8xbf16>
      %c0_73 = arith.constant 0 : index
      %c0_74 = arith.constant 0 : index
      %c0_75 = arith.constant 0 : index
      %164 = vector.load %arg20[%c0_73, %c0_74, %c0_75] : memref<16x4x8xbf16, #tpu.memory_space<vmem>>, vector<16x4x8xbf16>
      tpu.vector_store %arg20[%c0_73, %c0_74, %c0_75], %163 {strides = array<i32>} : memref<16x4x8xbf16, #tpu.memory_space<vmem>>, vector<16x4x8xbf16>,
    } else {
    }
    %c8_i32 = arith.constant 8 : i32
    %3 = arith.muli %arg1, %c8_i32 : i32
    %4 = tpu.assume_multiple %3, 8 : i32
    %5 = arith.index_cast %4 : i32 to index
    %c0 = arith.constant 0 : index
    %c0_1 = arith.constant 0 : index
    %6 = vector.load %arg18[%5, %c0, %c0_1] : memref<16x4x8xbf16, #tpu.memory_space<vmem>>, vector<8x4x8xbf16>
    %c0_2 = arith.constant 0 : index
    %c0_3 = arith.constant 0 : index
    %c0_4 = arith.constant 0 : index
    %7 = vector.load %arg19[%c0_2, %c0_3, %c0_4] : memref<16x4x8xbf16, #tpu.memory_space<vmem>>, vector<16x4x8xbf16>
    "tpu.trace_start"() <{level = 10 : i32, message = "qhd,khd->hqk"}> : () -> ()
    %cst = arith.constant dense<0.000000e+00> : vector<4x8x16xf32>
    %8 = tpu.matmul %6, %7, %cst {dimension_numbers = #tpu.dot_dimension_numbers<[2], [2], [0], [0], [0, 1, 0, 0, 1, 0], [1], [1]>} : vector<8x4x8xbf16>, vector<16x4x8xbf16>, vector<4x8x16xf32> -> vector<4x8x16xf32>
    "tpu.trace_stop"() : () -> ()
    %9 = tpu.iota {dimensions = array<i32: 0>} : vector<8x16xi32>
    %10 = vector.broadcast %4 : i32 to vector<8x16xi32>
    %11 = arith.addi %10, %9 : vector<8x16xi32>
    %12 = tpu.iota {dimensions = array<i32: 1>} : vector<8x16xi32>
    %13 = arith.cmpi sgt, %12, %11 : vector<8x16xi32>
    %c16_i32 = arith.constant 16 : i32
    %14 = vector.broadcast %c16_i32 : i32 to vector<8x16xi32>
    %15 = arith.cmpi sge, %12, %14 : vector<8x16xi32>
    %16 = arith.ori %13, %15 : vector<8x16xi1>
    %cst_5 = arith.constant -1.000000e+30 : f32
    %cst_6 = arith.constant 0.000000e+00 : f32
    %17 = vector.broadcast %cst_5 : f32 to vector<8x16xf32>
    %18 = vector.broadcast %cst_6 : f32 to vector<8x16xf32>
    %19 = arith.select %16, %17, %18 : vector<8x16xi1>, vector<8x16xf32>
    %20 = vector.shape_cast %19 : vector<8x16xf32> to vector<1x8x16xf32>
    %21 = vector.broadcast %20 : vector<1x8x16xf32> to vector<4x8x16xf32>
    %22 = arith.addf %8, %21 : vector<4x8x16xf32>
    %cst_7 = arith.constant dense<0xFF800000> : vector<4x8xf32>
    %23 = vector.multi_reduction <maximumf>, %22, %cst_7 [2] : vector<4x8x16xf32> to vector<4x8xf32>
    %24 = vector.shape_cast %23 : vector<4x8xf32> to vector<4x8x1xf32>
    %25 = vector.broadcast %24 : vector<4x8x1xf32> to vector<4x8x16xf32>
    %26 = arith.subf %22, %25 : vector<4x8x16xf32>
    %27 = math.exp %26 : vector<4x8x16xf32>
    %cst_8 = arith.constant dense<0.000000e+00> : vector<4x8xf32>
    %28 = vector.multi_reduction <add>, %27, %cst_8 [2] : vector<4x8x16xf32> to vector<4x8xf32>
    %29 = vector.shape_cast %28 : vector<4x8xf32> to vector<4x8x1xf32>
    %30 = tpu.reciprocal %29 {approx = true} : vector<4x8x1xf32> -> vector<4x8x1xf32>
    %31 = vector.broadcast %30 : vector<4x8x1xf32> to vector<4x8x16xf32>
    %32 = arith.mulf %27, %31 : vector<4x8x16xf32>
    %33 = arith.truncf %32 : vector<4x8x16xf32> to vector<4x8x16xbf16>
    %c0_9 = arith.constant 0 : index
    %c0_10 = arith.constant 0 : index
    %c0_11 = arith.constant 0 : index
    %34 = vector.load %arg20[%c0_9, %c0_10, %c0_11] : memref<16x4x8xbf16, #tpu.memory_space<vmem>>, vector<16x4x8xbf16>
    "tpu.trace_start"() <{level = 10 : i32, message = "hqk,khd->qhd"}> : () -> ()
    %cst_12 = arith.constant dense<0.000000e+00> : vector<4x8x8xf32>
    %35 = tpu.matmul %34, %33, %cst_12 {dimension_numbers = #tpu.dot_dimension_numbers<[0], [2], [2], [1], [0, 1, 0, 2, 1, 1], [1], [0]>} : vector<16x4x8xbf16>, vector<4x8x16xbf16>, vector<4x8x8xf32> -> vector<4x8x8xf32>
    %36 = tpu.transpose %35, [2, 0, 1] : vector<4x8x8xf32> -> vector<8x4x8xf32>
    "tpu.trace_stop"() : () -> ()
    %37 = vector.shape_cast %36 : vector<8x4x8xf32> to vector<8x32xf32>
    %38 = arith.truncf %37 : vector<8x32xf32> to vector<8x32xbf16>
    %c0_13 = arith.constant 0 : index
    %c0_14 = arith.constant 0 : index
    %39 = vector.load %arg9[%c0_13, %c0_14] : memref<32x32xbf16, #tpu.memory_space<vmem>>, vector<32x32xbf16>
    %cst_15 = arith.constant dense<0.000000e+00> : vector<8x32xf32>
    %40 = tpu.matmul %38, %39, %cst_15 {dimension_numbers = #tpu.dot_dimension_numbers<[1], [0], [0], [1], [0, 0, 1, 1], [], []>} : vector<8x32xbf16>, vector<32x32xbf16>, vector<8x32xf32> -> vector<8x32xf32>
    %c0_16 = arith.constant 0 : index
    %c0_17 = arith.constant 0 : index
    %41 = vector.load %arg10[%c0_16, %c0_17] : memref<1x32xf32, #tpu.memory_space<vmem>>, vector<1x32xf32>
    %42 = vector.broadcast %41 : vector<1x32xf32> to vector<8x32xf32>
    %43 = arith.addf %40, %42 : vector<8x32xf32>
    %c0_18 = arith.constant 0 : index
    %44 = arith.index_cast %4 : i32 to index
    %c0_19 = arith.constant 0 : index
    %45 = vector.load %arg2[%c0_18, %44, %c0_19] : memref<1x16x32xf32, #tpu.memory_space<vmem>>, vector<1x8x32xf32>
    %46 = vector.shape_cast %45 : vector<1x8x32xf32> to vector<8x32xf32>
    %47 = arith.addf %43, %46 : vector<8x32xf32>
    %c0_20 = arith.constant 0 : index
    %c0_21 = arith.constant 0 : index
    %48 = vector.load %arg11[%c0_20, %c0_21] : memref<1x32xf32, #tpu.memory_space<vmem>>, vector<1x32xf32>
    %c0_22 = arith.constant 0 : index
    %c0_23 = arith.constant 0 : index
    %49 = vector.load %arg12[%c0_22, %c0_23] : memref<1x32xf32, #tpu.memory_space<vmem>>, vector<1x32xf32>
    %cst_24 = arith.constant dense<0.000000e+00> : vector<8xf32>
    %50 = vector.multi_reduction <add>, %47, %cst_24 [1] : vector<8x32xf32> to vector<8xf32>
    %51 = vector.shape_cast %50 : vector<8xf32> to vector<8x1xf32>
    %cst_25 = arith.constant 3.200000e+01 : f32
    %52 = vector.broadcast %cst_25 : f32 to vector<8x1xf32>
    %53 = arith.divf %51, %52 : vector<8x1xf32>
    %54 = vector.broadcast %53 : vector<8x1xf32> to vector<8x32xf32>
    %55 = arith.subf %47, %54 : vector<8x32xf32>
    %56 = arith.mulf %55, %55 : vector<8x32xf32>
    %cst_26 = arith.constant dense<0.000000e+00> : vector<8xf32>
    %57 = vector.multi_reduction <add>, %56, %cst_26 [1] : vector<8x32xf32> to vector<8xf32>
    %58 = vector.shape_cast %57 : vector<8xf32> to vector<8x1xf32>
    %cst_27 = arith.constant 3.200000e+01 : f32
    %59 = vector.broadcast %cst_27 : f32 to vector<8x1xf32>
    %60 = arith.divf %58, %59 : vector<8x1xf32>
    %61 = vector.broadcast %53 : vector<8x1xf32> to vector<8x32xf32>
    %62 = arith.subf %47, %61 : vector<8x32xf32>
    %cst_28 = arith.constant 9.99999974E-6 : f32
    %63 = vector.broadcast %cst_28 : f32 to vector<8x1xf32>
    %64 = arith.addf %60, %63 : vector<8x1xf32>
    %65 = math.rsqrt %64 : vector<8x1xf32>
    %66 = vector.broadcast %65 : vector<8x1xf32> to vector<8x32xf32>
    %67 = arith.mulf %62, %66 : vector<8x32xf32>
    %68 = vector.broadcast %48 : vector<1x32xf32> to vector<8x32xf32>
    %69 = arith.mulf %67, %68 : vector<8x32xf32>
    %70 = vector.broadcast %49 : vector<1x32xf32> to vector<8x32xf32>
    %71 = arith.addf %69, %70 : vector<8x32xf32>
    %72 = arith.truncf %71 : vector<8x32xf32> to vector<8x32xbf16>
    %c0_29 = arith.constant 0 : index
    %c0_30 = arith.constant 0 : index
    %73 = vector.load %arg13[%c0_29, %c0_30] : memref<32x128xbf16, #tpu.memory_space<vmem>>, vector<32x128xbf16>
    %cst_31 = arith.constant dense<0.000000e+00> : vector<8x128xf32>
    %74 = tpu.matmul %72, %73, %cst_31 {dimension_numbers = #tpu.dot_dimension_numbers<[1], [0], [0], [1], [0, 0, 1, 1], [], []>} : vector<8x32xbf16>, vector<32x128xbf16>, vector<8x128xf32> -> vector<8x128xf32>
    %c0_32 = arith.constant 0 : index
    %c0_33 = arith.constant 0 : index
    %75 = vector.load %arg14[%c0_32, %c0_33] : memref<1x128xf32, #tpu.memory_space<vmem>>, vector<1x128xf32>
    %76 = vector.broadcast %75 : vector<1x128xf32> to vector<8x128xf32>
    %77 = arith.addf %74, %76 : vector<8x128xf32>
    %78 = arith.mulf %77, %77 : vector<8x128xf32>
    %79 = arith.mulf %77, %78 : vector<8x128xf32>
    %cst_34 = arith.constant 4.471500e-02 : f32
    %80 = vector.broadcast %cst_34 : f32 to vector<8x128xf32>
    %81 = arith.mulf %80, %79 : vector<8x128xf32>
    %82 = arith.addf %77, %81 : vector<8x128xf32>
    %cst_35 = arith.constant 0.797884583 : f32
    %83 = vector.broadcast %cst_35 : f32 to vector<8x128xf32>
    %84 = arith.mulf %83, %82 : vector<8x128xf32>
    %85 = math.tanh %84 : vector<8x128xf32>
    %cst_36 = arith.constant 1.000000e+00 : f32
    %86 = vector.broadcast %cst_36 : f32 to vector<8x128xf32>
    %87 = arith.addf %86, %85 : vector<8x128xf32>
    %cst_37 = arith.constant 5.000000e-01 : f32
    %88 = vector.broadcast %cst_37 : f32 to vector<8x128xf32>
    %89 = arith.mulf %88, %87 : vector<8x128xf32>
    %90 = arith.mulf %77, %89 : vector<8x128xf32>
    %91 = arith.truncf %90 : vector<8x128xf32> to vector<8x128xbf16>
    %c0_38 = arith.constant 0 : index
    %c0_39 = arith.constant 0 : index
    %92 = vector.load %arg15[%c0_38, %c0_39] : memref<128x32xbf16, #tpu.memory_space<vmem>>, vector<128x32xbf16>
    %cst_40 = arith.constant dense<0.000000e+00> : vector<8x32xf32>
    %93 = tpu.matmul %91, %92, %cst_40 {dimension_numbers = #tpu.dot_dimension_numbers<[1], [0], [0], [1], [0, 0, 1, 1], [], []>} : vector<8x128xbf16>, vector<128x32xbf16>, vector<8x32xf32> -> vector<8x32xf32>
    %c0_41 = arith.constant 0 : index
    %c0_42 = arith.constant 0 : index
    %94 = vector.load %arg16[%c0_41, %c0_42] : memref<1x32xf32, #tpu.memory_space<vmem>>, vector<1x32xf32>
    %95 = vector.broadcast %94 : vector<1x32xf32> to vector<8x32xf32>
    %96 = arith.addf %93, %95 : vector<8x32xf32>
    %97 = arith.addf %96, %47 : vector<8x32xf32>
    %c0_43 = arith.constant 0 : index
    %c0_44 = arith.constant 0 : index
    %c0_45 = arith.constant 0 : index
    %98 = vector.load %arg17[%c0_43, %c0_44, %c0_45] : memref<1x8x32xf32, #tpu.memory_space<vmem>>, vector<1x8x32xf32>
    %99 = vector.shape_cast %98 : vector<1x8x32xf32> to vector<8x32xf32>
    %100 = vector.shape_cast %97 : vector<8x32xf32> to vector<1x8x32xf32>
    tpu.vector_store %arg17[%c0_43, %c0_44, %c0_45], %100 {strides = array<i32>} : memref<1x8x32xf32, #tpu.memory_space<vmem>>, vector<1x8x32xf32>,
    return
  }
  func.func @transform_0(%arg0: i32, %arg1: i32) -> (i32, i32, i32) {
    %c0_i32 = arith.constant 0 : i32
    %c0_i32_0 = arith.constant 0 : i32
    %c0_i32_1 = arith.constant 0 : i32
    return %arg0, %c0_i32, %c0_i32_0 : i32, i32, i32
  }
  func.func @transform_1(%arg0: i32, %arg1: i32) -> (i32, i32) {
    %c0_i32 = arith.constant 0 : i32
    %c0_i32_0 = arith.constant 0 : i32
    %c0_i32_1 = arith.constant 0 : i32
    return %c0_i32, %c0_i32_0 : i32, i32
  }
  func.func @transform_2(%arg0: i32, %arg1: i32) -> (i32, i32) {
    %c0_i32 = arith.constant 0 : i32
    %c0_i32_0 = arith.constant 0 : i32
    %c0_i32_1 = arith.constant 0 : i32
    return %c0_i32, %c0_i32_0 : i32, i32
  }
  func.func @transform_3(%arg0: i32, %arg1: i32) -> (i32, i32) {
    %c0_i32 = arith.constant 0 : i32
    %c0_i32_0 = arith.constant 0 : i32
    %c0_i32_1 = arith.constant 0 : i32
    return %c0_i32, %c0_i32_0 : i32, i32
  }
  func.func @transform_4(%arg0: i32, %arg1: i32) -> (i32, i32) {
    %c0_i32 = arith.constant 0 : i32
    %c0_i32_0 = arith.constant 0 : i32
    %c0_i32_1 = arith.constant 0 : i32
    return %c0_i32, %c0_i32_0 : i32, i32
  }
  func.func @transform_5(%arg0: i32, %arg1: i32) -> (i32, i32) {
    %c0_i32 = arith.constant 0 : i32
    %c0_i32_0 = arith.constant 0 : i32
    %c0_i32_1 = arith.constant 0 : i32
    return %c0_i32, %c0_i32_0 : i32, i32
  }
  func.func @transform_6(%arg0: i32, %arg1: i32) -> (i32, i32) {
    %c0_i32 = arith.constant 0 : i32
    %c0_i32_0 = arith.constant 0 : i32
    %c0_i32_1 = arith.constant 0 : i32
    return %c0_i32, %c0_i32_0 : i32, i32
  }
  func.func @transform_7(%arg0: i32, %arg1: i32) -> (i32, i32) {
    %c0_i32 = arith.constant 0 : i32
    %c0_i32_0 = arith.constant 0 : i32
    %c0_i32_1 = arith.constant 0 : i32
    return %c0_i32, %c0_i32_0 : i32, i32
  }
  func.func @transform_8(%arg0: i32, %arg1: i32) -> (i32, i32) {
    %c0_i32 = arith.constant 0 : i32
    %c0_i32_0 = arith.constant 0 : i32
    %c0_i32_1 = arith.constant 0 : i32
    return %c0_i32, %c0_i32_0 : i32, i32
  }
  func.func @transform_9(%arg0: i32, %arg1: i32) -> (i32, i32) {
    %c0_i32 = arith.constant 0 : i32
    %c0_i32_0 = arith.constant 0 : i32
    %c0_i32_1 = arith.constant 0 : i32
    return %c0_i32, %c0_i32_0 : i32, i32
  }
  func.func @transform_10(%arg0: i32, %arg1: i32) -> (i32, i32) {
    %c0_i32 = arith.constant 0 : i32
    %c0_i32_0 = arith.constant 0 : i32
    %c0_i32_1 = arith.constant 0 : i32
    return %c0_i32, %c0_i32_0 : i32, i32
  }
  func.func @transform_11(%arg0: i32, %arg1: i32) -> (i32, i32) {
    %c0_i32 = arith.constant 0 : i32
    %c0_i32_0 = arith.constant 0 : i32
    %c0_i32_1 = arith.constant 0 : i32
    return %c0_i32, %c0_i32_0 : i32, i32
  }
  func.func @transform_12(%arg0: i32, %arg1: i32) -> (i32, i32) {
    %c0_i32 = arith.constant 0 : i32
    %c0_i32_0 = arith.constant 0 : i32
    %c0_i32_1 = arith.constant 0 : i32
    return %c0_i32, %c0_i32_0 : i32, i32
  }
  func.func @transform_13(%arg0: i32, %arg1: i32) -> (i32, i32) {
    %c0_i32 = arith.constant 0 : i32
    %c0_i32_0 = arith.constant 0 : i32
    %c0_i32_1 = arith.constant 0 : i32
    return %c0_i32, %c0_i32_0 : i32, i32
  }
  func.func @transform_14(%arg0: i32, %arg1: i32) -> (i32, i32) {
    %c0_i32 = arith.constant 0 : i32
    %c0_i32_0 = arith.constant 0 : i32
    %c0_i32_1 = arith.constant 0 : i32
    return %c0_i32, %c0_i32_0 : i32, i32
  }
  func.func @transform_15(%arg0: i32, %arg1: i32) -> (i32, i32, i32) {
    %c0_i32 = arith.constant 0 : i32
    %c0_i32_0 = arith.constant 0 : i32
    return %arg0, %arg1, %c0_i32 : i32, i32, i32
  }
}

</mosaic_0001>

<llo_original>
// kernel: tpu_custom_call.1
$region0: #{tpu_custom_call.1}
  #allocation0 [shape = 'u32[]', space=smem, size = 0x4, offset = 0x4, fixed_abs, tag = 'smem constant byte address 0x4 - core index']
  #allocation1 [shape = 'u32[144,128]{1,0:T(1,128)}', space=vmem, size = 0x12000, scoped, tag = 'internal scratch']
  #allocation2 [shape = 'bf16[16,4,8]{2,1,0:T(4,128)(2,1)}', space=vmem, size = 0x4000, scoped, tag = 'scratch operand']
  #allocation3 [shape = 'bf16[16,4,8]{2,1,0:T(4,128)(2,1)}', space=vmem, size = 0x4000, scoped, tag = 'scratch operand']
  #allocation4 [shape = 'bf16[16,4,8]{2,1,0:T(4,128)(2,1)}', space=vmem, size = 0x4000, scoped, tag = 'scratch operand']
  %s0 = inlined_call_operand.vmem [shape: f32[2,16,32], index: 0, kind: input, shape index: {}]
  %s1 = inlined_call_operand.vmem [shape: f32[16,8], index: 1, kind: input, shape index: {}]
  %s2 = inlined_call_operand.vmem [shape: f32[16,8], index: 2, kind: input, shape index: {}]
  %s3 = inlined_call_operand.vmem [shape: f32[1,32], index: 3, kind: input, shape index: {}]
  %s4 = inlined_call_operand.vmem [shape: f32[1,32], index: 4, kind: input, shape index: {}]
  %s5 = inlined_call_operand.vmem [shape: bf16[32,96], index: 5, kind: input, shape index: {}]
  %s6 = inlined_call_operand.vmem [shape: f32[1,96], index: 6, kind: input, shape index: {}]
  %s7 = inlined_call_operand.vmem [shape: bf16[32,32], index: 7, kind: input, shape index: {}]
  %s8 = inlined_call_operand.vmem [shape: f32[1,32], index: 8, kind: input, shape index: {}]
  %s9 = inlined_call_operand.vmem [shape: f32[1,32], index: 9, kind: input, shape index: {}]
  %s10 = inlined_call_operand.vmem [shape: f32[1,32], index: 10, kind: input, shape index: {}]
  %s11 = inlined_call_operand.vmem [shape: bf16[32,128], index: 11, kind: input, shape index: {}]
  %s12 = inlined_call_operand.vmem [shape: f32[1,128], index: 12, kind: input, shape index: {}]
  %s13 = inlined_call_operand.vmem [shape: bf16[128,32], index: 13, kind: input, shape index: {}]
  %s14 = inlined_call_operand.vmem [shape: f32[1,32], index: 14, kind: input, shape index: {}]
  %s15 = inlined_call_operand.hbm [shape: f32[2,16,32], index: 15, kind: output, shape index: {}]
  %s16 = sld [smem:[#allocation0]]
  $region97: #{tpu_custom_call.1} parent=0
    _
  %s18 = ssub.s32 1, %s16
  %s19 = scalar_select 0, %s18, %s16
  $region1: #{tpu_custom_call.1} parent=0
    #allocation5 [shape = 'u8[8192]{0}', space=vmem, size = 0x2000, scoped, tag = 'output window, operand 0']
    #allocation6 [shape = 's32[2]{0}', space=sflag, size = 0x8, scoped, tag = 'scoped memory for tpu_custom_call.1']
    %20 = vsyncpa [#allocation6], 0
    %s21 = scalar_lea.sflag [#allocation6], 1
    %22 = vsyncpa %s21, 0
    loop: start=0, step=1, limit=6
    $region2: #{tpu_custom_call.1} parent=1 // loop_pre_header
      _
    $region3: #{tpu_custom_call.1} parent=1 // loop_header
      %s24 = sphi 0, %s28
      %p25 = scmp.ge.s32.totalorder %s24, 6
      %s31 = sphi 0, %s43
      %s32 = sphi 0, %s39
      %s33 = sphi 0, %s31
      %s34 = sphi 0, %s32
      %s35 = sphi 0, %s33
      %s36 = sphi 0, %s34
      %s46 = sphi 0, %s48
      %s49 = sphi 0, %s46
      %s50 = sphi 0, %s49
      %s66 = sphi 0, %s50
      %s70 = sphi 0, %s70
      %s72 = sphi 0, %s70
      %s73 = sphi 0, %s72
      %s87 = sphi 0, %s73
      %s91 = sphi 0, %s91
      %s93 = sphi 0, %s91
      %s94 = sphi 0, %s93
      %s108 = sphi 0, %s94
      %s112 = sphi 0, %s112
      %s114 = sphi 0, %s112
      %s115 = sphi 0, %s114
      %s129 = sphi 0, %s115
      %s133 = sphi 0, %s133
      %s135 = sphi 0, %s133
      %s136 = sphi 0, %s135
      %s150 = sphi 0, %s136
      %s154 = sphi 0, %s154
      %s156 = sphi 0, %s154
      %s157 = sphi 0, %s156
      %s171 = sphi 0, %s157
      %s175 = sphi 0, %s175
      %s177 = sphi 0, %s175
      %s178 = sphi 0, %s177
      %s192 = sphi 0, %s178
      %s196 = sphi 0, %s196
      %s198 = sphi 0, %s196
      %s199 = sphi 0, %s198
      %s213 = sphi 0, %s199
      %s217 = sphi 0, %s217
      %s219 = sphi 0, %s217
      %s220 = sphi 0, %s219
      %s234 = sphi 0, %s220
      %s238 = sphi 0, %s238
      %s240 = sphi 0, %s238
      %s241 = sphi 0, %s240
      %s255 = sphi 0, %s241
      %s259 = sphi 0, %s259
      %s261 = sphi 0, %s259
      %s262 = sphi 0, %s261
      %s276 = sphi 0, %s262
      %s280 = sphi 0, %s280
      %s282 = sphi 0, %s280
      %s283 = sphi 0, %s282
      %s297 = sphi 0, %s283
      %s301 = sphi 0, %s301
      %s303 = sphi 0, %s301
      %s304 = sphi 0, %s303
      %s318 = sphi 0, %s304
      %s322 = sphi 0, %s322
      %s324 = sphi 0, %s322
      %s325 = sphi 0, %s324
      %s339 = sphi 0, %s325
      %s343 = sphi 0, %s343
      %s345 = sphi 0, %s343
      %s346 = sphi 0, %s345
      %s360 = sphi 0, %s346
      %s368 = sphi 0, %s370
      %s371 = sphi 0, %s368
      %s372 = sphi 0, %s371
      %s388 = sphi 0, %s372
    $region4: #{tpu_custom_call.1} parent=1 // loop_header_branch
      %27 = sbr.rel (%p25) target = $region8
    $region5: #{tpu_custom_call.1} parent=1 // loop_body
      %s29 = ssub.s32 %s24, 1
      %s30 = ssub.s32 %s24, 2
      %s37 = sadd.s32 1, %s32
      %p38 = scmp.ge.s32.totalorder %s37, 2
      %s39 = scalar_select %p38, 0, %s37
      %s40 = sadd.s32 1, %s31
      %s41 = scalar_select %p38, %s40, %s31
      %p42 = scmp.ge.s32.totalorder %s41, 2
      %s43 = scalar_select %p42, 0, %s41
      %s44 = ssub.s32 %s31, %s43
      %p45 = scmp.eq.s32.totalorder %s44, 0
      %s47 = sadd.s32 %s46, 1
      %s48 = scalar_select %p45, %s46, %s47
      %p51 = pneg %p45
      %p52 = scmp.eq.s32.totalorder %s24, 3
      %p53 = por %p51, %p52
      %p54 = scmp.ne.s32.totalorder %s46, %s49
      %p55 = scmp.eq.s32.totalorder %s24, 0
      %p56 = por %p54, %p55
      %p57 = scmp.ne.s32.totalorder %s46, %s49
      %p58 = scmp.eq.s32.totalorder %s29, 3
      %p59 = por %p57, %p58
      %p60 = scmp.ne.s32.totalorder %s49, %s50
      %p61 = scmp.eq.s32.totalorder %s29, 0
      %p62 = por %p60, %p61
      %p63 = scmp.ne.s32.totalorder %s49, %s50
      %p64 = scmp.eq.s32.totalorder %s30, 3
      %p65 = por %p63, %p64
      %p67 = scmp.ne.s32.totalorder %s50, %s66
      %p68 = scmp.eq.s32.totalorder %s30, 0
      %p69 = por %p67, %p68
      %s71 = sadd.s32 %s70, 1
      %p74 = scmp.eq.s32.totalorder %s24, 3
      %p75 = scmp.ne.s32.totalorder %s70, %s72
      %p76 = scmp.eq.s32.totalorder %s24, 0
      %p77 = por %p75, %p76
      %p78 = scmp.ne.s32.totalorder %s70, %s72
      %p79 = scmp.eq.s32.totalorder %s29, 3
      %p80 = por %p78, %p79
      %p81 = scmp.ne.s32.totalorder %s72, %s73
      %p82 = scmp.eq.s32.totalorder %s29, 0
      %p83 = por %p81, %p82
      %p84 = scmp.ne.s32.totalorder %s72, %s73
      %p85 = scmp.eq.s32.totalorder %s30, 3
      %p86 = por %p84, %p85
      %p88 = scmp.ne.s32.totalorder %s73, %s87
      %p89 = scmp.eq.s32.totalorder %s30, 0
      %p90 = por %p88, %p89
      %s92 = sadd.s32 %s91, 1
      %p95 = scmp.eq.s32.totalorder %s24, 3
      %p96 = scmp.ne.s32.totalorder %s91, %s93
      %p97 = scmp.eq.s32.totalorder %s24, 0
      %p98 = por %p96, %p97
      %p99 = scmp.ne.s32.totalorder %s91, %s93
      %p100 = scmp.eq.s32.totalorder %s29, 3
      %p101 = por %p99, %p100
      %p102 = scmp.ne.s32.totalorder %s93, %s94
      %p103 = scmp.eq.s32.totalorder %s29, 0
      %p104 = por %p102, %p103
      %p105 = scmp.ne.s32.totalorder %s93, %s94
      %p106 = scmp.eq.s32.totalorder %s30, 3
      %p107 = por %p105, %p106
      %p109 = scmp.ne.s32.totalorder %s94, %s108
      %p110 = scmp.eq.s32.totalorder %s30, 0
      %p111 = por %p109, %p110
      %s113 = sadd.s32 %s112, 1
      %p116 = scmp.eq.s32.totalorder %s24, 3
      %p117 = scmp.ne.s32.totalorder %s112, %s114
      %p118 = scmp.eq.s32.totalorder %s24, 0
      %p119 = por %p117, %p118
      %p120 = scmp.ne.s32.totalorder %s112, %s114
      %p121 = scmp.eq.s32.totalorder %s29, 3
      %p122 = por %p120, %p121
      %p123 = scmp.ne.s32.totalorder %s114, %s115
      %p124 = scmp.eq.s32.totalorder %s29, 0
      %p125 = por %p123, %p124
      %p126 = scmp.ne.s32.totalorder %s114, %s115
      %p127 = scmp.eq.s32.totalorder %s30, 3
      %p128 = por %p126, %p127
      %p130 = scmp.ne.s32.totalorder %s115, %s129
      %p131 = scmp.eq.s32.totalorder %s30, 0
      %p132 = por %p130, %p131
      %s134 = sadd.s32 %s133, 1
      %p137 = scmp.eq.s32.totalorder %s24, 3
      %p138 = scmp.ne.s32.totalorder %s133, %s135
      %p139 = scmp.eq.s32.totalorder %s24, 0
      %p140 = por %p138, %p139
      %p141 = scmp.ne.s32.totalorder %s133, %s135
      %p142 = scmp.eq.s32.totalorder %s29, 3
      %p143 = por %p141, %p142
      %p144 = scmp.ne.s32.totalorder %s135, %s136
      %p145 = scmp.eq.s32.totalorder %s29, 0
      %p146 = por %p144, %p145
      %p147 = scmp.ne.s32.totalorder %s135, %s136
      %p148 = scmp.eq.s32.totalorder %s30, 3
      %p149 = por %p147, %p148
      %p151 = scmp.ne.s32.totalorder %s136, %s150
      %p152 = scmp.eq.s32.totalorder %s30, 0
      %p153 = por %p151, %p152
      %s155 = sadd.s32 %s154, 1
      %p158 = scmp.eq.s32.totalorder %s24, 3
      %p159 = scmp.ne.s32.totalorder %s154, %s156
      %p160 = scmp.eq.s32.totalorder %s24, 0
      %p161 = por %p159, %p160
      %p162 = scmp.ne.s32.totalorder %s154, %s156
      %p163 = scmp.eq.s32.totalorder %s29, 3
      %p164 = por %p162, %p163
      %p165 = scmp.ne.s32.totalorder %s156, %s157
      %p166 = scmp.eq.s32.totalorder %s29, 0
      %p167 = por %p165, %p166
      %p168 = scmp.ne.s32.totalorder %s156, %s157
      %p169 = scmp.eq.s32.totalorder %s30, 3
      %p170 = por %p168, %p169
      %p172 = scmp.ne.s32.totalorder %s157, %s171
      %p173 = scmp.eq.s32.totalorder %s30, 0
      %p174 = por %p172, %p173
      %s176 = sadd.s32 %s175, 1
      %p179 = scmp.eq.s32.totalorder %s24, 3
      %p180 = scmp.ne.s32.totalorder %s175, %s177
      %p181 = scmp.eq.s32.totalorder %s24, 0
      %p182 = por %p180, %p181
      %p183 = scmp.ne.s32.totalorder %s175, %s177
      %p184 = scmp.eq.s32.totalorder %s29, 3
      %p185 = por %p183, %p184
      %p186 = scmp.ne.s32.totalorder %s177, %s178
      %p187 = scmp.eq.s32.totalorder %s29, 0
      %p188 = por %p186, %p187
      %p189 = scmp.ne.s32.totalorder %s177, %s178
      %p190 = scmp.eq.s32.totalorder %s30, 3
      %p191 = por %p189, %p190
      %p193 = scmp.ne.s32.totalorder %s178, %s192
      %p194 = scmp.eq.s32.totalorder %s30, 0
      %p195 = por %p193, %p194
      %s197 = sadd.s32 %s196, 1
      %p200 = scmp.eq.s32.totalorder %s24, 3
      %p201 = scmp.ne.s32.totalorder %s196, %s198
      %p202 = scmp.eq.s32.totalorder %s24, 0
      %p203 = por %p201, %p202
      %p204 = scmp.ne.s32.totalorder %s196, %s198
      %p205 = scmp.eq.s32.totalorder %s29, 3
      %p206 = por %p204, %p205
      %p207 = scmp.ne.s32.totalorder %s198, %s199
      %p208 = scmp.eq.s32.totalorder %s29, 0
      %p209 = por %p207, %p208
      %p210 = scmp.ne.s32.totalorder %s198, %s199
      %p211 = scmp.eq.s32.totalorder %s30, 3
      %p212 = por %p210, %p211
      %p214 = scmp.ne.s32.totalorder %s199, %s213
      %p215 = scmp.eq.s32.totalorder %s30, 0
      %p216 = por %p214, %p215
      %s218 = sadd.s32 %s217, 1
      %p221 = scmp.eq.s32.totalorder %s24, 3
      %p222 = scmp.ne.s32.totalorder %s217, %s219
      %p223 = scmp.eq.s32.totalorder %s24, 0
      %p224 = por %p222, %p223
      %p225 = scmp.ne.s32.totalorder %s217, %s219
      %p226 = scmp.eq.s32.totalorder %s29, 3
      %p227 = por %p225, %p226
      %p228 = scmp.ne.s32.totalorder %s219, %s220
      %p229 = scmp.eq.s32.totalorder %s29, 0
      %p230 = por %p228, %p229
      %p231 = scmp.ne.s32.totalorder %s219, %s220
      %p232 = scmp.eq.s32.totalorder %s30, 3
      %p233 = por %p231, %p232
      %p235 = scmp.ne.s32.totalorder %s220, %s234
      %p236 = scmp.eq.s32.totalorder %s30, 0
      %p237 = por %p235, %p236
      %s239 = sadd.s32 %s238, 1
      %p242 = scmp.eq.s32.totalorder %s24, 3
      %p243 = scmp.ne.s32.totalorder %s238, %s240
      %p244 = scmp.eq.s32.totalorder %s24, 0
      %p245 = por %p243, %p244
      %p246 = scmp.ne.s32.totalorder %s238, %s240
      %p247 = scmp.eq.s32.totalorder %s29, 3
      %p248 = por %p246, %p247
      %p249 = scmp.ne.s32.totalorder %s240, %s241
      %p250 = scmp.eq.s32.totalorder %s29, 0
      %p251 = por %p249, %p250
      %p252 = scmp.ne.s32.totalorder %s240, %s241
      %p253 = scmp.eq.s32.totalorder %s30, 3
      %p254 = por %p252, %p253
      %p256 = scmp.ne.s32.totalorder %s241, %s255
      %p257 = scmp.eq.s32.totalorder %s30, 0
      %p258 = por %p256, %p257
      %s260 = sadd.s32 %s259, 1
      %p263 = scmp.eq.s32.totalorder %s24, 3
      %p264 = scmp.ne.s32.totalorder %s259, %s261
      %p265 = scmp.eq.s32.totalorder %s24, 0
      %p266 = por %p264, %p265
      %p267 = scmp.ne.s32.totalorder %s259, %s261
      %p268 = scmp.eq.s32.totalorder %s29, 3
      %p269 = por %p267, %p268
      %p270 = scmp.ne.s32.totalorder %s261, %s262
      %p271 = scmp.eq.s32.totalorder %s29, 0
      %p272 = por %p270, %p271
      %p273 = scmp.ne.s32.totalorder %s261, %s262
      %p274 = scmp.eq.s32.totalorder %s30, 3
      %p275 = por %p273, %p274
      %p277 = scmp.ne.s32.totalorder %s262, %s276
      %p278 = scmp.eq.s32.totalorder %s30, 0
      %p279 = por %p277, %p278
      %s281 = sadd.s32 %s280, 1
      %p284 = scmp.eq.s32.totalorder %s24, 3
      %p285 = scmp.ne.s32.totalorder %s280, %s282
      %p286 = scmp.eq.s32.totalorder %s24, 0
      %p287 = por %p285, %p286
      %p288 = scmp.ne.s32.totalorder %s280, %s282
      %p289 = scmp.eq.s32.totalorder %s29, 3
      %p290 = por %p288, %p289
      %p291 = scmp.ne.s32.totalorder %s282, %s283
      %p292 = scmp.eq.s32.totalorder %s29, 0
      %p293 = por %p291, %p292
      %p294 = scmp.ne.s32.totalorder %s282, %s283
      %p295 = scmp.eq.s32.totalorder %s30, 3
      %p296 = por %p294, %p295
      %p298 = scmp.ne.s32.totalorder %s283, %s297
      %p299 = scmp.eq.s32.totalorder %s30, 0
      %p300 = por %p298, %p299
      %s302 = sadd.s32 %s301, 1
      %p305 = scmp.eq.s32.totalorder %s24, 3
      %p306 = scmp.ne.s32.totalorder %s301, %s303
      %p307 = scmp.eq.s32.totalorder %s24, 0
      %p308 = por %p306, %p307
      %p309 = scmp.ne.s32.totalorder %s301, %s303
      %p310 = scmp.eq.s32.totalorder %s29, 3
      %p311 = por %p309, %p310
      %p312 = scmp.ne.s32.totalorder %s303, %s304
      %p313 = scmp.eq.s32.totalorder %s29, 0
      %p314 = por %p312, %p313
      %p315 = scmp.ne.s32.totalorder %s303, %s304
      %p316 = scmp.eq.s32.totalorder %s30, 3
      %p317 = por %p315, %p316
      %p319 = scmp.ne.s32.totalorder %s304, %s318
      %p320 = scmp.eq.s32.totalorder %s30, 0
      %p321 = por %p319, %p320
      %s323 = sadd.s32 %s322, 1
      %p326 = scmp.eq.s32.totalorder %s24, 3
      %p327 = scmp.ne.s32.totalorder %s322, %s324
      %p328 = scmp.eq.s32.totalorder %s24, 0
      %p329 = por %p327, %p328
      %p330 = scmp.ne.s32.totalorder %s322, %s324
      %p331 = scmp.eq.s32.totalorder %s29, 3
      %p332 = por %p330, %p331
      %p333 = scmp.ne.s32.totalorder %s324, %s325
      %p334 = scmp.eq.s32.totalorder %s29, 0
      %p335 = por %p333, %p334
      %p336 = scmp.ne.s32.totalorder %s324, %s325
      %p337 = scmp.eq.s32.totalorder %s30, 3
      %p338 = por %p336, %p337
      %p340 = scmp.ne.s32.totalorder %s325, %s339
      %p341 = scmp.eq.s32.totalorder %s30, 0
      %p342 = por %p340, %p341
      %s344 = sadd.s32 %s343, 1
      %p347 = scmp.eq.s32.totalorder %s24, 3
      %p348 = scmp.ne.s32.totalorder %s343, %s345
      %p349 = scmp.eq.s32.totalorder %s24, 0
      %p350 = por %p348, %p349
      %p351 = scmp.ne.s32.totalorder %s343, %s345
      %p352 = scmp.eq.s32.totalorder %s29, 3
      %p353 = por %p351, %p352
      %p354 = scmp.ne.s32.totalorder %s345, %s346
      %p355 = scmp.eq.s32.totalorder %s29, 0
      %p356 = por %p354, %p355
      %p357 = scmp.ne.s32.totalorder %s345, %s346
      %p358 = scmp.eq.s32.totalorder %s30, 3
      %p359 = por %p357, %p358
      %p361 = scmp.ne.s32.totalorder %s346, %s360
      %p362 = scmp.eq.s32.totalorder %s30, 0
      %p363 = por %p361, %p362
      %s364 = ssub.s32 %s31, %s43
      %s365 = ssub.s32 %s32, %s39
      %s366 = sor.u32 %s364, %s365
      %p367 = scmp.eq.s32.totalorder %s366, 0
      %s369 = sadd.s32 %s368, 1
      %s370 = scalar_select %p367, %s368, %s369
      %p373 = pneg %p367
      %p374 = scmp.eq.s32.totalorder %s24, 3
      %p375 = por %p373, %p374
      %p376 = scmp.ne.s32.totalorder %s368, %s371
      %p377 = scmp.eq.s32.totalorder %s24, 0
      %p378 = por %p376, %p377
      %p379 = scmp.ne.s32.totalorder %s368, %s371
      %p380 = scmp.eq.s32.totalorder %s29, 3
      %p381 = por %p379, %p380
      %p382 = scmp.ne.s32.totalorder %s371, %s372
      %p383 = scmp.eq.s32.totalorder %s29, 0
      %p384 = por %p382, %p383
      %p385 = scmp.ne.s32.totalorder %s371, %s372
      %p386 = scmp.eq.s32.totalorder %s30, 3
      %p387 = por %p385, %p386
      %p389 = scmp.ne.s32.totalorder %s372, %s388
      %p390 = scmp.eq.s32.totalorder %s30, 0
      %p391 = por %p389, %p390
      %p392 = scmp.le.s32.totalorder 1, %s24
      %p393 = scmp.lt.s32.totalorder %s24, 5
      %p394 = pnand %p392, %p393
      %p395 = pneg %p394
      // Predicated region
      $region9: #{tpu_custom_call.1} parent=5 // pred_check
        _
      $region10: #{tpu_custom_call.1} parent=5 // pred_check_branch
        %397 = sbr.rel (%p394) target = $region12
      $region11: #{tpu_custom_call.1} parent=5 // pred_region
        %s398 = ssub.s32 %s24, 1
        // Predicated region
        $region13: #{tpu_custom_call.1} parent=11 // pred_check
          %p399 = pneg %p83
        $region14: #{tpu_custom_call.1} parent=11 // pred_check_branch
          %401 = sbr.rel (%p399) target = $region16
        $region15: #{tpu_custom_call.1} parent=11 // pred_region
          _
        $region16: #{tpu_custom_call.1} parent=11 // pred_fallthru
          _
        // Predicated region
        $region17: #{tpu_custom_call.1} parent=11 // pred_check
          %p402 = pneg %p104
        $region18: #{tpu_custom_call.1} parent=11 // pred_check_branch
          %404 = sbr.rel (%p402) target = $region20
        $region19: #{tpu_custom_call.1} parent=11 // pred_region
          _
        $region20: #{tpu_custom_call.1} parent=11 // pred_fallthru
          _
        // Predicated region
        $region21: #{tpu_custom_call.1} parent=11 // pred_check
          %p405 = pneg %p125
        $region22: #{tpu_custom_call.1} parent=11 // pred_check_branch
          %407 = sbr.rel (%p405) target = $region24
        $region23: #{tpu_custom_call.1} parent=11 // pred_region
          _
        $region24: #{tpu_custom_call.1} parent=11 // pred_fallthru
          _
        // Predicated region
        $region25: #{tpu_custom_call.1} parent=11 // pred_check
          %p408 = pneg %p146
        $region26: #{tpu_custom_call.1} parent=11 // pred_check_branch
          %410 = sbr.rel (%p408) target = $region28
        $region27: #{tpu_custom_call.1} parent=11 // pred_region
          _
        $region28: #{tpu_custom_call.1} parent=11 // pred_fallthru
          _
        // Predicated region
        $region29: #{tpu_custom_call.1} parent=11 // pred_check
          %p411 = pneg %p167
        $region30: #{tpu_custom_call.1} parent=11 // pred_check_branch
          %413 = sbr.rel (%p411) target = $region32
        $region31: #{tpu_custom_call.1} parent=11 // pred_region
          _
        $region32: #{tpu_custom_call.1} parent=11 // pred_fallthru
          _
        // Predicated region
        $region33: #{tpu_custom_call.1} parent=11 // pred_check
          %p414 = pneg %p188
        $region34: #{tpu_custom_call.1} parent=11 // pred_check_branch
          %416 = sbr.rel (%p414) target = $region36
        $region35: #{tpu_custom_call.1} parent=11 // pred_region
          _
        $region36: #{tpu_custom_call.1} parent=11 // pred_fallthru
          _
        // Predicated region
        $region37: #{tpu_custom_call.1} parent=11 // pred_check
          %p417 = pneg %p209
        $region38: #{tpu_custom_call.1} parent=11 // pred_check_branch
          %419 = sbr.rel (%p417) target = $region40
        $region39: #{tpu_custom_call.1} parent=11 // pred_region
          _
        $region40: #{tpu_custom_call.1} parent=11 // pred_fallthru
          _
        // Predicated region
        $region41: #{tpu_custom_call.1} parent=11 // pred_check
          %p420 = pneg %p230
        $region42: #{tpu_custom_call.1} parent=11 // pred_check_branch
          %422 = sbr.rel (%p420) target = $region44
        $region43: #{tpu_custom_call.1} parent=11 // pred_region
          _
        $region44: #{tpu_custom_call.1} parent=11 // pred_fallthru
          _
        // Predicated region
        $region45: #{tpu_custom_call.1} parent=11 // pred_check
          %p423 = pneg %p251
        $region46: #{tpu_custom_call.1} parent=11 // pred_check_branch
          %425 = sbr.rel (%p423) target = $region48
        $region47: #{tpu_custom_call.1} parent=11 // pred_region
          _
        $region48: #{tpu_custom_call.1} parent=11 // pred_fallthru
          _
        // Predicated region
        $region49: #{tpu_custom_call.1} parent=11 // pred_check
          %p426 = pneg %p272
        $region50: #{tpu_custom_call.1} parent=11 // pred_check_branch
          %428 = sbr.rel (%p426) target = $region52
        $region51: #{tpu_custom_call.1} parent=11 // pred_region
          _
        $region52: #{tpu_custom_call.1} parent=11 // pred_fallthru
          _
        // Predicated region
        $region53: #{tpu_custom_call.1} parent=11 // pred_check
          %p429 = pneg %p293
        $region54: #{tpu_custom_call.1} parent=11 // pred_check_branch
          %431 = sbr.rel (%p429) target = $region56
        $region55: #{tpu_custom_call.1} parent=11 // pred_region
          _
        $region56: #{tpu_custom_call.1} parent=11 // pred_fallthru
          _
        // Predicated region
        $region57: #{tpu_custom_call.1} parent=11 // pred_check
          %p432 = pneg %p314
        $region58: #{tpu_custom_call.1} parent=11 // pred_check_branch
          %434 = sbr.rel (%p432) target = $region60
        $region59: #{tpu_custom_call.1} parent=11 // pred_region
          _
        $region60: #{tpu_custom_call.1} parent=11 // pred_fallthru
          _
        // Predicated region
        $region61: #{tpu_custom_call.1} parent=11 // pred_check
          %p435 = pneg %p335
        $region62: #{tpu_custom_call.1} parent=11 // pred_check_branch
          %437 = sbr.rel (%p435) target = $region64
        $region63: #{tpu_custom_call.1} parent=11 // pred_region
          _
        $region64: #{tpu_custom_call.1} parent=11 // pred_fallthru
          _
        // Predicated region
        $region65: #{tpu_custom_call.1} parent=11 // pred_check
          %p438 = pneg %p356
        $region66: #{tpu_custom_call.1} parent=11 // pred_check_branch
          %440 = sbr.rel (%p438) target = $region68
        $region67: #{tpu_custom_call.1} parent=11 // pred_region
          _
        $region68: #{tpu_custom_call.1} parent=11 // pred_fallthru
          _
      $region12: #{tpu_custom_call.1} parent=5 // pred_fallthru
        _
      %p441 = scmp.lt.s32.totalorder %s24, 4
      // Predicated region
      $region69: #{tpu_custom_call.1} parent=5 // pred_check
        %p442 = pneg %p441
      $region70: #{tpu_custom_call.1} parent=5 // pred_check_branch
        %444 = sbr.rel (%p442) target = $region72
      $region71: #{tpu_custom_call.1} parent=5 // pred_region
        // Predicated region
        $region73: #{tpu_custom_call.1} parent=71 // pred_check
          %p445 = pneg %p56
        $region74: #{tpu_custom_call.1} parent=71 // pred_check_branch
          %447 = sbr.rel (%p445) target = $region76
        $region75: #{tpu_custom_call.1} parent=71 // pred_region
          %p448 = scmp.lt.s32.totalorder %s31, 1
          %s449 = scalar_select %p448, %s31, 1
          %s450 = smul.addr %s449, 2
          %s451 = smul.addr %s450, 8
          %s452 = scalar_lea.vmem %s0, %s451
        $region76: #{tpu_custom_call.1} parent=71 // pred_fallthru
          _
      $region72: #{tpu_custom_call.1} parent=5 // pred_fallthru
        _
      %p453 = scmp.le.s32.totalorder 1, %s24
      %p454 = scmp.lt.s32.totalorder %s24, 5
      %p455 = pnand %p453, %p454
      %p456 = pneg %p455
      // Predicated region
      $region77: #{tpu_custom_call.1} parent=5 // pred_check
        _
      $region78: #{tpu_custom_call.1} parent=5 // pred_check_branch
        %458 = sbr.rel (%p455) target = $region80
      $region79: #{tpu_custom_call.1} parent=5 // pred_region
        %s459 = ssub.s32 %s24, 1
        %p460 = scmp.lt.s32.totalorder %s33, 1
        %s461 = scalar_select %p460, %s33, 1
        %s462 = smul.addr %s461, 2
        %s463 = smul.addr %s462, 8
        %s464 = scalar_lea.vmem %s0, %s463
        %p465 = pneg %p62
        %p466 = pneg %p59
        %p467 = pneg %p83
        %p468 = pneg %p80
        %p469 = pneg %p104
        %p470 = pneg %p101
        %p471 = pneg %p125
        %p472 = pneg %p122
        %p473 = pneg %p146
        %p474 = pneg %p143
        %p475 = pneg %p167
        %p476 = pneg %p164
        %p477 = pneg %p188
        %p478 = pneg %p185
        %p479 = pneg %p209
        %p480 = pneg %p206
        %p481 = pneg %p230
        %p482 = pneg %p227
        %p483 = pneg %p251
        %p484 = pneg %p248
        %p485 = pneg %p272
        %p486 = pneg %p269
        %p487 = pneg %p293
        %p488 = pneg %p290
        %p489 = pneg %p314
        %p490 = pneg %p311
        %p491 = pneg %p335
        %p492 = pneg %p332
        %p493 = pneg %p356
        %p494 = pneg %p353
        %p495 = pneg %p384
        %p496 = pneg %p381
        %s497 = sand.u32 %s371, 1
        %s498 = scalar_lea.sflag [#allocation6], %s497
        %s499 = sand.u32 %s371, 1
        %s500 = smul.addr %s499, 8
        %s501 = scalar_lea.vmem [#allocation5], %s500
        %p502 = scmp.lt.s32.totalorder %s33, 1
        %s503 = scalar_select %p502, %s33, 1
        %s504 = smul.addr %s503, 2
        %s505 = smul.addr %s504, 8
        %s506 = scalar_lea.vmem %s0, %s505
        %p508 = scmp.eq.s32.totalorder %s34, 0
        // Predicated region
        $region81: #{tpu_custom_call.1} parent=79 // pred_check
          %p509 = pneg %p508
        $region82: #{tpu_custom_call.1} parent=79 // pred_check_branch
          %511 = sbr.rel (%p509) target = $region84
        $region83: #{tpu_custom_call.1} parent=79 // pred_region
          %v512 = vld [vmem:[%s506] sm:$0xff]
          %v513 = vld [vmem:[%s506 + $0x8] sm:$0xff]
          %v514 = vld [vmem:[%s3] sm:$0x1]
          %v515 = vld [vmem:[%s4] sm:$0x1]
          %vm516 = vcmask 261120
          %v517 = vsel %vm516, %v512, 0.0
          %518 = vadd.xlane.f32.xlu0 %v517
          %v519 = vpop.xlane.xlu0 %518
          %v520 = vsel %vm516, %v513, 0.0
          %521 = vadd.xlane.f32.xlu0 %v520
          %v522 = vpop.xlane.xlu0 %521
          %v523 = vrcp.pop 32.0
          %v524 = vmul.f32 %v519, %v523
          %v525 = vmul.f32 %v522, %v523
          %v526 = vsub.f32 %v512, %v524
          %v527 = vsub.f32 %v513, %v525
          %v528 = vmul.f32 %v526, %v526
          %v529 = vmul.f32 %v527, %v527
          %v530 = vsel %vm516, %v528, 0.0
          %531 = vadd.xlane.f32.xlu0 %v530
          %v532 = vpop.xlane.xlu0 %531
          %v533 = vsel %vm516, %v529, 0.0
          %534 = vadd.xlane.f32.xlu0 %v533
          %v535 = vpop.xlane.xlu0 %534
          %v536 = vmul.f32 %v532, %v523
          %v537 = vmul.f32 %v535, %v523
          %v538 = vadd.f32 %v536, 1e-05
          %v539 = vadd.f32 %v537, 1e-05
          %v540 = vrsqrt.pop %v538
          %v541 = vrsqrt.pop %v539
          %v542 = vmul.f32 %v526, %v540
          %v543 = vmul.f32 %v527, %v541
          %v545 = vlaneseq
          %v546 = vshrl.u32 %v545, 7
          %v547 = vsub.s32 0, %v546
          %v548 = vrot.slane %v514, %v547
          %v550 = vmul.f32 %v542, %v548
          %v551 = vmul.f32 %v543, %v548
          %v553 = vlaneseq
          %v554 = vshrl.u32 %v553, 7
          %v555 = vsub.s32 0, %v554
          %v556 = vrot.slane %v515, %v555
          %v558 = vadd.f32 %v550, %v556
          %v559 = vadd.f32 %v551, %v556
          %v560 = vpack.c.bf16 %v559, %v558
          %v561 = vld [vmem:[%s5] sm:$0xf]
          %v562 = vld [vmem:[%s5 + $0x4] sm:$0xf]
          %v563 = vld [vmem:[%s5 + $0x8] sm:$0xf]
          %v564 = vld [vmem:[%s5 + $0xc] sm:$0xf]
          %v565 = vld [vmem:[%s6] sm:$0x1]
          %v567 = vlaneseq
          %v568 = vshrl.u32 %v567, 7
          %v569 = vsub.s32 0, %v568
          %v570 = vrot.slane %v565, %v569
          %v576 = vunpack.c.l.b16 %v561
          %v577 = vunpack.c.l.b16 %v562
          %v578 = vunpack.c.l.b16 %v563
          %v579 = vunpack.c.l.b16 %v564
          %v580 = vpack.c.b16 %v577, %v576
          %v581 = vpack.c.b16 %v579, %v578
          %v585 = vsel %vm516, %v560, 0
          %587 = vmatprep.subr.bf16.mxu0 0
          %588 = vmatpush1.bf16.msra.mxu0 %v580
          %589 = vmatprep.subr.bf16.mxu0 0
          %590 = vmatpush1.bf16.msra.mxu0 %v581
          %591 = vmatprep.subr.bf16.mxu0 0
          %592 = vmatpush1.bf16.msra.mxu0 0
          %593 = vmatprep.subr.bf16.mxu0 0
          %594 = vmatpush1.bf16.msra.mxu0 0
          %595 = vmatprep.subr.bf16.mxu0 0
          %596 = vmatpush1.bf16.msra.mxu0 0
          %597 = vmatprep.subr.bf16.mxu0 0
          %598 = vmatpush1.bf16.msra.mxu0 0
          %599 = vmatprep.subr.bf16.mxu0 0
          %600 = vmatpush1.bf16.msra.mxu0 0
          %601 = vmatprep.subr.bf16.mxu0 0
          %602 = vmatpush1.bf16.msra.mxu0 0
          %603 = vmatprep.subr.bf16.mxu0 0
          %604 = vmatpush1.bf16.msra.mxu0 0
          %605 = vmatprep.subr.bf16.mxu0 0
          %606 = vmatpush1.bf16.msra.mxu0 0
          %607 = vmatprep.subr.bf16.mxu0 0
          %608 = vmatpush1.bf16.msra.mxu0 0
          %609 = vmatprep.subr.bf16.mxu0 0
          %610 = vmatpush1.bf16.msra.mxu0 0
          %611 = vmatprep.subr.bf16.mxu0 0
          %612 = vmatpush1.bf16.msra.mxu0 0
          %613 = vmatprep.subr.bf16.mxu0 0
          %614 = vmatpush1.bf16.msra.mxu0 0
          %615 = vmatprep.subr.bf16.mxu0 0
          %616 = vmatpush1.bf16.msra.mxu0 0
          %617 = vmatprep.subr.bf16.mxu0 0
          %618 = vmatpush1.bf16.msra.mxu0 0
          %619 = vmatprep.mubr.bf16.mxu0 0
          %620 = vmatmul.mubr.bf16.gmra.mrb[0].mxu0 %v585
          %v621 = vpop.f32.mrb[0].mxu0
          %v622 = vadd.f32 %v570, %v621
          %v623 = vpop.f32.mrb[0].mxu0
          %v624 = vpop.f32.mrb[0].mxu0
          %v625 = vadd.f32 %v570, %v624
          %v626 = vpop.f32.mrb[0].mxu0
          %627 = vdwg.mxu0
          %630 = vrot.lane.b32.xlu0 %v622, 120
          %v631 = vpop.permute.xlu0 %630
          %632 = vrot.lane.b32.xlu0 %v625, 120
          %v633 = vpop.permute.xlu0 %632
          %636 = vrot.lane.b32.xlu0 %v622, 112
          %v637 = vpop.permute.xlu0 %636
          %638 = vrot.lane.b32.xlu0 %v625, 112
          %v639 = vpop.permute.xlu0 %638
          %642 = vrot.lane.b32.xlu0 %v622, 104
          %v643 = vpop.permute.xlu0 %642
          %644 = vrot.lane.b32.xlu0 %v625, 104
          %v645 = vpop.permute.xlu0 %644
          %v648 = vcombine.low %v622, %v637
          %v649 = vcombine.high %v622, %v637
          %v651 = vunpack.c.l.s4 1983009808
          %v652 = vunpack.c.0.s8 %v651
          %v653 = vlaneseq
          %v654 = vshrl.u32 %v653, 7
          %v655 = vsub.s32 %v652, %v654
          %v656 = vrot.slane %v648, %v655
          %v658 = vunpack.c.l.s4 1983009808
          %v659 = vunpack.c.0.s8 %v658
          %v660 = vlaneseq
          %v661 = vshrl.u32 %v660, 7
          %v662 = vsub.s32 %v659, %v661
          %v663 = vrot.slane %v649, %v662
          %v664 = vcombine.low %v631, %v643
          %v665 = vcombine.high %v631, %v643
          %v667 = vunpack.c.l.s4 1983009808
          %v668 = vunpack.c.0.s8 %v667
          %v669 = vlaneseq
          %v670 = vshrl.u32 %v669, 7
          %v671 = vsub.s32 %v668, %v670
          %v672 = vrot.slane %v664, %v671
          %v674 = vunpack.c.l.s4 1983009808
          %v675 = vunpack.c.0.s8 %v674
          %v676 = vlaneseq
          %v677 = vshrl.u32 %v676, 7
          %v678 = vsub.s32 %v675, %v677
          %v679 = vrot.slane %v665, %v678
          %v680 = vcombine.low %v656, %v672
          %v681 = vcombine.high %v656, %v672
          %v683 = vunpack.c.l.s4 1934713408
          %v684 = vunpack.c.0.s8 %v683
          %v685 = vlaneseq
          %v686 = vshrl.u32 %v685, 7
          %v687 = vsub.s32 %v684, %v686
          %v688 = vrot.slane %v680, %v687
          %v690 = vunpack.c.l.s4 1934713408
          %v691 = vunpack.c.0.s8 %v690
          %v692 = vlaneseq
          %v693 = vshrl.u32 %v692, 7
          %v694 = vsub.s32 %v691, %v693
          %v695 = vrot.slane %v681, %v694
          %v696 = vcombine.low %v663, %v679
          %v697 = vcombine.high %v663, %v679
          %v699 = vunpack.c.l.s4 1934713408
          %v700 = vunpack.c.0.s8 %v699
          %v701 = vlaneseq
          %v702 = vshrl.u32 %v701, 7
          %v703 = vsub.s32 %v700, %v702
          %v704 = vrot.slane %v696, %v703
          %v706 = vunpack.c.l.s4 1934713408
          %v707 = vunpack.c.0.s8 %v706
          %v708 = vlaneseq
          %v709 = vshrl.u32 %v708, 7
          %v710 = vsub.s32 %v707, %v709
          %v711 = vrot.slane %v697, %v710
          %v712 = vcombine.high %v688, 0.0
          %v713 = vcombine.high %v695, 0.0
          %v714 = vcombine.high %v704, 0.0
          %v715 = vcombine.high %v711, 0.0
          %v716 = vcombine.low %v625, %v639
          %v717 = vcombine.high %v625, %v639
          %v719 = vunpack.c.l.s4 1983009808
          %v720 = vunpack.c.0.s8 %v719
          %v721 = vlaneseq
          %v722 = vshrl.u32 %v721, 7
          %v723 = vsub.s32 %v720, %v722
          %v724 = vrot.slane %v716, %v723
          %v726 = vunpack.c.l.s4 1983009808
          %v727 = vunpack.c.0.s8 %v726
          %v728 = vlaneseq
          %v729 = vshrl.u32 %v728, 7
          %v730 = vsub.s32 %v727, %v729
          %v731 = vrot.slane %v717, %v730
          %v732 = vcombine.low %v633, %v645
          %v733 = vcombine.high %v633, %v645
          %v735 = vunpack.c.l.s4 1983009808
          %v736 = vunpack.c.0.s8 %v735
          %v737 = vlaneseq
          %v738 = vshrl.u32 %v737, 7
          %v739 = vsub.s32 %v736, %v738
          %v740 = vrot.slane %v732, %v739
          %v742 = vunpack.c.l.s4 1983009808
          %v743 = vunpack.c.0.s8 %v742
          %v744 = vlaneseq
          %v745 = vshrl.u32 %v744, 7
          %v746 = vsub.s32 %v743, %v745
          %v747 = vrot.slane %v733, %v746
          %v748 = vcombine.low %v724, %v740
          %v749 = vcombine.high %v724, %v740
          %v751 = vunpack.c.l.s4 1934713408
          %v752 = vunpack.c.0.s8 %v751
          %v753 = vlaneseq
          %v754 = vshrl.u32 %v753, 7
          %v755 = vsub.s32 %v752, %v754
          %v756 = vrot.slane %v748, %v755
          %v758 = vunpack.c.l.s4 1934713408
          %v759 = vunpack.c.0.s8 %v758
          %v760 = vlaneseq
          %v761 = vshrl.u32 %v760, 7
          %v762 = vsub.s32 %v759, %v761
          %v763 = vrot.slane %v749, %v762
          %v764 = vcombine.low %v731, %v747
          %v765 = vcombine.high %v731, %v747
          %v767 = vunpack.c.l.s4 1934713408
          %v768 = vunpack.c.0.s8 %v767
          %v769 = vlaneseq
          %v770 = vshrl.u32 %v769, 7
          %v771 = vsub.s32 %v768, %v770
          %v772 = vrot.slane %v764, %v771
          %v774 = vunpack.c.l.s4 1934713408
          %v775 = vunpack.c.0.s8 %v774
          %v776 = vlaneseq
          %v777 = vshrl.u32 %v776, 7
          %v778 = vsub.s32 %v775, %v777
          %v779 = vrot.slane %v765, %v778
          %v780 = vcombine.high %v756, 0.0
          %v781 = vcombine.high %v763, 0.0
          %v782 = vcombine.high %v772, 0.0
          %v783 = vcombine.high %v779, 0.0
          %784 = vrot.lane.b32.xlu0 %v622, 96
          %v785 = vpop.permute.xlu0 %784
          %786 = vrot.lane.b32.xlu0 %v625, 96
          %v787 = vpop.permute.xlu0 %786
          %788 = vrot.lane.b32.xlu0 %v631, 96
          %v789 = vpop.permute.xlu0 %788
          %790 = vrot.lane.b32.xlu0 %v633, 96
          %v791 = vpop.permute.xlu0 %790
          %792 = vrot.lane.b32.xlu0 %v637, 96
          %v793 = vpop.permute.xlu0 %792
          %794 = vrot.lane.b32.xlu0 %v639, 96
          %v795 = vpop.permute.xlu0 %794
          %796 = vrot.lane.b32.xlu0 %v643, 96
          %v797 = vpop.permute.xlu0 %796
          %798 = vrot.lane.b32.xlu0 %v645, 96
          %v799 = vpop.permute.xlu0 %798
          %v808 = vcombine.low %v785, %v793
          %v809 = vcombine.high %v785, %v793
          %v811 = vunpack.c.l.s4 1983009808
          %v812 = vunpack.c.0.s8 %v811
          %v813 = vlaneseq
          %v814 = vshrl.u32 %v813, 7
          %v815 = vsub.s32 %v812, %v814
          %v816 = vrot.slane %v808, %v815
          %v818 = vunpack.c.l.s4 1983009808
          %v819 = vunpack.c.0.s8 %v818
          %v820 = vlaneseq
          %v821 = vshrl.u32 %v820, 7
          %v822 = vsub.s32 %v819, %v821
          %v823 = vrot.slane %v809, %v822
          %v824 = vcombine.low %v789, %v797
          %v825 = vcombine.high %v789, %v797
          %v827 = vunpack.c.l.s4 1983009808
          %v828 = vunpack.c.0.s8 %v827
          %v829 = vlaneseq
          %v830 = vshrl.u32 %v829, 7
          %v831 = vsub.s32 %v828, %v830
          %v832 = vrot.slane %v824, %v831
          %v834 = vunpack.c.l.s4 1983009808
          %v835 = vunpack.c.0.s8 %v834
          %v836 = vlaneseq
          %v837 = vshrl.u32 %v836, 7
          %v838 = vsub.s32 %v835, %v837
          %v839 = vrot.slane %v825, %v838
          %v840 = vcombine.low %v816, %v832
          %v841 = vcombine.high %v816, %v832
          %v843 = vunpack.c.l.s4 1934713408
          %v844 = vunpack.c.0.s8 %v843
          %v845 = vlaneseq
          %v846 = vshrl.u32 %v845, 7
          %v847 = vsub.s32 %v844, %v846
          %v848 = vrot.slane %v840, %v847
          %v850 = vunpack.c.l.s4 1934713408
          %v851 = vunpack.c.0.s8 %v850
          %v852 = vlaneseq
          %v853 = vshrl.u32 %v852, 7
          %v854 = vsub.s32 %v851, %v853
          %v855 = vrot.slane %v841, %v854
          %v856 = vcombine.low %v823, %v839
          %v857 = vcombine.high %v823, %v839
          %v859 = vunpack.c.l.s4 1934713408
          %v860 = vunpack.c.0.s8 %v859
          %v861 = vlaneseq
          %v862 = vshrl.u32 %v861, 7
          %v863 = vsub.s32 %v860, %v862
          %v864 = vrot.slane %v856, %v863
          %v866 = vunpack.c.l.s4 1934713408
          %v867 = vunpack.c.0.s8 %v866
          %v868 = vlaneseq
          %v869 = vshrl.u32 %v868, 7
          %v870 = vsub.s32 %v867, %v869
          %v871 = vrot.slane %v857, %v870
          %v872 = vcombine.high %v848, 0.0
          %v873 = vcombine.high %v855, 0.0
          %v874 = vcombine.high %v864, 0.0
          %v875 = vcombine.high %v871, 0.0
          %v876 = vcombine.low %v787, %v795
          %v877 = vcombine.high %v787, %v795
          %v879 = vunpack.c.l.s4 1983009808
          %v880 = vunpack.c.0.s8 %v879
          %v881 = vlaneseq
          %v882 = vshrl.u32 %v881, 7
          %v883 = vsub.s32 %v880, %v882
          %v884 = vrot.slane %v876, %v883
          %v886 = vunpack.c.l.s4 1983009808
          %v887 = vunpack.c.0.s8 %v886
          %v888 = vlaneseq
          %v889 = vshrl.u32 %v888, 7
          %v890 = vsub.s32 %v887, %v889
          %v891 = vrot.slane %v877, %v890
          %v892 = vcombine.low %v791, %v799
          %v893 = vcombine.high %v791, %v799
          %v895 = vunpack.c.l.s4 1983009808
          %v896 = vunpack.c.0.s8 %v895
          %v897 = vlaneseq
          %v898 = vshrl.u32 %v897, 7
          %v899 = vsub.s32 %v896, %v898
          %v900 = vrot.slane %v892, %v899
          %v902 = vunpack.c.l.s4 1983009808
          %v903 = vunpack.c.0.s8 %v902
          %v904 = vlaneseq
          %v905 = vshrl.u32 %v904, 7
          %v906 = vsub.s32 %v903, %v905
          %v907 = vrot.slane %v893, %v906
          %v908 = vcombine.low %v884, %v900
          %v909 = vcombine.high %v884, %v900
          %v911 = vunpack.c.l.s4 1934713408
          %v912 = vunpack.c.0.s8 %v911
          %v913 = vlaneseq
          %v914 = vshrl.u32 %v913, 7
          %v915 = vsub.s32 %v912, %v914
          %v916 = vrot.slane %v908, %v915
          %v918 = vunpack.c.l.s4 1934713408
          %v919 = vunpack.c.0.s8 %v918
          %v920 = vlaneseq
          %v921 = vshrl.u32 %v920, 7
          %v922 = vsub.s32 %v919, %v921
          %v923 = vrot.slane %v909, %v922
          %v924 = vcombine.low %v891, %v907
          %v925 = vcombine.high %v891, %v907
          %v927 = vunpack.c.l.s4 1934713408
          %v928 = vunpack.c.0.s8 %v927
          %v929 = vlaneseq
          %v930 = vshrl.u32 %v929, 7
          %v931 = vsub.s32 %v928, %v930
          %v932 = vrot.slane %v924, %v931
          %v934 = vunpack.c.l.s4 1934713408
          %v935 = vunpack.c.0.s8 %v934
          %v936 = vlaneseq
          %v937 = vshrl.u32 %v936, 7
          %v938 = vsub.s32 %v935, %v937
          %v939 = vrot.slane %v925, %v938
          %v940 = vcombine.high %v916, 0.0
          %v941 = vcombine.high %v923, 0.0
          %v942 = vcombine.high %v932, 0.0
          %v943 = vcombine.high %v939, 0.0
          %944 = vrot.lane.b32.xlu0 %v622, 64
          %v945 = vpop.permute.xlu0 %944
          %946 = vrot.lane.b32.xlu0 %v625, 64
          %v947 = vpop.permute.xlu0 %946
          %948 = vrot.lane.b32.xlu0 %v631, 64
          %v949 = vpop.permute.xlu0 %948
          %950 = vrot.lane.b32.xlu0 %v633, 64
          %v951 = vpop.permute.xlu0 %950
          %952 = vrot.lane.b32.xlu0 %v637, 64
          %v953 = vpop.permute.xlu0 %952
          %954 = vrot.lane.b32.xlu0 %v639, 64
          %v955 = vpop.permute.xlu0 %954
          %956 = vrot.lane.b32.xlu0 %v643, 64
          %v957 = vpop.permute.xlu0 %956
          %958 = vrot.lane.b32.xlu0 %v645, 64
          %v959 = vpop.permute.xlu0 %958
          %v968 = vcombine.low %v945, %v953
          %v969 = vcombine.high %v945, %v953
          %v971 = vunpack.c.l.s4 1983009808
          %v972 = vunpack.c.0.s8 %v971
          %v973 = vlaneseq
          %v974 = vshrl.u32 %v973, 7
          %v975 = vsub.s32 %v972, %v974
          %v976 = vrot.slane %v968, %v975
          %v978 = vunpack.c.l.s4 1983009808
          %v979 = vunpack.c.0.s8 %v978
          %v980 = vlaneseq
          %v981 = vshrl.u32 %v980, 7
          %v982 = vsub.s32 %v979, %v981
          %v983 = vrot.slane %v969, %v982
          %v984 = vcombine.low %v949, %v957
          %v985 = vcombine.high %v949, %v957
          %v987 = vunpack.c.l.s4 1983009808
          %v988 = vunpack.c.0.s8 %v987
          %v989 = vlaneseq
          %v990 = vshrl.u32 %v989, 7
          %v991 = vsub.s32 %v988, %v990
          %v992 = vrot.slane %v984, %v991
          %v994 = vunpack.c.l.s4 1983009808
          %v995 = vunpack.c.0.s8 %v994
          %v996 = vlaneseq
          %v997 = vshrl.u32 %v996, 7
          %v998 = vsub.s32 %v995, %v997
          %v999 = vrot.slane %v985, %v998
          %v1000 = vcombine.low %v976, %v992
          %v1001 = vcombine.high %v976, %v992
          %v1003 = vunpack.c.l.s4 1934713408
          %v1004 = vunpack.c.0.s8 %v1003
          %v1005 = vlaneseq
          %v1006 = vshrl.u32 %v1005, 7
          %v1007 = vsub.s32 %v1004, %v1006
          %v1008 = vrot.slane %v1000, %v1007
          %v1010 = vunpack.c.l.s4 1934713408
          %v1011 = vunpack.c.0.s8 %v1010
          %v1012 = vlaneseq
          %v1013 = vshrl.u32 %v1012, 7
          %v1014 = vsub.s32 %v1011, %v1013
          %v1015 = vrot.slane %v1001, %v1014
          %v1016 = vcombine.low %v983, %v999
          %v1017 = vcombine.high %v983, %v999
          %v1019 = vunpack.c.l.s4 1934713408
          %v1020 = vunpack.c.0.s8 %v1019
          %v1021 = vlaneseq
          %v1022 = vshrl.u32 %v1021, 7
          %v1023 = vsub.s32 %v1020, %v1022
          %v1024 = vrot.slane %v1016, %v1023
          %v1026 = vunpack.c.l.s4 1934713408
          %v1027 = vunpack.c.0.s8 %v1026
          %v1028 = vlaneseq
          %v1029 = vshrl.u32 %v1028, 7
          %v1030 = vsub.s32 %v1027, %v1029
          %v1031 = vrot.slane %v1017, %v1030
          %v1032 = vcombine.high %v1008, 0.0
          %v1033 = vcombine.high %v1015, 0.0
          %v1034 = vcombine.high %v1024, 0.0
          %v1035 = vcombine.high %v1031, 0.0
          %v1036 = vcombine.low %v947, %v955
          %v1037 = vcombine.high %v947, %v955
          %v1039 = vunpack.c.l.s4 1983009808
          %v1040 = vunpack.c.0.s8 %v1039
          %v1041 = vlaneseq
          %v1042 = vshrl.u32 %v1041, 7
          %v1043 = vsub.s32 %v1040, %v1042
          %v1044 = vrot.slane %v1036, %v1043
          %v1046 = vunpack.c.l.s4 1983009808
          %v1047 = vunpack.c.0.s8 %v1046
          %v1048 = vlaneseq
          %v1049 = vshrl.u32 %v1048, 7
          %v1050 = vsub.s32 %v1047, %v1049
          %v1051 = vrot.slane %v1037, %v1050
          %v1052 = vcombine.low %v951, %v959
          %v1053 = vcombine.high %v951, %v959
          %v1055 = vunpack.c.l.s4 1983009808
          %v1056 = vunpack.c.0.s8 %v1055
          %v1057 = vlaneseq
          %v1058 = vshrl.u32 %v1057, 7
          %v1059 = vsub.s32 %v1056, %v1058
          %v1060 = vrot.slane %v1052, %v1059
          %v1062 = vunpack.c.l.s4 1983009808
          %v1063 = vunpack.c.0.s8 %v1062
          %v1064 = vlaneseq
          %v1065 = vshrl.u32 %v1064, 7
          %v1066 = vsub.s32 %v1063, %v1065
          %v1067 = vrot.slane %v1053, %v1066
          %v1068 = vcombine.low %v1044, %v1060
          %v1069 = vcombine.high %v1044, %v1060
          %v1071 = vunpack.c.l.s4 1934713408
          %v1072 = vunpack.c.0.s8 %v1071
          %v1073 = vlaneseq
          %v1074 = vshrl.u32 %v1073, 7
          %v1075 = vsub.s32 %v1072, %v1074
          %v1076 = vrot.slane %v1068, %v1075
          %v1078 = vunpack.c.l.s4 1934713408
          %v1079 = vunpack.c.0.s8 %v1078
          %v1080 = vlaneseq
          %v1081 = vshrl.u32 %v1080, 7
          %v1082 = vsub.s32 %v1079, %v1081
          %v1083 = vrot.slane %v1069, %v1082
          %v1084 = vcombine.low %v1051, %v1067
          %v1085 = vcombine.high %v1051, %v1067
          %v1087 = vunpack.c.l.s4 1934713408
          %v1088 = vunpack.c.0.s8 %v1087
          %v1089 = vlaneseq
          %v1090 = vshrl.u32 %v1089, 7
          %v1091 = vsub.s32 %v1088, %v1090
          %v1092 = vrot.slane %v1084, %v1091
          %v1094 = vunpack.c.l.s4 1934713408
          %v1095 = vunpack.c.0.s8 %v1094
          %v1096 = vlaneseq
          %v1097 = vshrl.u32 %v1096, 7
          %v1098 = vsub.s32 %v1095, %v1097
          %v1099 = vrot.slane %v1085, %v1098
          %v1100 = vcombine.high %v1076, 0.0
          %v1101 = vcombine.high %v1083, 0.0
          %v1102 = vcombine.high %v1092, 0.0
          %v1103 = vcombine.high %v1099, 0.0
          %v1104 = vld [vmem:[%s1] sm:$0xff]
          %v1105 = vld [vmem:[%s1 + $0x8] sm:$0xff]
          %v1108 = vcombine.high %v1104, %v1104
          %v1110 = vunpack.c.l.s4 1966171168
          %v1111 = vunpack.c.0.s8 %v1110
          %v1112 = vlaneseq
          %v1113 = vshrl.u32 %v1112, 7
          %v1114 = vsub.s32 %v1111, %v1113
          %v1115 = vrot.slane %v1104, %v1114
          %v1117 = vunpack.c.l.s4 1966171168
          %v1118 = vunpack.c.0.s8 %v1117
          %v1119 = vlaneseq
          %v1120 = vshrl.u32 %v1119, 7
          %v1121 = vsub.s32 %v1118, %v1120
          %v1122 = vrot.slane %v1108, %v1121
          %v1123 = vcombine.high %v1115, %v1115
          %v1124 = vcombine.high %v1122, %v1122
          %v1126 = vunpack.c.l.s4 1966171168
          %v1127 = vunpack.c.0.s8 %v1126
          %v1128 = vlaneseq
          %v1129 = vshrl.u32 %v1128, 7
          %v1130 = vsub.s32 %v1127, %v1129
          %v1131 = vrot.slane %v1115, %v1130
          %v1133 = vunpack.c.l.s4 1966171168
          %v1134 = vunpack.c.0.s8 %v1133
          %v1135 = vlaneseq
          %v1136 = vshrl.u32 %v1135, 7
          %v1137 = vsub.s32 %v1134, %v1136
          %v1138 = vrot.slane %v1122, %v1137
          %v1140 = vunpack.c.l.s4 1966171168
          %v1141 = vunpack.c.0.s8 %v1140
          %v1142 = vlaneseq
          %v1143 = vshrl.u32 %v1142, 7
          %v1144 = vsub.s32 %v1141, %v1143
          %v1145 = vrot.slane %v1123, %v1144
          %v1147 = vunpack.c.l.s4 1966171168
          %v1148 = vunpack.c.0.s8 %v1147
          %v1149 = vlaneseq
          %v1150 = vshrl.u32 %v1149, 7
          %v1151 = vsub.s32 %v1148, %v1150
          %v1152 = vrot.slane %v1124, %v1151
          %v1153 = vcombine.high %v1131, %v1131
          %v1154 = vcombine.high %v1138, %v1138
          %v1155 = vcombine.high %v1145, %v1145
          %v1156 = vcombine.high %v1152, %v1152
          %v1157 = vcombine.high %v1105, %v1105
          %v1159 = vunpack.c.l.s4 1966171168
          %v1160 = vunpack.c.0.s8 %v1159
          %v1161 = vlaneseq
          %v1162 = vshrl.u32 %v1161, 7
          %v1163 = vsub.s32 %v1160, %v1162
          %v1164 = vrot.slane %v1105, %v1163
          %v1166 = vunpack.c.l.s4 1966171168
          %v1167 = vunpack.c.0.s8 %v1166
          %v1168 = vlaneseq
          %v1169 = vshrl.u32 %v1168, 7
          %v1170 = vsub.s32 %v1167, %v1169
          %v1171 = vrot.slane %v1157, %v1170
          %v1172 = vcombine.high %v1164, %v1164
          %v1173 = vcombine.high %v1171, %v1171
          %v1175 = vunpack.c.l.s4 1966171168
          %v1176 = vunpack.c.0.s8 %v1175
          %v1177 = vlaneseq
          %v1178 = vshrl.u32 %v1177, 7
          %v1179 = vsub.s32 %v1176, %v1178
          %v1180 = vrot.slane %v1164, %v1179
          %v1182 = vunpack.c.l.s4 1966171168
          %v1183 = vunpack.c.0.s8 %v1182
          %v1184 = vlaneseq
          %v1185 = vshrl.u32 %v1184, 7
          %v1186 = vsub.s32 %v1183, %v1185
          %v1187 = vrot.slane %v1171, %v1186
          %v1189 = vunpack.c.l.s4 1966171168
          %v1190 = vunpack.c.0.s8 %v1189
          %v1191 = vlaneseq
          %v1192 = vshrl.u32 %v1191, 7
          %v1193 = vsub.s32 %v1190, %v1192
          %v1194 = vrot.slane %v1172, %v1193
          %v1196 = vunpack.c.l.s4 1966171168
          %v1197 = vunpack.c.0.s8 %v1196
          %v1198 = vlaneseq
          %v1199 = vshrl.u32 %v1198, 7
          %v1200 = vsub.s32 %v1197, %v1199
          %v1201 = vrot.slane %v1173, %v1200
          %v1202 = vcombine.high %v1180, %v1180
          %v1203 = vcombine.high %v1187, %v1187
          %v1204 = vcombine.high %v1194, %v1194
          %v1205 = vcombine.high %v1201, %v1201
          %v1206 = vld [vmem:[%s2] sm:$0xff]
          %v1207 = vld [vmem:[%s2 + $0x8] sm:$0xff]
          %v1210 = vcombine.high %v1206, %v1206
          %v1212 = vunpack.c.l.s4 1966171168
          %v1213 = vunpack.c.0.s8 %v1212
          %v1214 = vlaneseq
          %v1215 = vshrl.u32 %v1214, 7
          %v1216 = vsub.s32 %v1213, %v1215
          %v1217 = vrot.slane %v1206, %v1216
          %v1219 = vunpack.c.l.s4 1966171168
          %v1220 = vunpack.c.0.s8 %v1219
          %v1221 = vlaneseq
          %v1222 = vshrl.u32 %v1221, 7
          %v1223 = vsub.s32 %v1220, %v1222
          %v1224 = vrot.slane %v1210, %v1223
          %v1225 = vcombine.high %v1217, %v1217
          %v1226 = vcombine.high %v1224, %v1224
          %v1228 = vunpack.c.l.s4 1966171168
          %v1229 = vunpack.c.0.s8 %v1228
          %v1230 = vlaneseq
          %v1231 = vshrl.u32 %v1230, 7
          %v1232 = vsub.s32 %v1229, %v1231
          %v1233 = vrot.slane %v1217, %v1232
          %v1235 = vunpack.c.l.s4 1966171168
          %v1236 = vunpack.c.0.s8 %v1235
          %v1237 = vlaneseq
          %v1238 = vshrl.u32 %v1237, 7
          %v1239 = vsub.s32 %v1236, %v1238
          %v1240 = vrot.slane %v1224, %v1239
          %v1242 = vunpack.c.l.s4 1966171168
          %v1243 = vunpack.c.0.s8 %v1242
          %v1244 = vlaneseq
          %v1245 = vshrl.u32 %v1244, 7
          %v1246 = vsub.s32 %v1243, %v1245
          %v1247 = vrot.slane %v1225, %v1246
          %v1249 = vunpack.c.l.s4 1966171168
          %v1250 = vunpack.c.0.s8 %v1249
          %v1251 = vlaneseq
          %v1252 = vshrl.u32 %v1251, 7
          %v1253 = vsub.s32 %v1250, %v1252
          %v1254 = vrot.slane %v1226, %v1253
          %v1255 = vcombine.high %v1233, %v1233
          %v1256 = vcombine.high %v1240, %v1240
          %v1257 = vcombine.high %v1247, %v1247
          %v1258 = vcombine.high %v1254, %v1254
          %v1259 = vcombine.high %v1207, %v1207
          %v1261 = vunpack.c.l.s4 1966171168
          %v1262 = vunpack.c.0.s8 %v1261
          %v1263 = vlaneseq
          %v1264 = vshrl.u32 %v1263, 7
          %v1265 = vsub.s32 %v1262, %v1264
          %v1266 = vrot.slane %v1207, %v1265
          %v1268 = vunpack.c.l.s4 1966171168
          %v1269 = vunpack.c.0.s8 %v1268
          %v1270 = vlaneseq
          %v1271 = vshrl.u32 %v1270, 7
          %v1272 = vsub.s32 %v1269, %v1271
          %v1273 = vrot.slane %v1259, %v1272
          %v1274 = vcombine.high %v1266, %v1266
          %v1275 = vcombine.high %v1273, %v1273
          %v1277 = vunpack.c.l.s4 1966171168
          %v1278 = vunpack.c.0.s8 %v1277
          %v1279 = vlaneseq
          %v1280 = vshrl.u32 %v1279, 7
          %v1281 = vsub.s32 %v1278, %v1280
          %v1282 = vrot.slane %v1266, %v1281
          %v1284 = vunpack.c.l.s4 1966171168
          %v1285 = vunpack.c.0.s8 %v1284
          %v1286 = vlaneseq
          %v1287 = vshrl.u32 %v1286, 7
          %v1288 = vsub.s32 %v1285, %v1287
          %v1289 = vrot.slane %v1273, %v1288
          %v1291 = vunpack.c.l.s4 1966171168
          %v1292 = vunpack.c.0.s8 %v1291
          %v1293 = vlaneseq
          %v1294 = vshrl.u32 %v1293, 7
          %v1295 = vsub.s32 %v1292, %v1294
          %v1296 = vrot.slane %v1274, %v1295
          %v1298 = vunpack.c.l.s4 1966171168
          %v1299 = vunpack.c.0.s8 %v1298
          %v1300 = vlaneseq
          %v1301 = vshrl.u32 %v1300, 7
          %v1302 = vsub.s32 %v1299, %v1301
          %v1303 = vrot.slane %v1275, %v1302
          %v1304 = vcombine.high %v1282, %v1282
          %v1305 = vcombine.high %v1289, %v1289
          %v1306 = vcombine.high %v1296, %v1296
          %v1307 = vcombine.high %v1303, %v1303
          %v1308 = vlaneseq
          %v1309 = vshrl.u32 %v1308, 7
          %v1310 = vsub.s32 0, %v1309
          %v1311 = vrot.slane %v1131, %v1310
          %v1312 = vlaneseq
          %v1313 = vshrl.u32 %v1312, 7
          %v1314 = vsub.s32 0, %v1313
          %v1315 = vrot.slane %v1145, %v1314
          %v1316 = vlaneseq
          %v1317 = vshrl.u32 %v1316, 7
          %v1318 = vsub.s32 0, %v1317
          %v1319 = vrot.slane %v1153, %v1318
          %v1320 = vlaneseq
          %v1321 = vshrl.u32 %v1320, 7
          %v1322 = vsub.s32 0, %v1321
          %v1323 = vrot.slane %v1155, %v1322
          %v1324 = vlaneseq
          %v1325 = vshrl.u32 %v1324, 7
          %v1326 = vsub.s32 0, %v1325
          %v1327 = vrot.slane %v1138, %v1326
          %v1328 = vlaneseq
          %v1329 = vshrl.u32 %v1328, 7
          %v1330 = vsub.s32 0, %v1329
          %v1331 = vrot.slane %v1152, %v1330
          %v1332 = vlaneseq
          %v1333 = vshrl.u32 %v1332, 7
          %v1334 = vsub.s32 0, %v1333
          %v1335 = vrot.slane %v1154, %v1334
          %v1336 = vlaneseq
          %v1337 = vshrl.u32 %v1336, 7
          %v1338 = vsub.s32 0, %v1337
          %v1339 = vrot.slane %v1156, %v1338
          %v1340 = vlaneseq
          %v1341 = vshrl.u32 %v1340, 7
          %v1342 = vsub.s32 0, %v1341
          %v1343 = vrot.slane %v1180, %v1342
          %v1344 = vlaneseq
          %v1345 = vshrl.u32 %v1344, 7
          %v1346 = vsub.s32 0, %v1345
          %v1347 = vrot.slane %v1194, %v1346
          %v1348 = vlaneseq
          %v1349 = vshrl.u32 %v1348, 7
          %v1350 = vsub.s32 0, %v1349
          %v1351 = vrot.slane %v1202, %v1350
          %v1352 = vlaneseq
          %v1353 = vshrl.u32 %v1352, 7
          %v1354 = vsub.s32 0, %v1353
          %v1355 = vrot.slane %v1204, %v1354
          %v1356 = vlaneseq
          %v1357 = vshrl.u32 %v1356, 7
          %v1358 = vsub.s32 0, %v1357
          %v1359 = vrot.slane %v1187, %v1358
          %v1360 = vlaneseq
          %v1361 = vshrl.u32 %v1360, 7
          %v1362 = vsub.s32 0, %v1361
          %v1363 = vrot.slane %v1201, %v1362
          %v1364 = vlaneseq
          %v1365 = vshrl.u32 %v1364, 7
          %v1366 = vsub.s32 0, %v1365
          %v1367 = vrot.slane %v1203, %v1366
          %v1368 = vlaneseq
          %v1369 = vshrl.u32 %v1368, 7
          %v1370 = vsub.s32 0, %v1369
          %v1371 = vrot.slane %v1205, %v1370
          %v1388 = vmul.f32 %v1311, %v688
          %v1389 = vmul.f32 %v1315, %v712
          %v1390 = vmul.f32 %v1319, %v695
          %v1391 = vmul.f32 %v1323, %v713
          %v1392 = vmul.f32 %v1327, %v704
          %v1393 = vmul.f32 %v1331, %v714
          %v1394 = vmul.f32 %v1335, %v711
          %v1395 = vmul.f32 %v1339, %v715
          %v1396 = vmul.f32 %v1343, %v756
          %v1397 = vmul.f32 %v1347, %v780
          %v1398 = vmul.f32 %v1351, %v763
          %v1399 = vmul.f32 %v1355, %v781
          %v1400 = vmul.f32 %v1359, %v772
          %v1401 = vmul.f32 %v1363, %v782
          %v1402 = vmul.f32 %v1367, %v779
          %v1403 = vmul.f32 %v1371, %v783
          %1420 = vrot.lane.b32.xlu0 %v688, 124
          %v1421 = vpop.permute.xlu0 %1420
          %1422 = vrot.lane.b32.xlu0 %v712, 124
          %v1423 = vpop.permute.xlu0 %1422
          %1424 = vrot.lane.b32.xlu0 %v695, 124
          %v1425 = vpop.permute.xlu0 %1424
          %1426 = vrot.lane.b32.xlu0 %v713, 124
          %v1427 = vpop.permute.xlu0 %1426
          %1428 = vrot.lane.b32.xlu0 %v704, 124
          %v1429 = vpop.permute.xlu0 %1428
          %1430 = vrot.lane.b32.xlu0 %v714, 124
          %v1431 = vpop.permute.xlu0 %1430
          %1432 = vrot.lane.b32.xlu0 %v711, 124
          %v1433 = vpop.permute.xlu0 %1432
          %1434 = vrot.lane.b32.xlu0 %v715, 124
          %v1435 = vpop.permute.xlu0 %1434
          %1436 = vrot.lane.b32.xlu0 %v756, 124
          %v1437 = vpop.permute.xlu0 %1436
          %1438 = vrot.lane.b32.xlu0 %v780, 124
          %v1439 = vpop.permute.xlu0 %1438
          %1440 = vrot.lane.b32.xlu0 %v763, 124
          %v1441 = vpop.permute.xlu0 %1440
          %1442 = vrot.lane.b32.xlu0 %v781, 124
          %v1443 = vpop.permute.xlu0 %1442
          %1444 = vrot.lane.b32.xlu0 %v772, 124
          %v1445 = vpop.permute.xlu0 %1444
          %1446 = vrot.lane.b32.xlu0 %v782, 124
          %v1447 = vpop.permute.xlu0 %1446
          %1448 = vrot.lane.b32.xlu0 %v779, 124
          %v1449 = vpop.permute.xlu0 %1448
          %1450 = vrot.lane.b32.xlu0 %v783, 124
          %v1451 = vpop.permute.xlu0 %1450
          %1468 = vrot.lane.b32.xlu0 %v688, 4
          %v1469 = vpop.permute.xlu0 %1468
          %1470 = vrot.lane.b32.xlu0 %v712, 4
          %v1471 = vpop.permute.xlu0 %1470
          %1472 = vrot.lane.b32.xlu0 %v695, 4
          %v1473 = vpop.permute.xlu0 %1472
          %1474 = vrot.lane.b32.xlu0 %v713, 4
          %v1475 = vpop.permute.xlu0 %1474
          %1476 = vrot.lane.b32.xlu0 %v704, 4
          %v1477 = vpop.permute.xlu0 %1476
          %1478 = vrot.lane.b32.xlu0 %v714, 4
          %v1479 = vpop.permute.xlu0 %1478
          %1480 = vrot.lane.b32.xlu0 %v711, 4
          %v1481 = vpop.permute.xlu0 %1480
          %1482 = vrot.lane.b32.xlu0 %v715, 4
          %v1483 = vpop.permute.xlu0 %1482
          %1484 = vrot.lane.b32.xlu0 %v756, 4
          %v1485 = vpop.permute.xlu0 %1484
          %1486 = vrot.lane.b32.xlu0 %v780, 4
          %v1487 = vpop.permute.xlu0 %1486
          %1488 = vrot.lane.b32.xlu0 %v763, 4
          %v1489 = vpop.permute.xlu0 %1488
          %1490 = vrot.lane.b32.xlu0 %v781, 4
          %v1491 = vpop.permute.xlu0 %1490
          %1492 = vrot.lane.b32.xlu0 %v772, 4
          %v1493 = vpop.permute.xlu0 %1492
          %1494 = vrot.lane.b32.xlu0 %v782, 4
          %v1495 = vpop.permute.xlu0 %1494
          %1496 = vrot.lane.b32.xlu0 %v779, 4
          %v1497 = vpop.permute.xlu0 %1496
          %1498 = vrot.lane.b32.xlu0 %v783, 4
          %v1499 = vpop.permute.xlu0 %1498
          %vm1516 = vcmask 31744
          %v1517 = vsel %vm1516, %v1421, %v1469
          %v1518 = vsel %vm1516, %v1423, %v1471
          %v1519 = vsel %vm1516, %v1425, %v1473
          %v1520 = vsel %vm1516, %v1427, %v1475
          %v1521 = vsel %vm1516, %v1429, %v1477
          %v1522 = vsel %vm1516, %v1431, %v1479
          %v1523 = vsel %vm1516, %v1433, %v1481
          %v1524 = vsel %vm1516, %v1435, %v1483
          %v1525 = vsel %vm1516, %v1437, %v1485
          %v1526 = vsel %vm1516, %v1439, %v1487
          %v1527 = vsel %vm1516, %v1441, %v1489
          %v1528 = vsel %vm1516, %v1443, %v1491
          %v1529 = vsel %vm1516, %v1445, %v1493
          %v1530 = vsel %vm1516, %v1447, %v1495
          %v1531 = vsel %vm1516, %v1449, %v1497
          %v1532 = vsel %vm1516, %v1451, %v1499
          %v1533 = vlaneseq
          %v1534 = vshrl.u32 %v1533, 7
          %v1535 = vsub.s32 0, %v1534
          %v1536 = vrot.slane %v1233, %v1535
          %v1537 = vlaneseq
          %v1538 = vshrl.u32 %v1537, 7
          %v1539 = vsub.s32 0, %v1538
          %v1540 = vrot.slane %v1247, %v1539
          %v1541 = vlaneseq
          %v1542 = vshrl.u32 %v1541, 7
          %v1543 = vsub.s32 0, %v1542
          %v1544 = vrot.slane %v1255, %v1543
          %v1545 = vlaneseq
          %v1546 = vshrl.u32 %v1545, 7
          %v1547 = vsub.s32 0, %v1546
          %v1548 = vrot.slane %v1257, %v1547
          %v1549 = vlaneseq
          %v1550 = vshrl.u32 %v1549, 7
          %v1551 = vsub.s32 0, %v1550
          %v1552 = vrot.slane %v1240, %v1551
          %v1553 = vlaneseq
          %v1554 = vshrl.u32 %v1553, 7
          %v1555 = vsub.s32 0, %v1554
          %v1556 = vrot.slane %v1254, %v1555
          %v1557 = vlaneseq
          %v1558 = vshrl.u32 %v1557, 7
          %v1559 = vsub.s32 0, %v1558
          %v1560 = vrot.slane %v1256, %v1559
          %v1561 = vlaneseq
          %v1562 = vshrl.u32 %v1561, 7
          %v1563 = vsub.s32 0, %v1562
          %v1564 = vrot.slane %v1258, %v1563
          %v1565 = vlaneseq
          %v1566 = vshrl.u32 %v1565, 7
          %v1567 = vsub.s32 0, %v1566
          %v1568 = vrot.slane %v1282, %v1567
          %v1569 = vlaneseq
          %v1570 = vshrl.u32 %v1569, 7
          %v1571 = vsub.s32 0, %v1570
          %v1572 = vrot.slane %v1296, %v1571
          %v1573 = vlaneseq
          %v1574 = vshrl.u32 %v1573, 7
          %v1575 = vsub.s32 0, %v1574
          %v1576 = vrot.slane %v1304, %v1575
          %v1577 = vlaneseq
          %v1578 = vshrl.u32 %v1577, 7
          %v1579 = vsub.s32 0, %v1578
          %v1580 = vrot.slane %v1306, %v1579
          %v1581 = vlaneseq
          %v1582 = vshrl.u32 %v1581, 7
          %v1583 = vsub.s32 0, %v1582
          %v1584 = vrot.slane %v1289, %v1583
          %v1585 = vlaneseq
          %v1586 = vshrl.u32 %v1585, 7
          %v1587 = vsub.s32 0, %v1586
          %v1588 = vrot.slane %v1303, %v1587
          %v1589 = vlaneseq
          %v1590 = vshrl.u32 %v1589, 7
          %v1591 = vsub.s32 0, %v1590
          %v1592 = vrot.slane %v1305, %v1591
          %v1593 = vlaneseq
          %v1594 = vshrl.u32 %v1593, 7
          %v1595 = vsub.s32 0, %v1594
          %v1596 = vrot.slane %v1307, %v1595
          %v1613 = vmul.f32 %v1517, %v1536
          %v1614 = vmul.f32 %v1518, %v1540
          %v1615 = vmul.f32 %v1519, %v1544
          %v1616 = vmul.f32 %v1520, %v1548
          %v1617 = vmul.f32 %v1521, %v1552
          %v1618 = vmul.f32 %v1522, %v1556
          %v1619 = vmul.f32 %v1523, %v1560
          %v1620 = vmul.f32 %v1524, %v1564
          %v1621 = vmul.f32 %v1525, %v1568
          %v1622 = vmul.f32 %v1526, %v1572
          %v1623 = vmul.f32 %v1527, %v1576
          %v1624 = vmul.f32 %v1528, %v1580
          %v1625 = vmul.f32 %v1529, %v1584
          %v1626 = vmul.f32 %v1530, %v1588
          %v1627 = vmul.f32 %v1531, %v1592
          %v1628 = vmul.f32 %v1532, %v1596
          %v1629 = vadd.f32 %v1388, %v1613
          %v1630 = vadd.f32 %v1389, %v1614
          %v1631 = vadd.f32 %v1390, %v1615
          %v1632 = vadd.f32 %v1391, %v1616
          %v1633 = vadd.f32 %v1392, %v1617
          %v1634 = vadd.f32 %v1393, %v1618
          %v1635 = vadd.f32 %v1394, %v1619
          %v1636 = vadd.f32 %v1395, %v1620
          %v1637 = vadd.f32 %v1396, %v1621
          %v1638 = vadd.f32 %v1397, %v1622
          %v1639 = vadd.f32 %v1398, %v1623
          %v1640 = vadd.f32 %v1399, %v1624
          %v1641 = vadd.f32 %v1400, %v1625
          %v1642 = vadd.f32 %v1401, %v1626
          %v1643 = vadd.f32 %v1402, %v1627
          %v1644 = vadd.f32 %v1403, %v1628
          %v1645 = vpack.c.bf16 %v1629, %v1629
          %v1646 = vpack.c.bf16 %v1630, %v1630
          %v1647 = vpack.c.bf16 %v1631, %v1631
          %v1648 = vpack.c.bf16 %v1632, %v1632
          %v1649 = vpack.c.bf16 %v1633, %v1633
          %v1650 = vpack.c.bf16 %v1634, %v1634
          %v1651 = vpack.c.bf16 %v1635, %v1635
          %v1652 = vpack.c.bf16 %v1636, %v1636
          %v1653 = vpack.c.bf16 %v1637, %v1637
          %v1654 = vpack.c.bf16 %v1638, %v1638
          %v1655 = vpack.c.bf16 %v1639, %v1639
          %v1656 = vpack.c.bf16 %v1640, %v1640
          %v1657 = vpack.c.bf16 %v1641, %v1641
          %v1658 = vpack.c.bf16 %v1642, %v1642
          %v1659 = vpack.c.bf16 %v1643, %v1643
          %v1660 = vpack.c.bf16 %v1644, %v1644
          %vm1661 = vcmask 58368
          %1662 = vst.msk [vmem:[#allocation2] sm:$0x3] %vm1661, %v1645
          %1663 = vst.msk [vmem:[#allocation2 + $0x2] sm:$0x3] %vm1661, %v1646
          %1664 = vst.msk [vmem:[#allocation2 + $0x4] sm:$0x3] %vm1661, %v1647
          %1665 = vst.msk [vmem:[#allocation2 + $0x6] sm:$0x3] %vm1661, %v1648
          %1666 = vst.msk [vmem:[#allocation2 + $0x8] sm:$0x3] %vm1661, %v1649
          %1667 = vst.msk [vmem:[#allocation2 + $0xa] sm:$0x3] %vm1661, %v1650
          %1668 = vst.msk [vmem:[#allocation2 + $0xc] sm:$0x3] %vm1661, %v1651
          %1669 = vst.msk [vmem:[#allocation2 + $0xe] sm:$0x3] %vm1661, %v1652
          %1670 = vst.msk [vmem:[#allocation2 + $0x10] sm:$0x3] %vm1661, %v1653
          %1671 = vst.msk [vmem:[#allocation2 + $0x12] sm:$0x3] %vm1661, %v1654
          %1672 = vst.msk [vmem:[#allocation2 + $0x14] sm:$0x3] %vm1661, %v1655
          %1673 = vst.msk [vmem:[#allocation2 + $0x16] sm:$0x3] %vm1661, %v1656
          %1674 = vst.msk [vmem:[#allocation2 + $0x18] sm:$0x3] %vm1661, %v1657
          %1675 = vst.msk [vmem:[#allocation2 + $0x1a] sm:$0x3] %vm1661, %v1658
          %1676 = vst.msk [vmem:[#allocation2 + $0x1c] sm:$0x3] %vm1661, %v1659
          %1677 = vst.msk [vmem:[#allocation2 + $0x1e] sm:$0x3] %vm1661, %v1660
          %v1678 = vmul.f32 %v1311, %v848
          %v1679 = vmul.f32 %v1315, %v872
          %v1680 = vmul.f32 %v1319, %v855
          %v1681 = vmul.f32 %v1323, %v873
          %v1682 = vmul.f32 %v1327, %v864
          %v1683 = vmul.f32 %v1331, %v874
          %v1684 = vmul.f32 %v1335, %v871
          %v1685 = vmul.f32 %v1339, %v875
          %v1686 = vmul.f32 %v1343, %v916
          %v1687 = vmul.f32 %v1347, %v940
          %v1688 = vmul.f32 %v1351, %v923
          %v1689 = vmul.f32 %v1355, %v941
          %v1690 = vmul.f32 %v1359, %v932
          %v1691 = vmul.f32 %v1363, %v942
          %v1692 = vmul.f32 %v1367, %v939
          %v1693 = vmul.f32 %v1371, %v943
          %1710 = vrot.lane.b32.xlu0 %v848, 124
          %v1711 = vpop.permute.xlu0 %1710
          %1712 = vrot.lane.b32.xlu0 %v872, 124
          %v1713 = vpop.permute.xlu0 %1712
          %1714 = vrot.lane.b32.xlu0 %v855, 124
          %v1715 = vpop.permute.xlu0 %1714
          %1716 = vrot.lane.b32.xlu0 %v873, 124
          %v1717 = vpop.permute.xlu0 %1716
          %1718 = vrot.lane.b32.xlu0 %v864, 124
          %v1719 = vpop.permute.xlu0 %1718
          %1720 = vrot.lane.b32.xlu0 %v874, 124
          %v1721 = vpop.permute.xlu0 %1720
          %1722 = vrot.lane.b32.xlu0 %v871, 124
          %v1723 = vpop.permute.xlu0 %1722
          %1724 = vrot.lane.b32.xlu0 %v875, 124
          %v1725 = vpop.permute.xlu0 %1724
          %1726 = vrot.lane.b32.xlu0 %v916, 124
          %v1727 = vpop.permute.xlu0 %1726
          %1728 = vrot.lane.b32.xlu0 %v940, 124
          %v1729 = vpop.permute.xlu0 %1728
          %1730 = vrot.lane.b32.xlu0 %v923, 124
          %v1731 = vpop.permute.xlu0 %1730
          %1732 = vrot.lane.b32.xlu0 %v941, 124
          %v1733 = vpop.permute.xlu0 %1732
          %1734 = vrot.lane.b32.xlu0 %v932, 124
          %v1735 = vpop.permute.xlu0 %1734
          %1736 = vrot.lane.b32.xlu0 %v942, 124
          %v1737 = vpop.permute.xlu0 %1736
          %1738 = vrot.lane.b32.xlu0 %v939, 124
          %v1739 = vpop.permute.xlu0 %1738
          %1740 = vrot.lane.b32.xlu0 %v943, 124
          %v1741 = vpop.permute.xlu0 %1740
          %1758 = vrot.lane.b32.xlu0 %v848, 4
          %v1759 = vpop.permute.xlu0 %1758
          %1760 = vrot.lane.b32.xlu0 %v872, 4
          %v1761 = vpop.permute.xlu0 %1760
          %1762 = vrot.lane.b32.xlu0 %v855, 4
          %v1763 = vpop.permute.xlu0 %1762
          %1764 = vrot.lane.b32.xlu0 %v873, 4
          %v1765 = vpop.permute.xlu0 %1764
          %1766 = vrot.lane.b32.xlu0 %v864, 4
          %v1767 = vpop.permute.xlu0 %1766
          %1768 = vrot.lane.b32.xlu0 %v874, 4
          %v1769 = vpop.permute.xlu0 %1768
          %1770 = vrot.lane.b32.xlu0 %v871, 4
          %v1771 = vpop.permute.xlu0 %1770
          %1772 = vrot.lane.b32.xlu0 %v875, 4
          %v1773 = vpop.permute.xlu0 %1772
          %1774 = vrot.lane.b32.xlu0 %v916, 4
          %v1775 = vpop.permute.xlu0 %1774
          %1776 = vrot.lane.b32.xlu0 %v940, 4
          %v1777 = vpop.permute.xlu0 %1776
          %1778 = vrot.lane.b32.xlu0 %v923, 4
          %v1779 = vpop.permute.xlu0 %1778
          %1780 = vrot.lane.b32.xlu0 %v941, 4
          %v1781 = vpop.permute.xlu0 %1780
          %1782 = vrot.lane.b32.xlu0 %v932, 4
          %v1783 = vpop.permute.xlu0 %1782
          %1784 = vrot.lane.b32.xlu0 %v942, 4
          %v1785 = vpop.permute.xlu0 %1784
          %1786 = vrot.lane.b32.xlu0 %v939, 4
          %v1787 = vpop.permute.xlu0 %1786
          %1788 = vrot.lane.b32.xlu0 %v943, 4
          %v1789 = vpop.permute.xlu0 %1788
          %v1806 = vsel %vm1516, %v1711, %v1759
          %v1807 = vsel %vm1516, %v1713, %v1761
          %v1808 = vsel %vm1516, %v1715, %v1763
          %v1809 = vsel %vm1516, %v1717, %v1765
          %v1810 = vsel %vm1516, %v1719, %v1767
          %v1811 = vsel %vm1516, %v1721, %v1769
          %v1812 = vsel %vm1516, %v1723, %v1771
          %v1813 = vsel %vm1516, %v1725, %v1773
          %v1814 = vsel %vm1516, %v1727, %v1775
          %v1815 = vsel %vm1516, %v1729, %v1777
          %v1816 = vsel %vm1516, %v1731, %v1779
          %v1817 = vsel %vm1516, %v1733, %v1781
          %v1818 = vsel %vm1516, %v1735, %v1783
          %v1819 = vsel %vm1516, %v1737, %v1785
          %v1820 = vsel %vm1516, %v1739, %v1787
          %v1821 = vsel %vm1516, %v1741, %v1789
          %v1822 = vmul.f32 %v1806, %v1536
          %v1823 = vmul.f32 %v1807, %v1540
          %v1824 = vmul.f32 %v1808, %v1544
          %v1825 = vmul.f32 %v1809, %v1548
          %v1826 = vmul.f32 %v1810, %v1552
          %v1827 = vmul.f32 %v1811, %v1556
          %v1828 = vmul.f32 %v1812, %v1560
          %v1829 = vmul.f32 %v1813, %v1564
          %v1830 = vmul.f32 %v1814, %v1568
          %v1831 = vmul.f32 %v1815, %v1572
          %v1832 = vmul.f32 %v1816, %v1576
          %v1833 = vmul.f32 %v1817, %v1580
          %v1834 = vmul.f32 %v1818, %v1584
          %v1835 = vmul.f32 %v1819, %v1588
          %v1836 = vmul.f32 %v1820, %v1592
          %v1837 = vmul.f32 %v1821, %v1596
          %v1838 = vadd.f32 %v1678, %v1822
          %v1839 = vadd.f32 %v1679, %v1823
          %v1840 = vadd.f32 %v1680, %v1824
          %v1841 = vadd.f32 %v1681, %v1825
          %v1842 = vadd.f32 %v1682, %v1826
          %v1843 = vadd.f32 %v1683, %v1827
          %v1844 = vadd.f32 %v1684, %v1828
          %v1845 = vadd.f32 %v1685, %v1829
          %v1846 = vadd.f32 %v1686, %v1830
          %v1847 = vadd.f32 %v1687, %v1831
          %v1848 = vadd.f32 %v1688, %v1832
          %v1849 = vadd.f32 %v1689, %v1833
          %v1850 = vadd.f32 %v1690, %v1834
          %v1851 = vadd.f32 %v1691, %v1835
          %v1852 = vadd.f32 %v1692, %v1836
          %v1853 = vadd.f32 %v1693, %v1837
          %v1854 = vpack.c.bf16 %v1838, %v1838
          %v1855 = vpack.c.bf16 %v1839, %v1839
          %v1856 = vpack.c.bf16 %v1840, %v1840
          %v1857 = vpack.c.bf16 %v1841, %v1841
          %v1858 = vpack.c.bf16 %v1842, %v1842
          %v1859 = vpack.c.bf16 %v1843, %v1843
          %v1860 = vpack.c.bf16 %v1844, %v1844
          %v1861 = vpack.c.bf16 %v1845, %v1845
          %v1862 = vpack.c.bf16 %v1846, %v1846
          %v1863 = vpack.c.bf16 %v1847, %v1847
          %v1864 = vpack.c.bf16 %v1848, %v1848
          %v1865 = vpack.c.bf16 %v1849, %v1849
          %v1866 = vpack.c.bf16 %v1850, %v1850
          %v1867 = vpack.c.bf16 %v1851, %v1851
          %v1868 = vpack.c.bf16 %v1852, %v1852
          %v1869 = vpack.c.bf16 %v1853, %v1853
          %1870 = vst.msk [vmem:[#allocation3] sm:$0x3] %vm1661, %v1854
          %1871 = vst.msk [vmem:[#allocation3 + $0x2] sm:$0x3] %vm1661, %v1855
          %1872 = vst.msk [vmem:[#allocation3 + $0x4] sm:$0x3] %vm1661, %v1856
          %1873 = vst.msk [vmem:[#allocation3 + $0x6] sm:$0x3] %vm1661, %v1857
          %1874 = vst.msk [vmem:[#allocation3 + $0x8] sm:$0x3] %vm1661, %v1858
          %1875 = vst.msk [vmem:[#allocation3 + $0xa] sm:$0x3] %vm1661, %v1859
          %1876 = vst.msk [vmem:[#allocation3 + $0xc] sm:$0x3] %vm1661, %v1860
          %1877 = vst.msk [vmem:[#allocation3 + $0xe] sm:$0x3] %vm1661, %v1861
          %1878 = vst.msk [vmem:[#allocation3 + $0x10] sm:$0x3] %vm1661, %v1862
          %1879 = vst.msk [vmem:[#allocation3 + $0x12] sm:$0x3] %vm1661, %v1863
          %1880 = vst.msk [vmem:[#allocation3 + $0x14] sm:$0x3] %vm1661, %v1864
          %1881 = vst.msk [vmem:[#allocation3 + $0x16] sm:$0x3] %vm1661, %v1865
          %1882 = vst.msk [vmem:[#allocation3 + $0x18] sm:$0x3] %vm1661, %v1866
          %1883 = vst.msk [vmem:[#allocation3 + $0x1a] sm:$0x3] %vm1661, %v1867
          %1884 = vst.msk [vmem:[#allocation3 + $0x1c] sm:$0x3] %vm1661, %v1868
          %1885 = vst.msk [vmem:[#allocation3 + $0x1e] sm:$0x3] %vm1661, %v1869
          %v1886 = vpack.c.bf16 %v1008, %v1008
          %v1887 = vpack.c.bf16 %v1032, %v1032
          %v1888 = vpack.c.bf16 %v1015, %v1015
          %v1889 = vpack.c.bf16 %v1033, %v1033
          %v1890 = vpack.c.bf16 %v1024, %v1024
          %v1891 = vpack.c.bf16 %v1034, %v1034
          %v1892 = vpack.c.bf16 %v1031, %v1031
          %v1893 = vpack.c.bf16 %v1035, %v1035
          %v1894 = vpack.c.bf16 %v1076, %v1076
          %v1895 = vpack.c.bf16 %v1100, %v1100
          %v1896 = vpack.c.bf16 %v1083, %v1083
          %v1897 = vpack.c.bf16 %v1101, %v1101
          %v1898 = vpack.c.bf16 %v1092, %v1092
          %v1899 = vpack.c.bf16 %v1102, %v1102
          %v1900 = vpack.c.bf16 %v1099, %v1099
          %v1901 = vpack.c.bf16 %v1103, %v1103
          %1902 = vst.msk [vmem:[#allocation4] sm:$0x3] %vm1661, %v1886
          %1903 = vst.msk [vmem:[#allocation4 + $0x2] sm:$0x3] %vm1661, %v1887
          %1904 = vst.msk [vmem:[#allocation4 + $0x4] sm:$0x3] %vm1661, %v1888
          %1905 = vst.msk [vmem:[#allocation4 + $0x6] sm:$0x3] %vm1661, %v1889
          %1906 = vst.msk [vmem:[#allocation4 + $0x8] sm:$0x3] %vm1661, %v1890
          %1907 = vst.msk [vmem:[#allocation4 + $0xa] sm:$0x3] %vm1661, %v1891
          %1908 = vst.msk [vmem:[#allocation4 + $0xc] sm:$0x3] %vm1661, %v1892
          %1909 = vst.msk [vmem:[#allocation4 + $0xe] sm:$0x3] %vm1661, %v1893
          %1910 = vst.msk [vmem:[#allocation4 + $0x10] sm:$0x3] %vm1661, %v1894
          %1911 = vst.msk [vmem:[#allocation4 + $0x12] sm:$0x3] %vm1661, %v1895
          %1912 = vst.msk [vmem:[#allocation4 + $0x14] sm:$0x3] %vm1661, %v1896
          %1913 = vst.msk [vmem:[#allocation4 + $0x16] sm:$0x3] %vm1661, %v1897
          %1914 = vst.msk [vmem:[#allocation4 + $0x18] sm:$0x3] %vm1661, %v1898
          %1915 = vst.msk [vmem:[#allocation4 + $0x1a] sm:$0x3] %vm1661, %v1899
          %1916 = vst.msk [vmem:[#allocation4 + $0x1c] sm:$0x3] %vm1661, %v1900
          %1917 = vst.msk [vmem:[#allocation4 + $0x1e] sm:$0x3] %vm1661, %v1901
        $region84: #{tpu_custom_call.1} parent=79 // pred_fallthru
          _
        %s1918 = smul.u32 %s34, 8
        %s1919 = smul.addr %s1918, 2
        %s1920 = scalar_lea.vmem [#allocation2], %s1919
        %v1921 = vld [vmem:[%s1920] sm:$0x3]
        %v1922 = vld [vmem:[%s1920 + $0x2] sm:$0x3]
        %v1923 = vld [vmem:[%s1920 + $0x4] sm:$0x3]
        %v1924 = vld [vmem:[%s1920 + $0x6] sm:$0x3]
        %v1925 = vld [vmem:[%s1920 + $0x8] sm:$0x3]
        %v1926 = vld [vmem:[%s1920 + $0xa] sm:$0x3]
        %v1927 = vld [vmem:[%s1920 + $0xc] sm:$0x3]
        %v1928 = vld [vmem:[%s1920 + $0xe] sm:$0x3]
        %v1929 = vld [vmem:[#allocation3] sm:$0x3]
        %v1930 = vld [vmem:[#allocation3 + $0x2] sm:$0x3]
        %v1931 = vld [vmem:[#allocation3 + $0x4] sm:$0x3]
        %v1932 = vld [vmem:[#allocation3 + $0x6] sm:$0x3]
        %v1933 = vld [vmem:[#allocation3 + $0x8] sm:$0x3]
        %v1934 = vld [vmem:[#allocation3 + $0xa] sm:$0x3]
        %v1935 = vld [vmem:[#allocation3 + $0xc] sm:$0x3]
        %v1936 = vld [vmem:[#allocation3 + $0xe] sm:$0x3]
        %v1937 = vld [vmem:[#allocation3 + $0x10] sm:$0x3]
        %v1938 = vld [vmem:[#allocation3 + $0x12] sm:$0x3]
        %v1939 = vld [vmem:[#allocation3 + $0x14] sm:$0x3]
        %v1940 = vld [vmem:[#allocation3 + $0x16] sm:$0x3]
        %v1941 = vld [vmem:[#allocation3 + $0x18] sm:$0x3]
        %v1942 = vld [vmem:[#allocation3 + $0x1a] sm:$0x3]
        %v1943 = vld [vmem:[#allocation3 + $0x1c] sm:$0x3]
        %v1944 = vld [vmem:[#allocation3 + $0x1e] sm:$0x3]
        %v1945 = vlaneseq
        %v1946 = vshrl.u32 %v1945, 7
        %v1947 = vstv %s1918
        %v1948 = vadd.s32 %v1947, %v1946
        %v1949 = vlaneseq
        %v1950 = vand.u32 %v1949, 127
        %vm1951 = vcmp.gt.s32.totalorder %v1950, %v1948
        %vm1952 = vcmp.ge.s32.totalorder %v1950, 16
        %vm1953 = vmor %vm1951, %vm1952
        %v1954 = vsel %vm1953, -1e+30, 0.0
        %v1955 = vcombine.low %v1921, %v1923
        %v1957 = vunpack.c.l.s4 1934713408
        %v1958 = vunpack.c.0.s8 %v1957
        %v1959 = vlaneseq
        %v1960 = vshrl.u32 %v1959, 7
        %v1961 = vsub.s32 %v1958, %v1960
        %v1962 = vrot.slane %v1955, %v1961
        %v1963 = vcombine.high %v1962, 0
        %v1964 = vcombine.low %v1922, %v1924
        %v1966 = vunpack.c.l.s4 1934713408
        %v1967 = vunpack.c.0.s8 %v1966
        %v1968 = vlaneseq
        %v1969 = vshrl.u32 %v1968, 7
        %v1970 = vsub.s32 %v1967, %v1969
        %v1971 = vrot.slane %v1964, %v1970
        %v1972 = vcombine.high %v1971, 0
        %v1973 = vcombine.low %v1925, %v1927
        %v1975 = vunpack.c.l.s4 1934713408
        %v1976 = vunpack.c.0.s8 %v1975
        %v1977 = vlaneseq
        %v1978 = vshrl.u32 %v1977, 7
        %v1979 = vsub.s32 %v1976, %v1978
        %v1980 = vrot.slane %v1973, %v1979
        %v1981 = vcombine.high %v1980, 0
        %v1982 = vcombine.low %v1926, %v1928
        %v1984 = vunpack.c.l.s4 1934713408
        %v1985 = vunpack.c.0.s8 %v1984
        %v1986 = vlaneseq
        %v1987 = vshrl.u32 %v1986, 7
        %v1988 = vsub.s32 %v1985, %v1987
        %v1989 = vrot.slane %v1982, %v1988
        %v1990 = vcombine.high %v1989, 0
        %v1993 = vpack.i.b16 %v1971, %v1962
        %v1994 = vshrl.u32 %v1962, 16
        %v1995 = vshrl.u32 %v1971, 16
        %v1996 = vpack.i.b16 %v1995, %v1994
        %v1999 = vpack.i.b16 %v1972, %v1963
        %v2000 = vshrl.u32 %v1963, 16
        %v2001 = vshrl.u32 %v1972, 16
        %v2002 = vpack.i.b16 %v2001, %v2000
        %v2005 = vpack.i.b16 %v1989, %v1980
        %v2006 = vshrl.u32 %v1980, 16
        %v2007 = vshrl.u32 %v1989, 16
        %v2008 = vpack.i.b16 %v2007, %v2006
        %v2011 = vpack.i.b16 %v1990, %v1981
        %v2012 = vshrl.u32 %v1981, 16
        %v2013 = vshrl.u32 %v1990, 16
        %v2014 = vpack.i.b16 %v2013, %v2012
        %2015 = vxpose.xlu0.c.b16.start [1/8] %v1929, 128
        %2016 = vxpose.xlu0.c.b16.cont [2/8] 0, 128
        %2017 = vxpose.xlu0.c.b16.cont [3/8] 0, 128
        %2018 = vxpose.xlu0.c.b16.cont [4/8] 0, 128
        %2019 = vxpose.xlu0.c.b16.cont [5/8] 0, 128
        %2020 = vxpose.xlu0.c.b16.cont [6/8] 0, 128
        %2021 = vxpose.xlu0.c.b16.cont [7/8] 0, 128
        %2022 = vxpose.xlu0.c.b16.end [8/8] 0, 128
        %v2023 = vpop.trf.xlu0
        %v2024 = vpop.trf.xlu0
        %v2025 = vpop.trf.xlu0
        %v2026 = vpop.trf.xlu0
        %v2027 = vpop.trf.xlu0
        %v2028 = vpop.trf.xlu0
        %v2029 = vpop.trf.xlu0
        %v2030 = vpop.trf.xlu0
        %2031 = vxpose.xlu0.c.b16.start [1/8] %v1930, 128
        %2032 = vxpose.xlu0.c.b16.cont [2/8] 0, 128
        %2033 = vxpose.xlu0.c.b16.cont [3/8] 0, 128
        %2034 = vxpose.xlu0.c.b16.cont [4/8] 0, 128
        %2035 = vxpose.xlu0.c.b16.cont [5/8] 0, 128
        %2036 = vxpose.xlu0.c.b16.cont [6/8] 0, 128
        %2037 = vxpose.xlu0.c.b16.cont [7/8] 0, 128
        %2038 = vxpose.xlu0.c.b16.end [8/8] 0, 128
        %v2039 = vpop.trf.xlu0
        %v2040 = vpop.trf.xlu0
        %v2041 = vpop.trf.xlu0
        %v2042 = vpop.trf.xlu0
        %v2043 = vpop.trf.xlu0
        %v2044 = vpop.trf.xlu0
        %v2045 = vpop.trf.xlu0
        %v2046 = vpop.trf.xlu0
        %2047 = vxpose.xlu0.c.b16.start [1/8] %v1931, 128
        %2048 = vxpose.xlu0.c.b16.cont [2/8] 0, 128
        %2049 = vxpose.xlu0.c.b16.cont [3/8] 0, 128
        %2050 = vxpose.xlu0.c.b16.cont [4/8] 0, 128
        %2051 = vxpose.xlu0.c.b16.cont [5/8] 0, 128
        %2052 = vxpose.xlu0.c.b16.cont [6/8] 0, 128
        %2053 = vxpose.xlu0.c.b16.cont [7/8] 0, 128
        %2054 = vxpose.xlu0.c.b16.end [8/8] 0, 128
        %v2055 = vpop.trf.xlu0
        %v2056 = vpop.trf.xlu0
        %v2057 = vpop.trf.xlu0
        %v2058 = vpop.trf.xlu0
        %v2059 = vpop.trf.xlu0
        %v2060 = vpop.trf.xlu0
        %v2061 = vpop.trf.xlu0
        %v2062 = vpop.trf.xlu0
        %2063 = vxpose.xlu0.c.b16.start [1/8] %v1932, 128
        %2064 = vxpose.xlu0.c.b16.cont [2/8] 0, 128
        %2065 = vxpose.xlu0.c.b16.cont [3/8] 0, 128
        %2066 = vxpose.xlu0.c.b16.cont [4/8] 0, 128
        %2067 = vxpose.xlu0.c.b16.cont [5/8] 0, 128
        %2068 = vxpose.xlu0.c.b16.cont [6/8] 0, 128
        %2069 = vxpose.xlu0.c.b16.cont [7/8] 0, 128
        %2070 = vxpose.xlu0.c.b16.end [8/8] 0, 128
        %v2071 = vpop.trf.xlu0
        %v2072 = vpop.trf.xlu0
        %v2073 = vpop.trf.xlu0
        %v2074 = vpop.trf.xlu0
        %v2075 = vpop.trf.xlu0
        %v2076 = vpop.trf.xlu0
        %v2077 = vpop.trf.xlu0
        %v2078 = vpop.trf.xlu0
        %2079 = vxpose.xlu0.c.b16.start [1/8] %v1933, 128
        %2080 = vxpose.xlu0.c.b16.cont [2/8] 0, 128
        %2081 = vxpose.xlu0.c.b16.cont [3/8] 0, 128
        %2082 = vxpose.xlu0.c.b16.cont [4/8] 0, 128
        %2083 = vxpose.xlu0.c.b16.cont [5/8] 0, 128
        %2084 = vxpose.xlu0.c.b16.cont [6/8] 0, 128
        %2085 = vxpose.xlu0.c.b16.cont [7/8] 0, 128
        %2086 = vxpose.xlu0.c.b16.end [8/8] 0, 128
        %v2087 = vpop.trf.xlu0
        %v2088 = vpop.trf.xlu0
        %v2089 = vpop.trf.xlu0
        %v2090 = vpop.trf.xlu0
        %v2091 = vpop.trf.xlu0
        %v2092 = vpop.trf.xlu0
        %v2093 = vpop.trf.xlu0
        %v2094 = vpop.trf.xlu0
        %2095 = vxpose.xlu0.c.b16.start [1/8] %v1934, 128
        %2096 = vxpose.xlu0.c.b16.cont [2/8] 0, 128
        %2097 = vxpose.xlu0.c.b16.cont [3/8] 0, 128
        %2098 = vxpose.xlu0.c.b16.cont [4/8] 0, 128
        %2099 = vxpose.xlu0.c.b16.cont [5/8] 0, 128
        %2100 = vxpose.xlu0.c.b16.cont [6/8] 0, 128
        %2101 = vxpose.xlu0.c.b16.cont [7/8] 0, 128
        %2102 = vxpose.xlu0.c.b16.end [8/8] 0, 128
        %v2103 = vpop.trf.xlu0
        %v2104 = vpop.trf.xlu0
        %v2105 = vpop.trf.xlu0
        %v2106 = vpop.trf.xlu0
        %v2107 = vpop.trf.xlu0
        %v2108 = vpop.trf.xlu0
        %v2109 = vpop.trf.xlu0
        %v2110 = vpop.trf.xlu0
        %2111 = vxpose.xlu0.c.b16.start [1/8] %v1935, 128
        %2112 = vxpose.xlu0.c.b16.cont [2/8] 0, 128
        %2113 = vxpose.xlu0.c.b16.cont [3/8] 0, 128
        %2114 = vxpose.xlu0.c.b16.cont [4/8] 0, 128
        %2115 = vxpose.xlu0.c.b16.cont [5/8] 0, 128
        %2116 = vxpose.xlu0.c.b16.cont [6/8] 0, 128
        %2117 = vxpose.xlu0.c.b16.cont [7/8] 0, 128
        %2118 = vxpose.xlu0.c.b16.end [8/8] 0, 128
        %v2119 = vpop.trf.xlu0
        %v2120 = vpop.trf.xlu0
        %v2121 = vpop.trf.xlu0
        %v2122 = vpop.trf.xlu0
        %v2123 = vpop.trf.xlu0
        %v2124 = vpop.trf.xlu0
        %v2125 = vpop.trf.xlu0
        %v2126 = vpop.trf.xlu0
        %2127 = vxpose.xlu0.c.b16.start [1/8] %v1936, 128
        %2128 = vxpose.xlu0.c.b16.cont [2/8] 0, 128
        %2129 = vxpose.xlu0.c.b16.cont [3/8] 0, 128
        %2130 = vxpose.xlu0.c.b16.cont [4/8] 0, 128
        %2131 = vxpose.xlu0.c.b16.cont [5/8] 0, 128
        %2132 = vxpose.xlu0.c.b16.cont [6/8] 0, 128
        %2133 = vxpose.xlu0.c.b16.cont [7/8] 0, 128
        %2134 = vxpose.xlu0.c.b16.end [8/8] 0, 128
        %v2135 = vpop.trf.xlu0
        %v2136 = vpop.trf.xlu0
        %v2137 = vpop.trf.xlu0
        %v2138 = vpop.trf.xlu0
        %v2139 = vpop.trf.xlu0
        %v2140 = vpop.trf.xlu0
        %v2141 = vpop.trf.xlu0
        %v2142 = vpop.trf.xlu0
        %2143 = vxpose.xlu0.c.b16.start [1/8] %v1937, 128
        %2144 = vxpose.xlu0.c.b16.cont [2/8] 0, 128
        %2145 = vxpose.xlu0.c.b16.cont [3/8] 0, 128
        %2146 = vxpose.xlu0.c.b16.cont [4/8] 0, 128
        %2147 = vxpose.xlu0.c.b16.cont [5/8] 0, 128
        %2148 = vxpose.xlu0.c.b16.cont [6/8] 0, 128
        %2149 = vxpose.xlu0.c.b16.cont [7/8] 0, 128
        %2150 = vxpose.xlu0.c.b16.end [8/8] 0, 128
        %v2151 = vpop.trf.xlu0
        %v2152 = vpop.trf.xlu0
        %v2153 = vpop.trf.xlu0
        %v2154 = vpop.trf.xlu0
        %v2155 = vpop.trf.xlu0
        %v2156 = vpop.trf.xlu0
        %v2157 = vpop.trf.xlu0
        %v2158 = vpop.trf.xlu0
        %2159 = vxpose.xlu0.c.b16.start [1/8] %v1938, 128
        %2160 = vxpose.xlu0.c.b16.cont [2/8] 0, 128
        %2161 = vxpose.xlu0.c.b16.cont [3/8] 0, 128
        %2162 = vxpose.xlu0.c.b16.cont [4/8] 0, 128
        %2163 = vxpose.xlu0.c.b16.cont [5/8] 0, 128
        %2164 = vxpose.xlu0.c.b16.cont [6/8] 0, 128
        %2165 = vxpose.xlu0.c.b16.cont [7/8] 0, 128
        %2166 = vxpose.xlu0.c.b16.end [8/8] 0, 128
        %v2167 = vpop.trf.xlu0
        %v2168 = vpop.trf.xlu0
        %v2169 = vpop.trf.xlu0
        %v2170 = vpop.trf.xlu0
        %v2171 = vpop.trf.xlu0
        %v2172 = vpop.trf.xlu0
        %v2173 = vpop.trf.xlu0
        %v2174 = vpop.trf.xlu0
        %2175 = vxpose.xlu0.c.b16.start [1/8] %v1939, 128
        %2176 = vxpose.xlu0.c.b16.cont [2/8] 0, 128
        %2177 = vxpose.xlu0.c.b16.cont [3/8] 0, 128
        %2178 = vxpose.xlu0.c.b16.cont [4/8] 0, 128
        %2179 = vxpose.xlu0.c.b16.cont [5/8] 0, 128
        %2180 = vxpose.xlu0.c.b16.cont [6/8] 0, 128
        %2181 = vxpose.xlu0.c.b16.cont [7/8] 0, 128
        %2182 = vxpose.xlu0.c.b16.end [8/8] 0, 128
        %v2183 = vpop.trf.xlu0
        %v2184 = vpop.trf.xlu0
        %v2185 = vpop.trf.xlu0
        %v2186 = vpop.trf.xlu0
        %v2187 = vpop.trf.xlu0
        %v2188 = vpop.trf.xlu0
        %v2189 = vpop.trf.xlu0
        %v2190 = vpop.trf.xlu0
        %2191 = vxpose.xlu0.c.b16.start [1/8] %v1940, 128
        %2192 = vxpose.xlu0.c.b16.cont [2/8] 0, 128
        %2193 = vxpose.xlu0.c.b16.cont [3/8] 0, 128
        %2194 = vxpose.xlu0.c.b16.cont [4/8] 0, 128
        %2195 = vxpose.xlu0.c.b16.cont [5/8] 0, 128
        %2196 = vxpose.xlu0.c.b16.cont [6/8] 0, 128
        %2197 = vxpose.xlu0.c.b16.cont [7/8] 0, 128
        %2198 = vxpose.xlu0.c.b16.end [8/8] 0, 128
        %v2199 = vpop.trf.xlu0
        %v2200 = vpop.trf.xlu0
        %v2201 = vpop.trf.xlu0
        %v2202 = vpop.trf.xlu0
        %v2203 = vpop.trf.xlu0
        %v2204 = vpop.trf.xlu0
        %v2205 = vpop.trf.xlu0
        %v2206 = vpop.trf.xlu0
        %2207 = vxpose.xlu0.c.b16.start [1/8] %v1941, 128
        %2208 = vxpose.xlu0.c.b16.cont [2/8] 0, 128
        %2209 = vxpose.xlu0.c.b16.cont [3/8] 0, 128
        %2210 = vxpose.xlu0.c.b16.cont [4/8] 0, 128
        %2211 = vxpose.xlu0.c.b16.cont [5/8] 0, 128
        %2212 = vxpose.xlu0.c.b16.cont [6/8] 0, 128
        %2213 = vxpose.xlu0.c.b16.cont [7/8] 0, 128
        %2214 = vxpose.xlu0.c.b16.end [8/8] 0, 128
        %v2215 = vpop.trf.xlu0
        %v2216 = vpop.trf.xlu0
        %v2217 = vpop.trf.xlu0
        %v2218 = vpop.trf.xlu0
        %v2219 = vpop.trf.xlu0
        %v2220 = vpop.trf.xlu0
        %v2221 = vpop.trf.xlu0
        %v2222 = vpop.trf.xlu0
        %2223 = vxpose.xlu0.c.b16.start [1/8] %v1942, 128
        %2224 = vxpose.xlu0.c.b16.cont [2/8] 0, 128
        %2225 = vxpose.xlu0.c.b16.cont [3/8] 0, 128
        %2226 = vxpose.xlu0.c.b16.cont [4/8] 0, 128
        %2227 = vxpose.xlu0.c.b16.cont [5/8] 0, 128
        %2228 = vxpose.xlu0.c.b16.cont [6/8] 0, 128
        %2229 = vxpose.xlu0.c.b16.cont [7/8] 0, 128
        %2230 = vxpose.xlu0.c.b16.end [8/8] 0, 128
        %v2231 = vpop.trf.xlu0
        %v2232 = vpop.trf.xlu0
        %v2233 = vpop.trf.xlu0
        %v2234 = vpop.trf.xlu0
        %v2235 = vpop.trf.xlu0
        %v2236 = vpop.trf.xlu0
        %v2237 = vpop.trf.xlu0
        %v2238 = vpop.trf.xlu0
        %2239 = vxpose.xlu0.c.b16.start [1/8] %v1943, 128
        %2240 = vxpose.xlu0.c.b16.cont [2/8] 0, 128
        %2241 = vxpose.xlu0.c.b16.cont [3/8] 0, 128
        %2242 = vxpose.xlu0.c.b16.cont [4/8] 0, 128
        %2243 = vxpose.xlu0.c.b16.cont [5/8] 0, 128
        %2244 = vxpose.xlu0.c.b16.cont [6/8] 0, 128
        %2245 = vxpose.xlu0.c.b16.cont [7/8] 0, 128
        %2246 = vxpose.xlu0.c.b16.end [8/8] 0, 128
        %v2247 = vpop.trf.xlu0
        %v2248 = vpop.trf.xlu0
        %v2249 = vpop.trf.xlu0
        %v2250 = vpop.trf.xlu0
        %v2251 = vpop.trf.xlu0
        %v2252 = vpop.trf.xlu0
        %v2253 = vpop.trf.xlu0
        %v2254 = vpop.trf.xlu0
        %2255 = vxpose.xlu0.c.b16.start [1/8] %v1944, 128
        %2256 = vxpose.xlu0.c.b16.cont [2/8] 0, 128
        %2257 = vxpose.xlu0.c.b16.cont [3/8] 0, 128
        %2258 = vxpose.xlu0.c.b16.cont [4/8] 0, 128
        %2259 = vxpose.xlu0.c.b16.cont [5/8] 0, 128
        %2260 = vxpose.xlu0.c.b16.cont [6/8] 0, 128
        %2261 = vxpose.xlu0.c.b16.cont [7/8] 0, 128
        %2262 = vxpose.xlu0.c.b16.end [8/8] 0, 128
        %v2263 = vpop.trf.xlu0
        %v2264 = vpop.trf.xlu0
        %v2265 = vpop.trf.xlu0
        %v2266 = vpop.trf.xlu0
        %v2267 = vpop.trf.xlu0
        %v2268 = vpop.trf.xlu0
        %v2269 = vpop.trf.xlu0
        %v2270 = vpop.trf.xlu0
        %v2271 = vcombine.low %v2023, %v2087
        %v2273 = vunpack.c.l.s4 1983009808
        %v2274 = vunpack.c.0.s8 %v2273
        %v2275 = vlaneseq
        %v2276 = vshrl.u32 %v2275, 7
        %v2277 = vsub.s32 %v2274, %v2276
        %v2278 = vrot.slane %v2271, %v2277
        %v2279 = vcombine.low %v2055, %v2119
        %v2281 = vunpack.c.l.s4 1983009808
        %v2282 = vunpack.c.0.s8 %v2281
        %v2283 = vlaneseq
        %v2284 = vshrl.u32 %v2283, 7
        %v2285 = vsub.s32 %v2282, %v2284
        %v2286 = vrot.slane %v2279, %v2285
        %v2287 = vcombine.low %v2151, %v2215
        %v2289 = vunpack.c.l.s4 1983009808
        %v2290 = vunpack.c.0.s8 %v2289
        %v2291 = vlaneseq
        %v2292 = vshrl.u32 %v2291, 7
        %v2293 = vsub.s32 %v2290, %v2292
        %v2294 = vrot.slane %v2287, %v2293
        %v2295 = vcombine.low %v2183, %v2247
        %v2297 = vunpack.c.l.s4 1983009808
        %v2298 = vunpack.c.0.s8 %v2297
        %v2299 = vlaneseq
        %v2300 = vshrl.u32 %v2299, 7
        %v2301 = vsub.s32 %v2298, %v2300
        %v2302 = vrot.slane %v2295, %v2301
        %v2303 = vcombine.low %v2278, %v2286
        %v2304 = vcombine.high %v2278, %v2286
        %v2306 = vunpack.c.l.s4 1934713408
        %v2307 = vunpack.c.0.s8 %v2306
        %v2308 = vlaneseq
        %v2309 = vshrl.u32 %v2308, 7
        %v2310 = vsub.s32 %v2307, %v2309
        %v2311 = vrot.slane %v2303, %v2310
        %v2313 = vunpack.c.l.s4 1934713408
        %v2314 = vunpack.c.0.s8 %v2313
        %v2315 = vlaneseq
        %v2316 = vshrl.u32 %v2315, 7
        %v2317 = vsub.s32 %v2314, %v2316
        %v2318 = vrot.slane %v2304, %v2317
        %v2319 = vcombine.low %v2294, %v2302
        %v2320 = vcombine.high %v2294, %v2302
        %v2322 = vunpack.c.l.s4 1934713408
        %v2323 = vunpack.c.0.s8 %v2322
        %v2324 = vlaneseq
        %v2325 = vshrl.u32 %v2324, 7
        %v2326 = vsub.s32 %v2323, %v2325
        %v2327 = vrot.slane %v2319, %v2326
        %v2329 = vunpack.c.l.s4 1934713408
        %v2330 = vunpack.c.0.s8 %v2329
        %v2331 = vlaneseq
        %v2332 = vshrl.u32 %v2331, 7
        %v2333 = vsub.s32 %v2330, %v2332
        %v2334 = vrot.slane %v2320, %v2333
        %v2335 = vcombine.low %v2311, %v2327
        %v2336 = vcombine.high %v2311, %v2327
        %v2337 = vcombine.low %v2318, %v2334
        %v2338 = vcombine.high %v2318, %v2334
        %v2339 = vcombine.low %v2039, %v2103
        %v2341 = vunpack.c.l.s4 1983009808
        %v2342 = vunpack.c.0.s8 %v2341
        %v2343 = vlaneseq
        %v2344 = vshrl.u32 %v2343, 7
        %v2345 = vsub.s32 %v2342, %v2344
        %v2346 = vrot.slane %v2339, %v2345
        %v2347 = vcombine.low %v2071, %v2135
        %v2349 = vunpack.c.l.s4 1983009808
        %v2350 = vunpack.c.0.s8 %v2349
        %v2351 = vlaneseq
        %v2352 = vshrl.u32 %v2351, 7
        %v2353 = vsub.s32 %v2350, %v2352
        %v2354 = vrot.slane %v2347, %v2353
        %v2355 = vcombine.low %v2167, %v2231
        %v2357 = vunpack.c.l.s4 1983009808
        %v2358 = vunpack.c.0.s8 %v2357
        %v2359 = vlaneseq
        %v2360 = vshrl.u32 %v2359, 7
        %v2361 = vsub.s32 %v2358, %v2360
        %v2362 = vrot.slane %v2355, %v2361
        %v2363 = vcombine.low %v2199, %v2263
        %v2365 = vunpack.c.l.s4 1983009808
        %v2366 = vunpack.c.0.s8 %v2365
        %v2367 = vlaneseq
        %v2368 = vshrl.u32 %v2367, 7
        %v2369 = vsub.s32 %v2366, %v2368
        %v2370 = vrot.slane %v2363, %v2369
        %v2371 = vcombine.low %v2346, %v2354
        %v2372 = vcombine.high %v2346, %v2354
        %v2374 = vunpack.c.l.s4 1934713408
        %v2375 = vunpack.c.0.s8 %v2374
        %v2376 = vlaneseq
        %v2377 = vshrl.u32 %v2376, 7
        %v2378 = vsub.s32 %v2375, %v2377
        %v2379 = vrot.slane %v2371, %v2378
        %v2381 = vunpack.c.l.s4 1934713408
        %v2382 = vunpack.c.0.s8 %v2381
        %v2383 = vlaneseq
        %v2384 = vshrl.u32 %v2383, 7
        %v2385 = vsub.s32 %v2382, %v2384
        %v2386 = vrot.slane %v2372, %v2385
        %v2387 = vcombine.low %v2362, %v2370
        %v2388 = vcombine.high %v2362, %v2370
        %v2390 = vunpack.c.l.s4 1934713408
        %v2391 = vunpack.c.0.s8 %v2390
        %v2392 = vlaneseq
        %v2393 = vshrl.u32 %v2392, 7
        %v2394 = vsub.s32 %v2391, %v2393
        %v2395 = vrot.slane %v2387, %v2394
        %v2397 = vunpack.c.l.s4 1934713408
        %v2398 = vunpack.c.0.s8 %v2397
        %v2399 = vlaneseq
        %v2400 = vshrl.u32 %v2399, 7
        %v2401 = vsub.s32 %v2398, %v2400
        %v2402 = vrot.slane %v2388, %v2401
        %v2403 = vcombine.low %v2379, %v2395
        %v2404 = vcombine.high %v2379, %v2395
        %v2405 = vcombine.low %v2386, %v2402
        %v2406 = vcombine.high %v2386, %v2402
        %v2409 = vpack.i.b16 %v2403, %v2335
        %v2411 = vshrl.u32 %v2335, 16
        %v2412 = vshrl.u32 %v2403, 16
        %v2413 = vpack.i.b16 %v2412, %v2411
        %v2417 = vpack.i.b16 %v2404, %v2336
        %v2419 = vshrl.u32 %v2336, 16
        %v2420 = vshrl.u32 %v2404, 16
        %v2421 = vpack.i.b16 %v2420, %v2419
        %v2425 = vpack.i.b16 %v2405, %v2337
        %v2427 = vshrl.u32 %v2337, 16
        %v2428 = vshrl.u32 %v2405, 16
        %v2429 = vpack.i.b16 %v2428, %v2427
        %v2433 = vpack.i.b16 %v2406, %v2338
        %v2435 = vshrl.u32 %v2338, 16
        %v2436 = vshrl.u32 %v2406, 16
        %v2437 = vpack.i.b16 %v2436, %v2435
        %2439 = vxpose.xlu0.c.b16.start [1/8] %v2409, 128
        %2440 = vxpose.xlu0.c.b16.cont [2/8] 0, 128
        %2441 = vxpose.xlu0.c.b16.cont [3/8] 0, 128
        %2442 = vxpose.xlu0.c.b16.cont [4/8] 0, 128
        %2443 = vxpose.xlu0.c.b16.cont [5/8] 0, 128
        %2444 = vxpose.xlu0.c.b16.cont [6/8] 0, 128
        %2445 = vxpose.xlu0.c.b16.cont [7/8] 0, 128
        %2446 = vxpose.xlu0.c.b16.end [8/8] 0, 128
        %v2447 = vpop.trf.xlu0
        %v2448 = vpop.trf.xlu0
        %v2449 = vpop.trf.xlu0
        %v2450 = vpop.trf.xlu0
        %v2451 = vpop.trf.xlu0
        %v2452 = vpop.trf.xlu0
        %v2453 = vpop.trf.xlu0
        %v2454 = vpop.trf.xlu0
        %2455 = vxpose.xlu0.c.b16.start [1/8] %v2413, 128
        %2456 = vxpose.xlu0.c.b16.cont [2/8] 0, 128
        %2457 = vxpose.xlu0.c.b16.cont [3/8] 0, 128
        %2458 = vxpose.xlu0.c.b16.cont [4/8] 0, 128
        %2459 = vxpose.xlu0.c.b16.cont [5/8] 0, 128
        %2460 = vxpose.xlu0.c.b16.cont [6/8] 0, 128
        %2461 = vxpose.xlu0.c.b16.cont [7/8] 0, 128
        %2462 = vxpose.xlu0.c.b16.end [8/8] 0, 128
        %v2463 = vpop.trf.xlu0
        %v2464 = vpop.trf.xlu0
        %v2465 = vpop.trf.xlu0
        %v2466 = vpop.trf.xlu0
        %v2467 = vpop.trf.xlu0
        %v2468 = vpop.trf.xlu0
        %v2469 = vpop.trf.xlu0
        %v2470 = vpop.trf.xlu0
        %2471 = vxpose.xlu0.c.b16.start [1/8] %v2417, 128
        %2472 = vxpose.xlu0.c.b16.cont [2/8] 0, 128
        %2473 = vxpose.xlu0.c.b16.cont [3/8] 0, 128
        %2474 = vxpose.xlu0.c.b16.cont [4/8] 0, 128
        %2475 = vxpose.xlu0.c.b16.cont [5/8] 0, 128
        %2476 = vxpose.xlu0.c.b16.cont [6/8] 0, 128
        %2477 = vxpose.xlu0.c.b16.cont [7/8] 0, 128
        %2478 = vxpose.xlu0.c.b16.end [8/8] 0, 128
        %v2479 = vpop.trf.xlu0
        %v2480 = vpop.trf.xlu0
        %v2481 = vpop.trf.xlu0
        %v2482 = vpop.trf.xlu0
        %v2483 = vpop.trf.xlu0
        %v2484 = vpop.trf.xlu0
        %v2485 = vpop.trf.xlu0
        %v2486 = vpop.trf.xlu0
        %2487 = vxpose.xlu0.c.b16.start [1/8] %v2421, 128
        %2488 = vxpose.xlu0.c.b16.cont [2/8] 0, 128
        %2489 = vxpose.xlu0.c.b16.cont [3/8] 0, 128
        %2490 = vxpose.xlu0.c.b16.cont [4/8] 0, 128
        %2491 = vxpose.xlu0.c.b16.cont [5/8] 0, 128
        %2492 = vxpose.xlu0.c.b16.cont [6/8] 0, 128
        %2493 = vxpose.xlu0.c.b16.cont [7/8] 0, 128
        %2494 = vxpose.xlu0.c.b16.end [8/8] 0, 128
        %v2495 = vpop.trf.xlu0
        %v2496 = vpop.trf.xlu0
        %v2497 = vpop.trf.xlu0
        %v2498 = vpop.trf.xlu0
        %v2499 = vpop.trf.xlu0
        %v2500 = vpop.trf.xlu0
        %v2501 = vpop.trf.xlu0
        %v2502 = vpop.trf.xlu0
        %2503 = vxpose.xlu0.c.b16.start [1/8] %v2425, 128
        %2504 = vxpose.xlu0.c.b16.cont [2/8] 0, 128
        %2505 = vxpose.xlu0.c.b16.cont [3/8] 0, 128
        %2506 = vxpose.xlu0.c.b16.cont [4/8] 0, 128
        %2507 = vxpose.xlu0.c.b16.cont [5/8] 0, 128
        %2508 = vxpose.xlu0.c.b16.cont [6/8] 0, 128
        %2509 = vxpose.xlu0.c.b16.cont [7/8] 0, 128
        %2510 = vxpose.xlu0.c.b16.end [8/8] 0, 128
        %v2511 = vpop.trf.xlu0
        %v2512 = vpop.trf.xlu0
        %v2513 = vpop.trf.xlu0
        %v2514 = vpop.trf.xlu0
        %v2515 = vpop.trf.xlu0
        %v2516 = vpop.trf.xlu0
        %v2517 = vpop.trf.xlu0
        %v2518 = vpop.trf.xlu0
        %2519 = vxpose.xlu0.c.b16.start [1/8] %v2429, 128
        %2520 = vxpose.xlu0.c.b16.cont [2/8] 0, 128
        %2521 = vxpose.xlu0.c.b16.cont [3/8] 0, 128
        %2522 = vxpose.xlu0.c.b16.cont [4/8] 0, 128
        %2523 = vxpose.xlu0.c.b16.cont [5/8] 0, 128
        %2524 = vxpose.xlu0.c.b16.cont [6/8] 0, 128
        %2525 = vxpose.xlu0.c.b16.cont [7/8] 0, 128
        %2526 = vxpose.xlu0.c.b16.end [8/8] 0, 128
        %v2527 = vpop.trf.xlu0
        %v2528 = vpop.trf.xlu0
        %v2529 = vpop.trf.xlu0
        %v2530 = vpop.trf.xlu0
        %v2531 = vpop.trf.xlu0
        %v2532 = vpop.trf.xlu0
        %v2533 = vpop.trf.xlu0
        %v2534 = vpop.trf.xlu0
        %2535 = vxpose.xlu0.c.b16.start [1/8] %v2433, 128
        %2536 = vxpose.xlu0.c.b16.cont [2/8] 0, 128
        %2537 = vxpose.xlu0.c.b16.cont [3/8] 0, 128
        %2538 = vxpose.xlu0.c.b16.cont [4/8] 0, 128
        %2539 = vxpose.xlu0.c.b16.cont [5/8] 0, 128
        %2540 = vxpose.xlu0.c.b16.cont [6/8] 0, 128
        %2541 = vxpose.xlu0.c.b16.cont [7/8] 0, 128
        %2542 = vxpose.xlu0.c.b16.end [8/8] 0, 128
        %v2543 = vpop.trf.xlu0
        %v2544 = vpop.trf.xlu0
        %v2545 = vpop.trf.xlu0
        %v2546 = vpop.trf.xlu0
        %v2547 = vpop.trf.xlu0
        %v2548 = vpop.trf.xlu0
        %v2549 = vpop.trf.xlu0
        %v2550 = vpop.trf.xlu0
        %2551 = vxpose.xlu0.c.b16.start [1/8] %v2437, 128
        %2552 = vxpose.xlu0.c.b16.cont [2/8] 0, 128
        %2553 = vxpose.xlu0.c.b16.cont [3/8] 0, 128
        %2554 = vxpose.xlu0.c.b16.cont [4/8] 0, 128
        %2555 = vxpose.xlu0.c.b16.cont [5/8] 0, 128
        %2556 = vxpose.xlu0.c.b16.cont [6/8] 0, 128
        %2557 = vxpose.xlu0.c.b16.cont [7/8] 0, 128
        %2558 = vxpose.xlu0.c.b16.end [8/8] 0, 128
        %v2559 = vpop.trf.xlu0
        %v2560 = vpop.trf.xlu0
        %v2561 = vpop.trf.xlu0
        %v2562 = vpop.trf.xlu0
        %v2563 = vpop.trf.xlu0
        %v2564 = vpop.trf.xlu0
        %v2565 = vpop.trf.xlu0
        %v2566 = vpop.trf.xlu0
        %v2567 = vcombine.low %v2447, %v2511
        %v2569 = vunpack.c.l.s4 1983009808
        %v2570 = vunpack.c.0.s8 %v2569
        %v2571 = vlaneseq
        %v2572 = vshrl.u32 %v2571, 7
        %v2573 = vsub.s32 %v2570, %v2572
        %v2574 = vrot.slane %v2567, %v2573
        %v2575 = vcombine.low %v2479, %v2543
        %v2577 = vunpack.c.l.s4 1983009808
        %v2578 = vunpack.c.0.s8 %v2577
        %v2579 = vlaneseq
        %v2580 = vshrl.u32 %v2579, 7
        %v2581 = vsub.s32 %v2578, %v2580
        %v2582 = vrot.slane %v2575, %v2581
        %v2583 = vcombine.low %v2574, %v2582
        %v2585 = vunpack.c.l.s4 1934713408
        %v2586 = vunpack.c.0.s8 %v2585
        %v2587 = vlaneseq
        %v2588 = vshrl.u32 %v2587, 7
        %v2589 = vsub.s32 %v2586, %v2588
        %v2590 = vrot.slane %v2583, %v2589
        %v2591 = vcombine.high %v2590, 0
        %v2592 = vcombine.low %v2463, %v2527
        %v2594 = vunpack.c.l.s4 1983009808
        %v2595 = vunpack.c.0.s8 %v2594
        %v2596 = vlaneseq
        %v2597 = vshrl.u32 %v2596, 7
        %v2598 = vsub.s32 %v2595, %v2597
        %v2599 = vrot.slane %v2592, %v2598
        %v2600 = vcombine.low %v2495, %v2559
        %v2602 = vunpack.c.l.s4 1983009808
        %v2603 = vunpack.c.0.s8 %v2602
        %v2604 = vlaneseq
        %v2605 = vshrl.u32 %v2604, 7
        %v2606 = vsub.s32 %v2603, %v2605
        %v2607 = vrot.slane %v2600, %v2606
        %v2608 = vcombine.low %v2599, %v2607
        %v2610 = vunpack.c.l.s4 1934713408
        %v2611 = vunpack.c.0.s8 %v2610
        %v2612 = vlaneseq
        %v2613 = vshrl.u32 %v2612, 7
        %v2614 = vsub.s32 %v2611, %v2613
        %v2615 = vrot.slane %v2608, %v2614
        %v2616 = vcombine.high %v2615, 0
        %v2619 = vpack.i.b16 %v2615, %v2590
        %v2620 = vshrl.u32 %v2590, 16
        %v2621 = vshrl.u32 %v2615, 16
        %v2622 = vpack.i.b16 %v2621, %v2620
        %v2625 = vpack.i.b16 %v2616, %v2591
        %v2626 = vshrl.u32 %v2591, 16
        %v2627 = vshrl.u32 %v2616, 16
        %v2628 = vpack.i.b16 %v2627, %v2626
        %v2629 = vcombine.low %v1993, %v2005
        %v2631 = vunpack.c.l.s4 1983009808
        %v2632 = vunpack.c.0.s8 %v2631
        %v2633 = vlaneseq
        %v2634 = vshrl.u32 %v2633, 7
        %v2635 = vsub.s32 %v2632, %v2634
        %v2636 = vrot.slane %v2629, %v2635
        %vm2637 = vcmask 64512
        %v2639 = vsel %vm2637, %v2636, 0
        %vm2641 = vcmask 1043456
        %v2643 = vsel %vm2641, %v2619, 0
        %2645 = vmatprep.subr.bf16.mxu0 0
        %2646 = vmatpush1.bf16.msra.mxu0 %v2643
        %2647 = vmatprep.subr.bf16.mxu0 0
        %2648 = vmatpush1.bf16.msra.mxu0 0
        %2649 = vmatprep.subr.bf16.mxu0 0
        %2650 = vmatpush1.bf16.msra.mxu0 0
        %2651 = vmatprep.subr.bf16.mxu0 0
        %2652 = vmatpush1.bf16.msra.mxu0 0
        %2653 = vmatprep.subr.bf16.mxu0 0
        %2654 = vmatpush1.bf16.msra.mxu0 0
        %2655 = vmatprep.subr.bf16.mxu0 0
        %2656 = vmatpush1.bf16.msra.mxu0 0
        %2657 = vmatprep.subr.bf16.mxu0 0
        %2658 = vmatpush1.bf16.msra.mxu0 0
        %2659 = vmatprep.subr.bf16.mxu0 0
        %2660 = vmatpush1.bf16.msra.mxu0 0
        %2661 = vmatprep.subr.bf16.mxu0 0
        %2662 = vmatpush1.bf16.msra.mxu0 0
        %2663 = vmatprep.subr.bf16.mxu0 0
        %2664 = vmatpush1.bf16.msra.mxu0 0
        %2665 = vmatprep.subr.bf16.mxu0 0
        %2666 = vmatpush1.bf16.msra.mxu0 0
        %2667 = vmatprep.subr.bf16.mxu0 0
        %2668 = vmatpush1.bf16.msra.mxu0 0
        %2669 = vmatprep.subr.bf16.mxu0 0
        %2670 = vmatpush1.bf16.msra.mxu0 0
        %2671 = vmatprep.subr.bf16.mxu0 0
        %2672 = vmatpush1.bf16.msra.mxu0 0
        %2673 = vmatprep.subr.bf16.mxu0 0
        %2674 = vmatpush1.bf16.msra.mxu0 0
        %2675 = vmatprep.subr.bf16.mxu0 0
        %2676 = vmatpush1.bf16.msra.mxu0 0
        %2677 = vmatprep.mubr.bf16.mxu0 0
        %2678 = vmatmul.mubr.bf16.gmra.mrb[0].mxu0 %v2639
        %v2679 = vpop.f32.mrb[0].mxu0
        %v2680 = vadd.f32 %v1954, %v2679
        %v2681 = vpop.f32.mrb[0].mxu0
        %v2682 = vpop.f32.mrb[0].mxu0
        %v2683 = vpop.f32.mrb[0].mxu0
        %2684 = vdwg.mxu0
        %v2685 = vcombine.low %v1996, %v2008
        %v2687 = vunpack.c.l.s4 1983009808
        %v2688 = vunpack.c.0.s8 %v2687
        %v2689 = vlaneseq
        %v2690 = vshrl.u32 %v2689, 7
        %v2691 = vsub.s32 %v2688, %v2690
        %v2692 = vrot.slane %v2685, %v2691
        %v2694 = vsel %vm2637, %v2692, 0
        %v2697 = vsel %vm2641, %v2622, 0
        %2699 = vmatprep.subr.bf16.mxu0 0
        %2700 = vmatpush1.bf16.msra.mxu0 %v2697
        %2701 = vmatprep.subr.bf16.mxu0 0
        %2702 = vmatpush1.bf16.msra.mxu0 0
        %2703 = vmatprep.subr.bf16.mxu0 0
        %2704 = vmatpush1.bf16.msra.mxu0 0
        %2705 = vmatprep.subr.bf16.mxu0 0
        %2706 = vmatpush1.bf16.msra.mxu0 0
        %2707 = vmatprep.subr.bf16.mxu0 0
        %2708 = vmatpush1.bf16.msra.mxu0 0
        %2709 = vmatprep.subr.bf16.mxu0 0
        %2710 = vmatpush1.bf16.msra.mxu0 0
        %2711 = vmatprep.subr.bf16.mxu0 0
        %2712 = vmatpush1.bf16.msra.mxu0 0
        %2713 = vmatprep.subr.bf16.mxu0 0
        %2714 = vmatpush1.bf16.msra.mxu0 0
        %2715 = vmatprep.subr.bf16.mxu0 0
        %2716 = vmatpush1.bf16.msra.mxu0 0
        %2717 = vmatprep.subr.bf16.mxu0 0
        %2718 = vmatpush1.bf16.msra.mxu0 0
        %2719 = vmatprep.subr.bf16.mxu0 0
        %2720 = vmatpush1.bf16.msra.mxu0 0
        %2721 = vmatprep.subr.bf16.mxu0 0
        %2722 = vmatpush1.bf16.msra.mxu0 0
        %2723 = vmatprep.subr.bf16.mxu0 0
        %2724 = vmatpush1.bf16.msra.mxu0 0
        %2725 = vmatprep.subr.bf16.mxu0 0
        %2726 = vmatpush1.bf16.msra.mxu0 0
        %2727 = vmatprep.subr.bf16.mxu0 0
        %2728 = vmatpush1.bf16.msra.mxu0 0
        %2729 = vmatprep.subr.bf16.mxu0 0
        %2730 = vmatpush1.bf16.msra.mxu0 0
        %2731 = vmatprep.mubr.bf16.mxu0 0
        %2732 = vmatmul.mubr.bf16.gmra.mrb[0].mxu0 %v2694
        %v2733 = vpop.f32.mrb[0].mxu0
        %v2734 = vadd.f32 %v1954, %v2733
        %v2735 = vpop.f32.mrb[0].mxu0
        %v2736 = vpop.f32.mrb[0].mxu0
        %v2737 = vpop.f32.mrb[0].mxu0
        %2738 = vdwg.mxu0
        %v2739 = vcombine.low %v1999, %v2011
        %v2741 = vunpack.c.l.s4 1983009808
        %v2742 = vunpack.c.0.s8 %v2741
        %v2743 = vlaneseq
        %v2744 = vshrl.u32 %v2743, 7
        %v2745 = vsub.s32 %v2742, %v2744
        %v2746 = vrot.slane %v2739, %v2745
        %v2748 = vsel %vm2637, %v2746, 0
        %v2751 = vsel %vm2641, %v2625, 0
        %2753 = vmatprep.subr.bf16.mxu0 0
        %2754 = vmatpush1.bf16.msra.mxu0 %v2751
        %2755 = vmatprep.subr.bf16.mxu0 0
        %2756 = vmatpush1.bf16.msra.mxu0 0
        %2757 = vmatprep.subr.bf16.mxu0 0
        %2758 = vmatpush1.bf16.msra.mxu0 0
        %2759 = vmatprep.subr.bf16.mxu0 0
        %2760 = vmatpush1.bf16.msra.mxu0 0
        %2761 = vmatprep.subr.bf16.mxu0 0
        %2762 = vmatpush1.bf16.msra.mxu0 0
        %2763 = vmatprep.subr.bf16.mxu0 0
        %2764 = vmatpush1.bf16.msra.mxu0 0
        %2765 = vmatprep.subr.bf16.mxu0 0
        %2766 = vmatpush1.bf16.msra.mxu0 0
        %2767 = vmatprep.subr.bf16.mxu0 0
        %2768 = vmatpush1.bf16.msra.mxu0 0
        %2769 = vmatprep.subr.bf16.mxu0 0
        %2770 = vmatpush1.bf16.msra.mxu0 0
        %2771 = vmatprep.subr.bf16.mxu0 0
        %2772 = vmatpush1.bf16.msra.mxu0 0
        %2773 = vmatprep.subr.bf16.mxu0 0
        %2774 = vmatpush1.bf16.msra.mxu0 0
        %2775 = vmatprep.subr.bf16.mxu0 0
        %2776 = vmatpush1.bf16.msra.mxu0 0
        %2777 = vmatprep.subr.bf16.mxu0 0
        %2778 = vmatpush1.bf16.msra.mxu0 0
        %2779 = vmatprep.subr.bf16.mxu0 0
        %2780 = vmatpush1.bf16.msra.mxu0 0
        %2781 = vmatprep.subr.bf16.mxu0 0
        %2782 = vmatpush1.bf16.msra.mxu0 0
        %2783 = vmatprep.subr.bf16.mxu0 0
        %2784 = vmatpush1.bf16.msra.mxu0 0
        %2785 = vmatprep.mubr.bf16.mxu0 0
        %2786 = vmatmul.mubr.bf16.gmra.mrb[0].mxu0 %v2748
        %v2787 = vpop.f32.mrb[0].mxu0
        %v2788 = vadd.f32 %v1954, %v2787
        %v2789 = vpop.f32.mrb[0].mxu0
        %v2790 = vpop.f32.mrb[0].mxu0
        %v2791 = vpop.f32.mrb[0].mxu0
        %2792 = vdwg.mxu0
        %v2793 = vcombine.low %v2002, %v2014
        %v2795 = vunpack.c.l.s4 1983009808
        %v2796 = vunpack.c.0.s8 %v2795
        %v2797 = vlaneseq
        %v2798 = vshrl.u32 %v2797, 7
        %v2799 = vsub.s32 %v2796, %v2798
        %v2800 = vrot.slane %v2793, %v2799
        %v2802 = vsel %vm2637, %v2800, 0
        %v2805 = vsel %vm2641, %v2628, 0
        %2807 = vmatprep.subr.bf16.mxu0 0
        %2808 = vmatpush1.bf16.msra.mxu0 %v2805
        %2809 = vmatprep.subr.bf16.mxu0 0
        %2810 = vmatpush1.bf16.msra.mxu0 0
        %2811 = vmatprep.subr.bf16.mxu0 0
        %2812 = vmatpush1.bf16.msra.mxu0 0
        %2813 = vmatprep.subr.bf16.mxu0 0
        %2814 = vmatpush1.bf16.msra.mxu0 0
        %2815 = vmatprep.subr.bf16.mxu0 0
        %2816 = vmatpush1.bf16.msra.mxu0 0
        %2817 = vmatprep.subr.bf16.mxu0 0
        %2818 = vmatpush1.bf16.msra.mxu0 0
        %2819 = vmatprep.subr.bf16.mxu0 0
        %2820 = vmatpush1.bf16.msra.mxu0 0
        %2821 = vmatprep.subr.bf16.mxu0 0
        %2822 = vmatpush1.bf16.msra.mxu0 0
        %2823 = vmatprep.subr.bf16.mxu0 0
        %2824 = vmatpush1.bf16.msra.mxu0 0
        %2825 = vmatprep.subr.bf16.mxu0 0
        %2826 = vmatpush1.bf16.msra.mxu0 0
        %2827 = vmatprep.subr.bf16.mxu0 0
        %2828 = vmatpush1.bf16.msra.mxu0 0
        %2829 = vmatprep.subr.bf16.mxu0 0
        %2830 = vmatpush1.bf16.msra.mxu0 0
        %2831 = vmatprep.subr.bf16.mxu0 0
        %2832 = vmatpush1.bf16.msra.mxu0 0
        %2833 = vmatprep.subr.bf16.mxu0 0
        %2834 = vmatpush1.bf16.msra.mxu0 0
        %2835 = vmatprep.subr.bf16.mxu0 0
        %2836 = vmatpush1.bf16.msra.mxu0 0
        %2837 = vmatprep.subr.bf16.mxu0 0
        %2838 = vmatpush1.bf16.msra.mxu0 0
        %2839 = vmatprep.mubr.bf16.mxu0 0
        %2840 = vmatmul.mubr.bf16.gmra.mrb[0].mxu0 %v2802
        %v2841 = vpop.f32.mrb[0].mxu0
        %v2842 = vadd.f32 %v1954, %v2841
        %v2843 = vpop.f32.mrb[0].mxu0
        %v2844 = vpop.f32.mrb[0].mxu0
        %v2845 = vpop.f32.mrb[0].mxu0
        %2846 = vdwg.mxu0
        %vm2847 = vcmask 130048
        %v2848 = vsel %vm2847, %v2680, -inf
        %2849 = vmax.xlane.f32.xlu0 %v2848
        %v2850 = vpop.xlane.xlu0 %2849
        %v2851 = vsel %vm2847, %v2734, -inf
        %2852 = vmax.xlane.f32.xlu0 %v2851
        %v2853 = vpop.xlane.xlu0 %2852
        %v2854 = vsel %vm2847, %v2788, -inf
        %2855 = vmax.xlane.f32.xlu0 %v2854
        %v2856 = vpop.xlane.xlu0 %2855
        %v2857 = vsel %vm2847, %v2842, -inf
        %2858 = vmax.xlane.f32.xlu0 %v2857
        %v2859 = vpop.xlane.xlu0 %2858
        %v2860 = vsub.f32 %v2680, %v2850
        %v2861 = vsub.f32 %v2734, %v2853
        %v2862 = vsub.f32 %v2788, %v2856
        %v2863 = vsub.f32 %v2842, %v2859
        %v2864 = vmul.f32 %v2860, 1.442695
        %v2865 = vpow.pop %v2864
        %v2866 = vmul.f32 %v2861, 1.442695
        %v2867 = vpow.pop %v2866
        %v2868 = vmul.f32 %v2862, 1.442695
        %v2869 = vpow.pop %v2868
        %v2870 = vmul.f32 %v2863, 1.442695
        %v2871 = vpow.pop %v2870
        %v2872 = vsel %vm2847, %v2865, 0.0
        %2873 = vadd.xlane.f32.xlu0 %v2872
        %v2874 = vpop.xlane.xlu0 %2873
        %v2875 = vsel %vm2847, %v2867, 0.0
        %2876 = vadd.xlane.f32.xlu0 %v2875
        %v2877 = vpop.xlane.xlu0 %2876
        %v2878 = vsel %vm2847, %v2869, 0.0
        %2879 = vadd.xlane.f32.xlu0 %v2878
        %v2880 = vpop.xlane.xlu0 %2879
        %v2881 = vsel %vm2847, %v2871, 0.0
        %2882 = vadd.xlane.f32.xlu0 %v2881
        %v2883 = vpop.xlane.xlu0 %2882
        %v2884 = vrcp.pop %v2874
        %v2885 = vrcp.pop %v2877
        %v2886 = vrcp.pop %v2880
        %v2887 = vrcp.pop %v2883
        %v2888 = vmul.f32 %v2865, %v2884
        %v2889 = vmul.f32 %v2867, %v2885
        %v2890 = vmul.f32 %v2869, %v2886
        %v2891 = vmul.f32 %v2871, %v2887
        %v2892 = vpack.c.bf16 %v2888, %v2888
        %v2893 = vpack.c.bf16 %v2889, %v2889
        %v2894 = vpack.c.bf16 %v2890, %v2890
        %v2895 = vpack.c.bf16 %v2891, %v2891
        %v2896 = vld [vmem:[#allocation4] sm:$0x3]
        %v2897 = vld [vmem:[#allocation4 + $0x2] sm:$0x3]
        %v2898 = vld [vmem:[#allocation4 + $0x4] sm:$0x3]
        %v2899 = vld [vmem:[#allocation4 + $0x6] sm:$0x3]
        %v2900 = vld [vmem:[#allocation4 + $0x8] sm:$0x3]
        %v2901 = vld [vmem:[#allocation4 + $0xa] sm:$0x3]
        %v2902 = vld [vmem:[#allocation4 + $0xc] sm:$0x3]
        %v2903 = vld [vmem:[#allocation4 + $0xe] sm:$0x3]
        %v2904 = vld [vmem:[#allocation4 + $0x10] sm:$0x3]
        %v2905 = vld [vmem:[#allocation4 + $0x12] sm:$0x3]
        %v2906 = vld [vmem:[#allocation4 + $0x14] sm:$0x3]
        %v2907 = vld [vmem:[#allocation4 + $0x16] sm:$0x3]
        %v2908 = vld [vmem:[#allocation4 + $0x18] sm:$0x3]
        %v2909 = vld [vmem:[#allocation4 + $0x1a] sm:$0x3]
        %v2910 = vld [vmem:[#allocation4 + $0x1c] sm:$0x3]
        %v2911 = vld [vmem:[#allocation4 + $0x1e] sm:$0x3]
        %2912 = vxpose.xlu0.c.b16.start [1/8] %v2896, 128
        %2913 = vxpose.xlu0.c.b16.cont [2/8] 0, 128
        %2914 = vxpose.xlu0.c.b16.cont [3/8] 0, 128
        %2915 = vxpose.xlu0.c.b16.cont [4/8] 0, 128
        %2916 = vxpose.xlu0.c.b16.cont [5/8] 0, 128
        %2917 = vxpose.xlu0.c.b16.cont [6/8] 0, 128
        %2918 = vxpose.xlu0.c.b16.cont [7/8] 0, 128
        %2919 = vxpose.xlu0.c.b16.end [8/8] 0, 128
        %v2920 = vpop.trf.xlu0
        %v2921 = vpop.trf.xlu0
        %v2922 = vpop.trf.xlu0
        %v2923 = vpop.trf.xlu0
        %v2924 = vpop.trf.xlu0
        %v2925 = vpop.trf.xlu0
        %v2926 = vpop.trf.xlu0
        %v2927 = vpop.trf.xlu0
        %2928 = vxpose.xlu0.c.b16.start [1/8] %v2897, 128
        %2929 = vxpose.xlu0.c.b16.cont [2/8] 0, 128
        %2930 = vxpose.xlu0.c.b16.cont [3/8] 0, 128
        %2931 = vxpose.xlu0.c.b16.cont [4/8] 0, 128
        %2932 = vxpose.xlu0.c.b16.cont [5/8] 0, 128
        %2933 = vxpose.xlu0.c.b16.cont [6/8] 0, 128
        %2934 = vxpose.xlu0.c.b16.cont [7/8] 0, 128
        %2935 = vxpose.xlu0.c.b16.end [8/8] 0, 128
        %v2936 = vpop.trf.xlu0
        %v2937 = vpop.trf.xlu0
        %v2938 = vpop.trf.xlu0
        %v2939 = vpop.trf.xlu0
        %v2940 = vpop.trf.xlu0
        %v2941 = vpop.trf.xlu0
        %v2942 = vpop.trf.xlu0
        %v2943 = vpop.trf.xlu0
        %2944 = vxpose.xlu0.c.b16.start [1/8] %v2898, 128
        %2945 = vxpose.xlu0.c.b16.cont [2/8] 0, 128
        %2946 = vxpose.xlu0.c.b16.cont [3/8] 0, 128
        %2947 = vxpose.xlu0.c.b16.cont [4/8] 0, 128
        %2948 = vxpose.xlu0.c.b16.cont [5/8] 0, 128
        %2949 = vxpose.xlu0.c.b16.cont [6/8] 0, 128
        %2950 = vxpose.xlu0.c.b16.cont [7/8] 0, 128
        %2951 = vxpose.xlu0.c.b16.end [8/8] 0, 128
        %v2952 = vpop.trf.xlu0
        %v2953 = vpop.trf.xlu0
        %v2954 = vpop.trf.xlu0
        %v2955 = vpop.trf.xlu0
        %v2956 = vpop.trf.xlu0
        %v2957 = vpop.trf.xlu0
        %v2958 = vpop.trf.xlu0
        %v2959 = vpop.trf.xlu0
        %2960 = vxpose.xlu0.c.b16.start [1/8] %v2899, 128
        %2961 = vxpose.xlu0.c.b16.cont [2/8] 0, 128
        %2962 = vxpose.xlu0.c.b16.cont [3/8] 0, 128
        %2963 = vxpose.xlu0.c.b16.cont [4/8] 0, 128
        %2964 = vxpose.xlu0.c.b16.cont [5/8] 0, 128
        %2965 = vxpose.xlu0.c.b16.cont [6/8] 0, 128
        %2966 = vxpose.xlu0.c.b16.cont [7/8] 0, 128
        %2967 = vxpose.xlu0.c.b16.end [8/8] 0, 128
        %v2968 = vpop.trf.xlu0
        %v2969 = vpop.trf.xlu0
        %v2970 = vpop.trf.xlu0
        %v2971 = vpop.trf.xlu0
        %v2972 = vpop.trf.xlu0
        %v2973 = vpop.trf.xlu0
        %v2974 = vpop.trf.xlu0
        %v2975 = vpop.trf.xlu0
        %2976 = vxpose.xlu0.c.b16.start [1/8] %v2900, 128
        %2977 = vxpose.xlu0.c.b16.cont [2/8] 0, 128
        %2978 = vxpose.xlu0.c.b16.cont [3/8] 0, 128
        %2979 = vxpose.xlu0.c.b16.cont [4/8] 0, 128
        %2980 = vxpose.xlu0.c.b16.cont [5/8] 0, 128
        %2981 = vxpose.xlu0.c.b16.cont [6/8] 0, 128
        %2982 = vxpose.xlu0.c.b16.cont [7/8] 0, 128
        %2983 = vxpose.xlu0.c.b16.end [8/8] 0, 128
        %v2984 = vpop.trf.xlu0
        %v2985 = vpop.trf.xlu0
        %v2986 = vpop.trf.xlu0
        %v2987 = vpop.trf.xlu0
        %v2988 = vpop.trf.xlu0
        %v2989 = vpop.trf.xlu0
        %v2990 = vpop.trf.xlu0
        %v2991 = vpop.trf.xlu0
        %2992 = vxpose.xlu0.c.b16.start [1/8] %v2901, 128
        %2993 = vxpose.xlu0.c.b16.cont [2/8] 0, 128
        %2994 = vxpose.xlu0.c.b16.cont [3/8] 0, 128
        %2995 = vxpose.xlu0.c.b16.cont [4/8] 0, 128
        %2996 = vxpose.xlu0.c.b16.cont [5/8] 0, 128
        %2997 = vxpose.xlu0.c.b16.cont [6/8] 0, 128
        %2998 = vxpose.xlu0.c.b16.cont [7/8] 0, 128
        %2999 = vxpose.xlu0.c.b16.end [8/8] 0, 128
        %v3000 = vpop.trf.xlu0
        %v3001 = vpop.trf.xlu0
        %v3002 = vpop.trf.xlu0
        %v3003 = vpop.trf.xlu0
        %v3004 = vpop.trf.xlu0
        %v3005 = vpop.trf.xlu0
        %v3006 = vpop.trf.xlu0
        %v3007 = vpop.trf.xlu0
        %3008 = vxpose.xlu0.c.b16.start [1/8] %v2902, 128
        %3009 = vxpose.xlu0.c.b16.cont [2/8] 0, 128
        %3010 = vxpose.xlu0.c.b16.cont [3/8] 0, 128
        %3011 = vxpose.xlu0.c.b16.cont [4/8] 0, 128
        %3012 = vxpose.xlu0.c.b16.cont [5/8] 0, 128
        %3013 = vxpose.xlu0.c.b16.cont [6/8] 0, 128
        %3014 = vxpose.xlu0.c.b16.cont [7/8] 0, 128
        %3015 = vxpose.xlu0.c.b16.end [8/8] 0, 128
        %v3016 = vpop.trf.xlu0
        %v3017 = vpop.trf.xlu0
        %v3018 = vpop.trf.xlu0
        %v3019 = vpop.trf.xlu0
        %v3020 = vpop.trf.xlu0
        %v3021 = vpop.trf.xlu0
        %v3022 = vpop.trf.xlu0
        %v3023 = vpop.trf.xlu0
        %3024 = vxpose.xlu0.c.b16.start [1/8] %v2903, 128
        %3025 = vxpose.xlu0.c.b16.cont [2/8] 0, 128
        %3026 = vxpose.xlu0.c.b16.cont [3/8] 0, 128
        %3027 = vxpose.xlu0.c.b16.cont [4/8] 0, 128
        %3028 = vxpose.xlu0.c.b16.cont [5/8] 0, 128
        %3029 = vxpose.xlu0.c.b16.cont [6/8] 0, 128
        %3030 = vxpose.xlu0.c.b16.cont [7/8] 0, 128
        %3031 = vxpose.xlu0.c.b16.end [8/8] 0, 128
        %v3032 = vpop.trf.xlu0
        %v3033 = vpop.trf.xlu0
        %v3034 = vpop.trf.xlu0
        %v3035 = vpop.trf.xlu0
        %v3036 = vpop.trf.xlu0
        %v3037 = vpop.trf.xlu0
        %v3038 = vpop.trf.xlu0
        %v3039 = vpop.trf.xlu0
        %3040 = vxpose.xlu0.c.b16.start [1/8] %v2904, 128
        %3041 = vxpose.xlu0.c.b16.cont [2/8] 0, 128
        %3042 = vxpose.xlu0.c.b16.cont [3/8] 0, 128
        %3043 = vxpose.xlu0.c.b16.cont [4/8] 0, 128
        %3044 = vxpose.xlu0.c.b16.cont [5/8] 0, 128
        %3045 = vxpose.xlu0.c.b16.cont [6/8] 0, 128
        %3046 = vxpose.xlu0.c.b16.cont [7/8] 0, 128
        %3047 = vxpose.xlu0.c.b16.end [8/8] 0, 128
        %v3048 = vpop.trf.xlu0
        %v3049 = vpop.trf.xlu0
        %v3050 = vpop.trf.xlu0
        %v3051 = vpop.trf.xlu0
        %v3052 = vpop.trf.xlu0
        %v3053 = vpop.trf.xlu0
        %v3054 = vpop.trf.xlu0
        %v3055 = vpop.trf.xlu0
        %3056 = vxpose.xlu0.c.b16.start [1/8] %v2905, 128
        %3057 = vxpose.xlu0.c.b16.cont [2/8] 0, 128
        %3058 = vxpose.xlu0.c.b16.cont [3/8] 0, 128
        %3059 = vxpose.xlu0.c.b16.cont [4/8] 0, 128
        %3060 = vxpose.xlu0.c.b16.cont [5/8] 0, 128
        %3061 = vxpose.xlu0.c.b16.cont [6/8] 0, 128
        %3062 = vxpose.xlu0.c.b16.cont [7/8] 0, 128
        %3063 = vxpose.xlu0.c.b16.end [8/8] 0, 128
        %v3064 = vpop.trf.xlu0
        %v3065 = vpop.trf.xlu0
        %v3066 = vpop.trf.xlu0
        %v3067 = vpop.trf.xlu0
        %v3068 = vpop.trf.xlu0
        %v3069 = vpop.trf.xlu0
        %v3070 = vpop.trf.xlu0
        %v3071 = vpop.trf.xlu0
        %3072 = vxpose.xlu0.c.b16.start [1/8] %v2906, 128
        %3073 = vxpose.xlu0.c.b16.cont [2/8] 0, 128
        %3074 = vxpose.xlu0.c.b16.cont [3/8] 0, 128
        %3075 = vxpose.xlu0.c.b16.cont [4/8] 0, 128
        %3076 = vxpose.xlu0.c.b16.cont [5/8] 0, 128
        %3077 = vxpose.xlu0.c.b16.cont [6/8] 0, 128
        %3078 = vxpose.xlu0.c.b16.cont [7/8] 0, 128
        %3079 = vxpose.xlu0.c.b16.end [8/8] 0, 128
        %v3080 = vpop.trf.xlu0
        %v3081 = vpop.trf.xlu0
        %v3082 = vpop.trf.xlu0
        %v3083 = vpop.trf.xlu0
        %v3084 = vpop.trf.xlu0
        %v3085 = vpop.trf.xlu0
        %v3086 = vpop.trf.xlu0
        %v3087 = vpop.trf.xlu0
        %3088 = vxpose.xlu0.c.b16.start [1/8] %v2907, 128
        %3089 = vxpose.xlu0.c.b16.cont [2/8] 0, 128
        %3090 = vxpose.xlu0.c.b16.cont [3/8] 0, 128
        %3091 = vxpose.xlu0.c.b16.cont [4/8] 0, 128
        %3092 = vxpose.xlu0.c.b16.cont [5/8] 0, 128
        %3093 = vxpose.xlu0.c.b16.cont [6/8] 0, 128
        %3094 = vxpose.xlu0.c.b16.cont [7/8] 0, 128
        %3095 = vxpose.xlu0.c.b16.end [8/8] 0, 128
        %v3096 = vpop.trf.xlu0
        %v3097 = vpop.trf.xlu0
        %v3098 = vpop.trf.xlu0
        %v3099 = vpop.trf.xlu0
        %v3100 = vpop.trf.xlu0
        %v3101 = vpop.trf.xlu0
        %v3102 = vpop.trf.xlu0
        %v3103 = vpop.trf.xlu0
        %3104 = vxpose.xlu0.c.b16.start [1/8] %v2908, 128
        %3105 = vxpose.xlu0.c.b16.cont [2/8] 0, 128
        %3106 = vxpose.xlu0.c.b16.cont [3/8] 0, 128
        %3107 = vxpose.xlu0.c.b16.cont [4/8] 0, 128
        %3108 = vxpose.xlu0.c.b16.cont [5/8] 0, 128
        %3109 = vxpose.xlu0.c.b16.cont [6/8] 0, 128
        %3110 = vxpose.xlu0.c.b16.cont [7/8] 0, 128
        %3111 = vxpose.xlu0.c.b16.end [8/8] 0, 128
        %v3112 = vpop.trf.xlu0
        %v3113 = vpop.trf.xlu0
        %v3114 = vpop.trf.xlu0
        %v3115 = vpop.trf.xlu0
        %v3116 = vpop.trf.xlu0
        %v3117 = vpop.trf.xlu0
        %v3118 = vpop.trf.xlu0
        %v3119 = vpop.trf.xlu0
        %3120 = vxpose.xlu0.c.b16.start [1/8] %v2909, 128
        %3121 = vxpose.xlu0.c.b16.cont [2/8] 0, 128
        %3122 = vxpose.xlu0.c.b16.cont [3/8] 0, 128
        %3123 = vxpose.xlu0.c.b16.cont [4/8] 0, 128
        %3124 = vxpose.xlu0.c.b16.cont [5/8] 0, 128
        %3125 = vxpose.xlu0.c.b16.cont [6/8] 0, 128
        %3126 = vxpose.xlu0.c.b16.cont [7/8] 0, 128
        %3127 = vxpose.xlu0.c.b16.end [8/8] 0, 128
        %v3128 = vpop.trf.xlu0
        %v3129 = vpop.trf.xlu0
        %v3130 = vpop.trf.xlu0
        %v3131 = vpop.trf.xlu0
        %v3132 = vpop.trf.xlu0
        %v3133 = vpop.trf.xlu0
        %v3134 = vpop.trf.xlu0
        %v3135 = vpop.trf.xlu0
        %3136 = vxpose.xlu0.c.b16.start [1/8] %v2910, 128
        %3137 = vxpose.xlu0.c.b16.cont [2/8] 0, 128
        %3138 = vxpose.xlu0.c.b16.cont [3/8] 0, 128
        %3139 = vxpose.xlu0.c.b16.cont [4/8] 0, 128
        %3140 = vxpose.xlu0.c.b16.cont [5/8] 0, 128
        %3141 = vxpose.xlu0.c.b16.cont [6/8] 0, 128
        %3142 = vxpose.xlu0.c.b16.cont [7/8] 0, 128
        %3143 = vxpose.xlu0.c.b16.end [8/8] 0, 128
        %v3144 = vpop.trf.xlu0
        %v3145 = vpop.trf.xlu0
        %v3146 = vpop.trf.xlu0
        %v3147 = vpop.trf.xlu0
        %v3148 = vpop.trf.xlu0
        %v3149 = vpop.trf.xlu0
        %v3150 = vpop.trf.xlu0
        %v3151 = vpop.trf.xlu0
        %3152 = vxpose.xlu0.c.b16.start [1/8] %v2911, 128
        %3153 = vxpose.xlu0.c.b16.cont [2/8] 0, 128
        %3154 = vxpose.xlu0.c.b16.cont [3/8] 0, 128
        %3155 = vxpose.xlu0.c.b16.cont [4/8] 0, 128
        %3156 = vxpose.xlu0.c.b16.cont [5/8] 0, 128
        %3157 = vxpose.xlu0.c.b16.cont [6/8] 0, 128
        %3158 = vxpose.xlu0.c.b16.cont [7/8] 0, 128
        %3159 = vxpose.xlu0.c.b16.end [8/8] 0, 128
        %v3160 = vpop.trf.xlu0
        %v3161 = vpop.trf.xlu0
        %v3162 = vpop.trf.xlu0
        %v3163 = vpop.trf.xlu0
        %v3164 = vpop.trf.xlu0
        %v3165 = vpop.trf.xlu0
        %v3166 = vpop.trf.xlu0
        %v3167 = vpop.trf.xlu0
        %v3168 = vcombine.low %v2920, %v2984
        %v3170 = vunpack.c.l.s4 1983009808
        %v3171 = vunpack.c.0.s8 %v3170
        %v3172 = vlaneseq
        %v3173 = vshrl.u32 %v3172, 7
        %v3174 = vsub.s32 %v3171, %v3173
        %v3175 = vrot.slane %v3168, %v3174
        %v3176 = vcombine.low %v2952, %v3016
        %v3178 = vunpack.c.l.s4 1983009808
        %v3179 = vunpack.c.0.s8 %v3178
        %v3180 = vlaneseq
        %v3181 = vshrl.u32 %v3180, 7
        %v3182 = vsub.s32 %v3179, %v3181
        %v3183 = vrot.slane %v3176, %v3182
        %v3184 = vcombine.low %v3048, %v3112
        %v3186 = vunpack.c.l.s4 1983009808
        %v3187 = vunpack.c.0.s8 %v3186
        %v3188 = vlaneseq
        %v3189 = vshrl.u32 %v3188, 7
        %v3190 = vsub.s32 %v3187, %v3189
        %v3191 = vrot.slane %v3184, %v3190
        %v3192 = vcombine.low %v3080, %v3144
        %v3194 = vunpack.c.l.s4 1983009808
        %v3195 = vunpack.c.0.s8 %v3194
        %v3196 = vlaneseq
        %v3197 = vshrl.u32 %v3196, 7
        %v3198 = vsub.s32 %v3195, %v3197
        %v3199 = vrot.slane %v3192, %v3198
        %v3200 = vcombine.low %v3175, %v3183
        %v3201 = vcombine.high %v3175, %v3183
        %v3203 = vunpack.c.l.s4 1934713408
        %v3204 = vunpack.c.0.s8 %v3203
        %v3205 = vlaneseq
        %v3206 = vshrl.u32 %v3205, 7
        %v3207 = vsub.s32 %v3204, %v3206
        %v3208 = vrot.slane %v3200, %v3207
        %v3210 = vunpack.c.l.s4 1934713408
        %v3211 = vunpack.c.0.s8 %v3210
        %v3212 = vlaneseq
        %v3213 = vshrl.u32 %v3212, 7
        %v3214 = vsub.s32 %v3211, %v3213
        %v3215 = vrot.slane %v3201, %v3214
        %v3216 = vcombine.low %v3191, %v3199
        %v3217 = vcombine.high %v3191, %v3199
        %v3219 = vunpack.c.l.s4 1934713408
        %v3220 = vunpack.c.0.s8 %v3219
        %v3221 = vlaneseq
        %v3222 = vshrl.u32 %v3221, 7
        %v3223 = vsub.s32 %v3220, %v3222
        %v3224 = vrot.slane %v3216, %v3223
        %v3226 = vunpack.c.l.s4 1934713408
        %v3227 = vunpack.c.0.s8 %v3226
        %v3228 = vlaneseq
        %v3229 = vshrl.u32 %v3228, 7
        %v3230 = vsub.s32 %v3227, %v3229
        %v3231 = vrot.slane %v3217, %v3230
        %v3232 = vcombine.low %v3208, %v3224
        %v3233 = vcombine.high %v3208, %v3224
        %v3234 = vcombine.low %v3215, %v3231
        %v3235 = vcombine.high %v3215, %v3231
        %v3236 = vcombine.low %v2936, %v3000
        %v3238 = vunpack.c.l.s4 1983009808
        %v3239 = vunpack.c.0.s8 %v3238
        %v3240 = vlaneseq
        %v3241 = vshrl.u32 %v3240, 7
        %v3242 = vsub.s32 %v3239, %v3241
        %v3243 = vrot.slane %v3236, %v3242
        %v3244 = vcombine.low %v2968, %v3032
        %v3246 = vunpack.c.l.s4 1983009808
        %v3247 = vunpack.c.0.s8 %v3246
        %v3248 = vlaneseq
        %v3249 = vshrl.u32 %v3248, 7
        %v3250 = vsub.s32 %v3247, %v3249
        %v3251 = vrot.slane %v3244, %v3250
        %v3252 = vcombine.low %v3064, %v3128
        %v3254 = vunpack.c.l.s4 1983009808
        %v3255 = vunpack.c.0.s8 %v3254
        %v3256 = vlaneseq
        %v3257 = vshrl.u32 %v3256, 7
        %v3258 = vsub.s32 %v3255, %v3257
        %v3259 = vrot.slane %v3252, %v3258
        %v3260 = vcombine.low %v3096, %v3160
        %v3262 = vunpack.c.l.s4 1983009808
        %v3263 = vunpack.c.0.s8 %v3262
        %v3264 = vlaneseq
        %v3265 = vshrl.u32 %v3264, 7
        %v3266 = vsub.s32 %v3263, %v3265
        %v3267 = vrot.slane %v3260, %v3266
        %v3268 = vcombine.low %v3243, %v3251
        %v3269 = vcombine.high %v3243, %v3251
        %v3271 = vunpack.c.l.s4 1934713408
        %v3272 = vunpack.c.0.s8 %v3271
        %v3273 = vlaneseq
        %v3274 = vshrl.u32 %v3273, 7
        %v3275 = vsub.s32 %v3272, %v3274
        %v3276 = vrot.slane %v3268, %v3275
        %v3278 = vunpack.c.l.s4 1934713408
        %v3279 = vunpack.c.0.s8 %v3278
        %v3280 = vlaneseq
        %v3281 = vshrl.u32 %v3280, 7
        %v3282 = vsub.s32 %v3279, %v3281
        %v3283 = vrot.slane %v3269, %v3282
        %v3284 = vcombine.low %v3259, %v3267
        %v3285 = vcombine.high %v3259, %v3267
        %v3287 = vunpack.c.l.s4 1934713408
        %v3288 = vunpack.c.0.s8 %v3287
        %v3289 = vlaneseq
        %v3290 = vshrl.u32 %v3289, 7
        %v3291 = vsub.s32 %v3288, %v3290
        %v3292 = vrot.slane %v3284, %v3291
        %v3294 = vunpack.c.l.s4 1934713408
        %v3295 = vunpack.c.0.s8 %v3294
        %v3296 = vlaneseq
        %v3297 = vshrl.u32 %v3296, 7
        %v3298 = vsub.s32 %v3295, %v3297
        %v3299 = vrot.slane %v3285, %v3298
        %v3300 = vcombine.low %v3276, %v3292
        %v3301 = vcombine.high %v3276, %v3292
        %v3302 = vcombine.low %v3283, %v3299
        %v3303 = vcombine.high %v3283, %v3299
        %v3306 = vpack.i.b16 %v3300, %v3232
        %v3308 = vshrl.u32 %v3232, 16
        %v3309 = vshrl.u32 %v3300, 16
        %v3310 = vpack.i.b16 %v3309, %v3308
        %v3314 = vpack.i.b16 %v3301, %v3233
        %v3316 = vshrl.u32 %v3233, 16
        %v3317 = vshrl.u32 %v3301, 16
        %v3318 = vpack.i.b16 %v3317, %v3316
        %v3322 = vpack.i.b16 %v3302, %v3234
        %v3324 = vshrl.u32 %v3234, 16
        %v3325 = vshrl.u32 %v3302, 16
        %v3326 = vpack.i.b16 %v3325, %v3324
        %v3330 = vpack.i.b16 %v3303, %v3235
        %v3332 = vshrl.u32 %v3235, 16
        %v3333 = vshrl.u32 %v3303, 16
        %v3334 = vpack.i.b16 %v3333, %v3332
        %3336 = vxpose.xlu0.c.b16.start [1/8] %v3306, 128
        %3337 = vxpose.xlu0.c.b16.cont [2/8] 0, 128
        %3338 = vxpose.xlu0.c.b16.cont [3/8] 0, 128
        %3339 = vxpose.xlu0.c.b16.cont [4/8] 0, 128
        %3340 = vxpose.xlu0.c.b16.cont [5/8] 0, 128
        %3341 = vxpose.xlu0.c.b16.cont [6/8] 0, 128
        %3342 = vxpose.xlu0.c.b16.cont [7/8] 0, 128
        %3343 = vxpose.xlu0.c.b16.end [8/8] 0, 128
        %v3344 = vpop.trf.xlu0
        %v3345 = vpop.trf.xlu0
        %v3346 = vpop.trf.xlu0
        %v3347 = vpop.trf.xlu0
        %v3348 = vpop.trf.xlu0
        %v3349 = vpop.trf.xlu0
        %v3350 = vpop.trf.xlu0
        %v3351 = vpop.trf.xlu0
        %3352 = vxpose.xlu0.c.b16.start [1/8] %v3310, 128
        %3353 = vxpose.xlu0.c.b16.cont [2/8] 0, 128
        %3354 = vxpose.xlu0.c.b16.cont [3/8] 0, 128
        %3355 = vxpose.xlu0.c.b16.cont [4/8] 0, 128
        %3356 = vxpose.xlu0.c.b16.cont [5/8] 0, 128
        %3357 = vxpose.xlu0.c.b16.cont [6/8] 0, 128
        %3358 = vxpose.xlu0.c.b16.cont [7/8] 0, 128
        %3359 = vxpose.xlu0.c.b16.end [8/8] 0, 128
        %v3360 = vpop.trf.xlu0
        %v3361 = vpop.trf.xlu0
        %v3362 = vpop.trf.xlu0
        %v3363 = vpop.trf.xlu0
        %v3364 = vpop.trf.xlu0
        %v3365 = vpop.trf.xlu0
        %v3366 = vpop.trf.xlu0
        %v3367 = vpop.trf.xlu0
        %3368 = vxpose.xlu0.c.b16.start [1/8] %v3314, 128
        %3369 = vxpose.xlu0.c.b16.cont [2/8] 0, 128
        %3370 = vxpose.xlu0.c.b16.cont [3/8] 0, 128
        %3371 = vxpose.xlu0.c.b16.cont [4/8] 0, 128
        %3372 = vxpose.xlu0.c.b16.cont [5/8] 0, 128
        %3373 = vxpose.xlu0.c.b16.cont [6/8] 0, 128
        %3374 = vxpose.xlu0.c.b16.cont [7/8] 0, 128
        %3375 = vxpose.xlu0.c.b16.end [8/8] 0, 128
        %v3376 = vpop.trf.xlu0
        %v3377 = vpop.trf.xlu0
        %v3378 = vpop.trf.xlu0
        %v3379 = vpop.trf.xlu0
        %v3380 = vpop.trf.xlu0
        %v3381 = vpop.trf.xlu0
        %v3382 = vpop.trf.xlu0
        %v3383 = vpop.trf.xlu0
        %3384 = vxpose.xlu0.c.b16.start [1/8] %v3318, 128
        %3385 = vxpose.xlu0.c.b16.cont [2/8] 0, 128
        %3386 = vxpose.xlu0.c.b16.cont [3/8] 0, 128
        %3387 = vxpose.xlu0.c.b16.cont [4/8] 0, 128
        %3388 = vxpose.xlu0.c.b16.cont [5/8] 0, 128
        %3389 = vxpose.xlu0.c.b16.cont [6/8] 0, 128
        %3390 = vxpose.xlu0.c.b16.cont [7/8] 0, 128
        %3391 = vxpose.xlu0.c.b16.end [8/8] 0, 128
        %v3392 = vpop.trf.xlu0
        %v3393 = vpop.trf.xlu0
        %v3394 = vpop.trf.xlu0
        %v3395 = vpop.trf.xlu0
        %v3396 = vpop.trf.xlu0
        %v3397 = vpop.trf.xlu0
        %v3398 = vpop.trf.xlu0
        %v3399 = vpop.trf.xlu0
        %3400 = vxpose.xlu0.c.b16.start [1/8] %v3322, 128
        %3401 = vxpose.xlu0.c.b16.cont [2/8] 0, 128
        %3402 = vxpose.xlu0.c.b16.cont [3/8] 0, 128
        %3403 = vxpose.xlu0.c.b16.cont [4/8] 0, 128
        %3404 = vxpose.xlu0.c.b16.cont [5/8] 0, 128
        %3405 = vxpose.xlu0.c.b16.cont [6/8] 0, 128
        %3406 = vxpose.xlu0.c.b16.cont [7/8] 0, 128
        %3407 = vxpose.xlu0.c.b16.end [8/8] 0, 128
        %v3408 = vpop.trf.xlu0
        %v3409 = vpop.trf.xlu0
        %v3410 = vpop.trf.xlu0
        %v3411 = vpop.trf.xlu0
        %v3412 = vpop.trf.xlu0
        %v3413 = vpop.trf.xlu0
        %v3414 = vpop.trf.xlu0
        %v3415 = vpop.trf.xlu0
        %3416 = vxpose.xlu0.c.b16.start [1/8] %v3326, 128
        %3417 = vxpose.xlu0.c.b16.cont [2/8] 0, 128
        %3418 = vxpose.xlu0.c.b16.cont [3/8] 0, 128
        %3419 = vxpose.xlu0.c.b16.cont [4/8] 0, 128
        %3420 = vxpose.xlu0.c.b16.cont [5/8] 0, 128
        %3421 = vxpose.xlu0.c.b16.cont [6/8] 0, 128
        %3422 = vxpose.xlu0.c.b16.cont [7/8] 0, 128
        %3423 = vxpose.xlu0.c.b16.end [8/8] 0, 128
        %v3424 = vpop.trf.xlu0
        %v3425 = vpop.trf.xlu0
        %v3426 = vpop.trf.xlu0
        %v3427 = vpop.trf.xlu0
        %v3428 = vpop.trf.xlu0
        %v3429 = vpop.trf.xlu0
        %v3430 = vpop.trf.xlu0
        %v3431 = vpop.trf.xlu0
        %3432 = vxpose.xlu0.c.b16.start [1/8] %v3330, 128
        %3433 = vxpose.xlu0.c.b16.cont [2/8] 0, 128
        %3434 = vxpose.xlu0.c.b16.cont [3/8] 0, 128
        %3435 = vxpose.xlu0.c.b16.cont [4/8] 0, 128
        %3436 = vxpose.xlu0.c.b16.cont [5/8] 0, 128
        %3437 = vxpose.xlu0.c.b16.cont [6/8] 0, 128
        %3438 = vxpose.xlu0.c.b16.cont [7/8] 0, 128
        %3439 = vxpose.xlu0.c.b16.end [8/8] 0, 128
        %v3440 = vpop.trf.xlu0
        %v3441 = vpop.trf.xlu0
        %v3442 = vpop.trf.xlu0
        %v3443 = vpop.trf.xlu0
        %v3444 = vpop.trf.xlu0
        %v3445 = vpop.trf.xlu0
        %v3446 = vpop.trf.xlu0
        %v3447 = vpop.trf.xlu0
        %3448 = vxpose.xlu0.c.b16.start [1/8] %v3334, 128
        %3449 = vxpose.xlu0.c.b16.cont [2/8] 0, 128
        %3450 = vxpose.xlu0.c.b16.cont [3/8] 0, 128
        %3451 = vxpose.xlu0.c.b16.cont [4/8] 0, 128
        %3452 = vxpose.xlu0.c.b16.cont [5/8] 0, 128
        %3453 = vxpose.xlu0.c.b16.cont [6/8] 0, 128
        %3454 = vxpose.xlu0.c.b16.cont [7/8] 0, 128
        %3455 = vxpose.xlu0.c.b16.end [8/8] 0, 128
        %v3456 = vpop.trf.xlu0
        %v3457 = vpop.trf.xlu0
        %v3458 = vpop.trf.xlu0
        %v3459 = vpop.trf.xlu0
        %v3460 = vpop.trf.xlu0
        %v3461 = vpop.trf.xlu0
        %v3462 = vpop.trf.xlu0
        %v3463 = vpop.trf.xlu0
        %v3464 = vcombine.low %v3344, %v3408
        %v3466 = vunpack.c.l.s4 1983009808
        %v3467 = vunpack.c.0.s8 %v3466
        %v3468 = vlaneseq
        %v3469 = vshrl.u32 %v3468, 7
        %v3470 = vsub.s32 %v3467, %v3469
        %v3471 = vrot.slane %v3464, %v3470
        %v3472 = vcombine.low %v3376, %v3440
        %v3474 = vunpack.c.l.s4 1983009808
        %v3475 = vunpack.c.0.s8 %v3474
        %v3476 = vlaneseq
        %v3477 = vshrl.u32 %v3476, 7
        %v3478 = vsub.s32 %v3475, %v3477
        %v3479 = vrot.slane %v3472, %v3478
        %v3480 = vcombine.low %v3471, %v3479
        %v3482 = vunpack.c.l.s4 1934713408
        %v3483 = vunpack.c.0.s8 %v3482
        %v3484 = vlaneseq
        %v3485 = vshrl.u32 %v3484, 7
        %v3486 = vsub.s32 %v3483, %v3485
        %v3487 = vrot.slane %v3480, %v3486
        %v3488 = vcombine.high %v3487, 0
        %v3489 = vcombine.low %v3360, %v3424
        %v3491 = vunpack.c.l.s4 1983009808
        %v3492 = vunpack.c.0.s8 %v3491
        %v3493 = vlaneseq
        %v3494 = vshrl.u32 %v3493, 7
        %v3495 = vsub.s32 %v3492, %v3494
        %v3496 = vrot.slane %v3489, %v3495
        %v3497 = vcombine.low %v3392, %v3456
        %v3499 = vunpack.c.l.s4 1983009808
        %v3500 = vunpack.c.0.s8 %v3499
        %v3501 = vlaneseq
        %v3502 = vshrl.u32 %v3501, 7
        %v3503 = vsub.s32 %v3500, %v3502
        %v3504 = vrot.slane %v3497, %v3503
        %v3505 = vcombine.low %v3496, %v3504
        %v3507 = vunpack.c.l.s4 1934713408
        %v3508 = vunpack.c.0.s8 %v3507
        %v3509 = vlaneseq
        %v3510 = vshrl.u32 %v3509, 7
        %v3511 = vsub.s32 %v3508, %v3510
        %v3512 = vrot.slane %v3505, %v3511
        %v3513 = vcombine.high %v3512, 0
        %v3516 = vpack.i.b16 %v3512, %v3487
        %v3517 = vshrl.u32 %v3487, 16
        %v3518 = vshrl.u32 %v3512, 16
        %v3519 = vpack.i.b16 %v3518, %v3517
        %v3522 = vpack.i.b16 %v3513, %v3488
        %v3523 = vshrl.u32 %v3488, 16
        %v3524 = vshrl.u32 %v3513, 16
        %v3525 = vpack.i.b16 %v3524, %v3523
        %v3527 = vsel %vm2847, %v3516, 0
        %v3530 = vsel %vm2847, %v2892, 0
        %3532 = vmatprep.subr.bf16.mxu0 0
        %3533 = vmatpush1.bf16.xpose.msra.mxu0 %v3530
        %3534 = vmatprep.subr.bf16.mxu0 0
        %3535 = vmatpush1.bf16.xpose.msra.mxu0 0
        %3536 = vmatprep.subr.bf16.mxu0 0
        %3537 = vmatpush1.bf16.xpose.msra.mxu0 0
        %3538 = vmatprep.subr.bf16.mxu0 0
        %3539 = vmatpush1.bf16.xpose.msra.mxu0 0
        %3540 = vmatprep.subr.bf16.mxu0 0
        %3541 = vmatpush1.bf16.xpose.msra.mxu0 0
        %3542 = vmatprep.subr.bf16.mxu0 0
        %3543 = vmatpush1.bf16.xpose.msra.mxu0 0
        %3544 = vmatprep.subr.bf16.mxu0 0
        %3545 = vmatpush1.bf16.xpose.msra.mxu0 0
        %3546 = vmatprep.subr.bf16.mxu0 0
        %3547 = vmatpush1.bf16.xpose.msra.mxu0 0
        %3548 = vmatprep.subr.bf16.mxu0 0
        %3549 = vmatpush1.bf16.xpose.msra.mxu0 0
        %3550 = vmatprep.subr.bf16.mxu0 0
        %3551 = vmatpush1.bf16.xpose.msra.mxu0 0
        %3552 = vmatprep.subr.bf16.mxu0 0
        %3553 = vmatpush1.bf16.xpose.msra.mxu0 0
        %3554 = vmatprep.subr.bf16.mxu0 0
        %3555 = vmatpush1.bf16.xpose.msra.mxu0 0
        %3556 = vmatprep.subr.bf16.mxu0 0
        %3557 = vmatpush1.bf16.xpose.msra.mxu0 0
        %3558 = vmatprep.subr.bf16.mxu0 0
        %3559 = vmatpush1.bf16.xpose.msra.mxu0 0
        %3560 = vmatprep.subr.bf16.mxu0 0
        %3561 = vmatpush1.bf16.xpose.msra.mxu0 0
        %3562 = vmatprep.subr.bf16.mxu0 0
        %3563 = vmatpush1.bf16.xpose.msra.mxu0 0
        %3564 = vmatprep.mubr.bf16.mxu0 0
        %3565 = vmatmul.mubr.bf16.gmra.mrb[0].mxu0 %v3527
        %v3566 = vpop.f32.mrb[0].mxu0
        %v3567 = vadd.f32 0.0, %v3566
        %v3568 = vpop.f32.mrb[0].mxu0
        %v3569 = vpop.f32.mrb[0].mxu0
        %v3570 = vpop.f32.mrb[0].mxu0
        %3571 = vdwg.mxu0
        %v3573 = vsel %vm2847, %v3519, 0
        %v3576 = vsel %vm2847, %v2893, 0
        %3578 = vmatprep.subr.bf16.mxu0 0
        %3579 = vmatpush1.bf16.xpose.msra.mxu0 %v3576
        %3580 = vmatprep.subr.bf16.mxu0 0
        %3581 = vmatpush1.bf16.xpose.msra.mxu0 0
        %3582 = vmatprep.subr.bf16.mxu0 0
        %3583 = vmatpush1.bf16.xpose.msra.mxu0 0
        %3584 = vmatprep.subr.bf16.mxu0 0
        %3585 = vmatpush1.bf16.xpose.msra.mxu0 0
        %3586 = vmatprep.subr.bf16.mxu0 0
        %3587 = vmatpush1.bf16.xpose.msra.mxu0 0
        %3588 = vmatprep.subr.bf16.mxu0 0
        %3589 = vmatpush1.bf16.xpose.msra.mxu0 0
        %3590 = vmatprep.subr.bf16.mxu0 0
        %3591 = vmatpush1.bf16.xpose.msra.mxu0 0
        %3592 = vmatprep.subr.bf16.mxu0 0
        %3593 = vmatpush1.bf16.xpose.msra.mxu0 0
        %3594 = vmatprep.subr.bf16.mxu0 0
        %3595 = vmatpush1.bf16.xpose.msra.mxu0 0
        %3596 = vmatprep.subr.bf16.mxu0 0
        %3597 = vmatpush1.bf16.xpose.msra.mxu0 0
        %3598 = vmatprep.subr.bf16.mxu0 0
        %3599 = vmatpush1.bf16.xpose.msra.mxu0 0
        %3600 = vmatprep.subr.bf16.mxu0 0
        %3601 = vmatpush1.bf16.xpose.msra.mxu0 0
        %3602 = vmatprep.subr.bf16.mxu0 0
        %3603 = vmatpush1.bf16.xpose.msra.mxu0 0
        %3604 = vmatprep.subr.bf16.mxu0 0
        %3605 = vmatpush1.bf16.xpose.msra.mxu0 0
        %3606 = vmatprep.subr.bf16.mxu0 0
        %3607 = vmatpush1.bf16.xpose.msra.mxu0 0
        %3608 = vmatprep.subr.bf16.mxu0 0
        %3609 = vmatpush1.bf16.xpose.msra.mxu0 0
        %3610 = vmatprep.mubr.bf16.mxu0 0
        %3611 = vmatmul.mubr.bf16.gmra.mrb[0].mxu0 %v3573
        %v3612 = vpop.f32.mrb[0].mxu0
        %v3613 = vadd.f32 0.0, %v3612
        %v3614 = vpop.f32.mrb[0].mxu0
        %v3615 = vpop.f32.mrb[0].mxu0
        %v3616 = vpop.f32.mrb[0].mxu0
        %3617 = vdwg.mxu0
        %v3619 = vsel %vm2847, %v3522, 0
        %v3622 = vsel %vm2847, %v2894, 0
        %3624 = vmatprep.subr.bf16.mxu0 0
        %3625 = vmatpush1.bf16.xpose.msra.mxu0 %v3622
        %3626 = vmatprep.subr.bf16.mxu0 0
        %3627 = vmatpush1.bf16.xpose.msra.mxu0 0
        %3628 = vmatprep.subr.bf16.mxu0 0
        %3629 = vmatpush1.bf16.xpose.msra.mxu0 0
        %3630 = vmatprep.subr.bf16.mxu0 0
        %3631 = vmatpush1.bf16.xpose.msra.mxu0 0
        %3632 = vmatprep.subr.bf16.mxu0 0
        %3633 = vmatpush1.bf16.xpose.msra.mxu0 0
        %3634 = vmatprep.subr.bf16.mxu0 0
        %3635 = vmatpush1.bf16.xpose.msra.mxu0 0
        %3636 = vmatprep.subr.bf16.mxu0 0
        %3637 = vmatpush1.bf16.xpose.msra.mxu0 0
        %3638 = vmatprep.subr.bf16.mxu0 0
        %3639 = vmatpush1.bf16.xpose.msra.mxu0 0
        %3640 = vmatprep.subr.bf16.mxu0 0
        %3641 = vmatpush1.bf16.xpose.msra.mxu0 0
        %3642 = vmatprep.subr.bf16.mxu0 0
        %3643 = vmatpush1.bf16.xpose.msra.mxu0 0
        %3644 = vmatprep.subr.bf16.mxu0 0
        %3645 = vmatpush1.bf16.xpose.msra.mxu0 0
        %3646 = vmatprep.subr.bf16.mxu0 0
        %3647 = vmatpush1.bf16.xpose.msra.mxu0 0
        %3648 = vmatprep.subr.bf16.mxu0 0
        %3649 = vmatpush1.bf16.xpose.msra.mxu0 0
        %3650 = vmatprep.subr.bf16.mxu0 0
        %3651 = vmatpush1.bf16.xpose.msra.mxu0 0
        %3652 = vmatprep.subr.bf16.mxu0 0
        %3653 = vmatpush1.bf16.xpose.msra.mxu0 0
        %3654 = vmatprep.subr.bf16.mxu0 0
        %3655 = vmatpush1.bf16.xpose.msra.mxu0 0
        %3656 = vmatprep.mubr.bf16.mxu0 0
        %3657 = vmatmul.mubr.bf16.gmra.mrb[0].mxu0 %v3619
        %v3658 = vpop.f32.mrb[0].mxu0
        %v3659 = vadd.f32 0.0, %v3658
        %v3660 = vpop.f32.mrb[0].mxu0
        %v3661 = vpop.f32.mrb[0].mxu0
        %v3662 = vpop.f32.mrb[0].mxu0
        %3663 = vdwg.mxu0
        %v3665 = vsel %vm2847, %v3525, 0
        %v3668 = vsel %vm2847, %v2895, 0
        %3670 = vmatprep.subr.bf16.mxu0 0
        %3671 = vmatpush1.bf16.xpose.msra.mxu0 %v3668
        %3672 = vmatprep.subr.bf16.mxu0 0
        %3673 = vmatpush1.bf16.xpose.msra.mxu0 0
        %3674 = vmatprep.subr.bf16.mxu0 0
        %3675 = vmatpush1.bf16.xpose.msra.mxu0 0
        %3676 = vmatprep.subr.bf16.mxu0 0
        %3677 = vmatpush1.bf16.xpose.msra.mxu0 0
        %3678 = vmatprep.subr.bf16.mxu0 0
        %3679 = vmatpush1.bf16.xpose.msra.mxu0 0
        %3680 = vmatprep.subr.bf16.mxu0 0
        %3681 = vmatpush1.bf16.xpose.msra.mxu0 0
        %3682 = vmatprep.subr.bf16.mxu0 0
        %3683 = vmatpush1.bf16.xpose.msra.mxu0 0
        %3684 = vmatprep.subr.bf16.mxu0 0
        %3685 = vmatpush1.bf16.xpose.msra.mxu0 0
        %3686 = vmatprep.subr.bf16.mxu0 0
        %3687 = vmatpush1.bf16.xpose.msra.mxu0 0
        %3688 = vmatprep.subr.bf16.mxu0 0
        %3689 = vmatpush1.bf16.xpose.msra.mxu0 0
        %3690 = vmatprep.subr.bf16.mxu0 0
        %3691 = vmatpush1.bf16.xpose.msra.mxu0 0
        %3692 = vmatprep.subr.bf16.mxu0 0
        %3693 = vmatpush1.bf16.xpose.msra.mxu0 0
        %3694 = vmatprep.subr.bf16.mxu0 0
        %3695 = vmatpush1.bf16.xpose.msra.mxu0 0
        %3696 = vmatprep.subr.bf16.mxu0 0
        %3697 = vmatpush1.bf16.xpose.msra.mxu0 0
        %3698 = vmatprep.subr.bf16.mxu0 0
        %3699 = vmatpush1.bf16.xpose.msra.mxu0 0
        %3700 = vmatprep.subr.bf16.mxu0 0
        %3701 = vmatpush1.bf16.xpose.msra.mxu0 0
        %3702 = vmatprep.mubr.bf16.mxu0 0
        %3703 = vmatmul.mubr.bf16.gmra.mrb[0].mxu0 %v3665
        %v3704 = vpop.f32.mrb[0].mxu0
        %v3705 = vadd.f32 0.0, %v3704
        %v3706 = vpop.f32.mrb[0].mxu0
        %v3707 = vpop.f32.mrb[0].mxu0
        %v3708 = vpop.f32.mrb[0].mxu0
        %3709 = vdwg.mxu0
        %3710 = vxpose.xlu0.b32.start [1/16] %v3567, 128
        %3711 = vxpose.xlu0.b32.cont [2/16] 0.0, 128
        %3712 = vxpose.xlu0.b32.cont [3/16] 0.0, 128
        %3713 = vxpose.xlu0.b32.cont [4/16] 0.0, 128
        %3714 = vxpose.xlu0.b32.cont [5/16] 0.0, 128
        %3715 = vxpose.xlu0.b32.cont [6/16] 0.0, 128
        %3716 = vxpose.xlu0.b32.cont [7/16] 0.0, 128
        %3717 = vxpose.xlu0.b32.cont [8/16] 0.0, 128
        %3718 = vxpose.xlu0.b32.cont [9/16] 0.0, 128
        %3719 = vxpose.xlu0.b32.cont [10/16] 0.0, 128
        %3720 = vxpose.xlu0.b32.cont [11/16] 0.0, 128
        %3721 = vxpose.xlu0.b32.cont [12/16] 0.0, 128
        %3722 = vxpose.xlu0.b32.cont [13/16] 0.0, 128
        %3723 = vxpose.xlu0.b32.cont [14/16] 0.0, 128
        %3724 = vxpose.xlu0.b32.cont [15/16] 0.0, 128
        %3725 = vxpose.xlu0.b32.end [16/16] 0.0, 128
        %v3726 = vpop.trf.xlu0
        %v3727 = vpop.trf.xlu0
        %v3728 = vpop.trf.xlu0
        %v3729 = vpop.trf.xlu0
        %v3730 = vpop.trf.xlu0
        %v3731 = vpop.trf.xlu0
        %v3732 = vpop.trf.xlu0
        %v3733 = vpop.trf.xlu0
        %v3734 = vpop.trf.xlu0
        %v3735 = vpop.trf.xlu0
        %v3736 = vpop.trf.xlu0
        %v3737 = vpop.trf.xlu0
        %v3738 = vpop.trf.xlu0
        %v3739 = vpop.trf.xlu0
        %v3740 = vpop.trf.xlu0
        %v3741 = vpop.trf.xlu0
        %3742 = vxpose.xlu0.b32.start [1/16] %v3613, 128
        %3743 = vxpose.xlu0.b32.cont [2/16] 0.0, 128
        %3744 = vxpose.xlu0.b32.cont [3/16] 0.0, 128
        %3745 = vxpose.xlu0.b32.cont [4/16] 0.0, 128
        %3746 = vxpose.xlu0.b32.cont [5/16] 0.0, 128
        %3747 = vxpose.xlu0.b32.cont [6/16] 0.0, 128
        %3748 = vxpose.xlu0.b32.cont [7/16] 0.0, 128
        %3749 = vxpose.xlu0.b32.cont [8/16] 0.0, 128
        %3750 = vxpose.xlu0.b32.cont [9/16] 0.0, 128
        %3751 = vxpose.xlu0.b32.cont [10/16] 0.0, 128
        %3752 = vxpose.xlu0.b32.cont [11/16] 0.0, 128
        %3753 = vxpose.xlu0.b32.cont [12/16] 0.0, 128
        %3754 = vxpose.xlu0.b32.cont [13/16] 0.0, 128
        %3755 = vxpose.xlu0.b32.cont [14/16] 0.0, 128
        %3756 = vxpose.xlu0.b32.cont [15/16] 0.0, 128
        %3757 = vxpose.xlu0.b32.end [16/16] 0.0, 128
        %v3758 = vpop.trf.xlu0
        %v3759 = vpop.trf.xlu0
        %v3760 = vpop.trf.xlu0
        %v3761 = vpop.trf.xlu0
        %v3762 = vpop.trf.xlu0
        %v3763 = vpop.trf.xlu0
        %v3764 = vpop.trf.xlu0
        %v3765 = vpop.trf.xlu0
        %v3766 = vpop.trf.xlu0
        %v3767 = vpop.trf.xlu0
        %v3768 = vpop.trf.xlu0
        %v3769 = vpop.trf.xlu0
        %v3770 = vpop.trf.xlu0
        %v3771 = vpop.trf.xlu0
        %v3772 = vpop.trf.xlu0
        %v3773 = vpop.trf.xlu0
        %3774 = vxpose.xlu0.b32.start [1/16] %v3659, 128
        %3775 = vxpose.xlu0.b32.cont [2/16] 0.0, 128
        %3776 = vxpose.xlu0.b32.cont [3/16] 0.0, 128
        %3777 = vxpose.xlu0.b32.cont [4/16] 0.0, 128
        %3778 = vxpose.xlu0.b32.cont [5/16] 0.0, 128
        %3779 = vxpose.xlu0.b32.cont [6/16] 0.0, 128
        %3780 = vxpose.xlu0.b32.cont [7/16] 0.0, 128
        %3781 = vxpose.xlu0.b32.cont [8/16] 0.0, 128
        %3782 = vxpose.xlu0.b32.cont [9/16] 0.0, 128
        %3783 = vxpose.xlu0.b32.cont [10/16] 0.0, 128
        %3784 = vxpose.xlu0.b32.cont [11/16] 0.0, 128
        %3785 = vxpose.xlu0.b32.cont [12/16] 0.0, 128
        %3786 = vxpose.xlu0.b32.cont [13/16] 0.0, 128
        %3787 = vxpose.xlu0.b32.cont [14/16] 0.0, 128
        %3788 = vxpose.xlu0.b32.cont [15/16] 0.0, 128
        %3789 = vxpose.xlu0.b32.end [16/16] 0.0, 128
        %v3790 = vpop.trf.xlu0
        %v3791 = vpop.trf.xlu0
        %v3792 = vpop.trf.xlu0
        %v3793 = vpop.trf.xlu0
        %v3794 = vpop.trf.xlu0
        %v3795 = vpop.trf.xlu0
        %v3796 = vpop.trf.xlu0
        %v3797 = vpop.trf.xlu0
        %v3798 = vpop.trf.xlu0
        %v3799 = vpop.trf.xlu0
        %v3800 = vpop.trf.xlu0
        %v3801 = vpop.trf.xlu0
        %v3802 = vpop.trf.xlu0
        %v3803 = vpop.trf.xlu0
        %v3804 = vpop.trf.xlu0
        %v3805 = vpop.trf.xlu0
        %3806 = vxpose.xlu0.b32.start [1/16] %v3705, 128
        %3807 = vxpose.xlu0.b32.cont [2/16] 0.0, 128
        %3808 = vxpose.xlu0.b32.cont [3/16] 0.0, 128
        %3809 = vxpose.xlu0.b32.cont [4/16] 0.0, 128
        %3810 = vxpose.xlu0.b32.cont [5/16] 0.0, 128
        %3811 = vxpose.xlu0.b32.cont [6/16] 0.0, 128
        %3812 = vxpose.xlu0.b32.cont [7/16] 0.0, 128
        %3813 = vxpose.xlu0.b32.cont [8/16] 0.0, 128
        %3814 = vxpose.xlu0.b32.cont [9/16] 0.0, 128
        %3815 = vxpose.xlu0.b32.cont [10/16] 0.0, 128
        %3816 = vxpose.xlu0.b32.cont [11/16] 0.0, 128
        %3817 = vxpose.xlu0.b32.cont [12/16] 0.0, 128
        %3818 = vxpose.xlu0.b32.cont [13/16] 0.0, 128
        %3819 = vxpose.xlu0.b32.cont [14/16] 0.0, 128
        %3820 = vxpose.xlu0.b32.cont [15/16] 0.0, 128
        %3821 = vxpose.xlu0.b32.end [16/16] 0.0, 128
        %v3822 = vpop.trf.xlu0
        %v3823 = vpop.trf.xlu0
        %v3824 = vpop.trf.xlu0
        %v3825 = vpop.trf.xlu0
        %v3826 = vpop.trf.xlu0
        %v3827 = vpop.trf.xlu0
        %v3828 = vpop.trf.xlu0
        %v3829 = vpop.trf.xlu0
        %v3830 = vpop.trf.xlu0
        %v3831 = vpop.trf.xlu0
        %v3832 = vpop.trf.xlu0
        %v3833 = vpop.trf.xlu0
        %v3834 = vpop.trf.xlu0
        %v3835 = vpop.trf.xlu0
        %v3836 = vpop.trf.xlu0
        %v3837 = vpop.trf.xlu0
        %v3838 = vcombine.low %v3726, %v3790
        %v3839 = vcombine.high %v3726, %v3790
        %v3841 = vunpack.c.l.s4 1983009808
        %v3842 = vunpack.c.0.s8 %v3841
        %v3843 = vlaneseq
        %v3844 = vshrl.u32 %v3843, 7
        %v3845 = vsub.s32 %v3842, %v3844
        %v3846 = vrot.slane %v3838, %v3845
        %v3848 = vunpack.c.l.s4 1983009808
        %v3849 = vunpack.c.0.s8 %v3848
        %v3850 = vlaneseq
        %v3851 = vshrl.u32 %v3850, 7
        %v3852 = vsub.s32 %v3849, %v3851
        %v3853 = vrot.slane %v3839, %v3852
        %v3854 = vcombine.low %v3758, %v3822
        %v3855 = vcombine.high %v3758, %v3822
        %v3857 = vunpack.c.l.s4 1983009808
        %v3858 = vunpack.c.0.s8 %v3857
        %v3859 = vlaneseq
        %v3860 = vshrl.u32 %v3859, 7
        %v3861 = vsub.s32 %v3858, %v3860
        %v3862 = vrot.slane %v3854, %v3861
        %v3864 = vunpack.c.l.s4 1983009808
        %v3865 = vunpack.c.0.s8 %v3864
        %v3866 = vlaneseq
        %v3867 = vshrl.u32 %v3866, 7
        %v3868 = vsub.s32 %v3865, %v3867
        %v3869 = vrot.slane %v3855, %v3868
        %v3870 = vcombine.low %v3846, %v3862
        %v3871 = vcombine.high %v3846, %v3862
        %v3873 = vunpack.c.l.s4 1934713408
        %v3874 = vunpack.c.0.s8 %v3873
        %v3875 = vlaneseq
        %v3876 = vshrl.u32 %v3875, 7
        %v3877 = vsub.s32 %v3874, %v3876
        %v3878 = vrot.slane %v3870, %v3877
        %v3880 = vunpack.c.l.s4 1934713408
        %v3881 = vunpack.c.0.s8 %v3880
        %v3882 = vlaneseq
        %v3883 = vshrl.u32 %v3882, 7
        %v3884 = vsub.s32 %v3881, %v3883
        %v3885 = vrot.slane %v3871, %v3884
        %v3886 = vcombine.low %v3853, %v3869
        %v3887 = vcombine.high %v3853, %v3869
        %v3889 = vunpack.c.l.s4 1934713408
        %v3890 = vunpack.c.0.s8 %v3889
        %v3891 = vlaneseq
        %v3892 = vshrl.u32 %v3891, 7
        %v3893 = vsub.s32 %v3890, %v3892
        %v3894 = vrot.slane %v3886, %v3893
        %v3896 = vunpack.c.l.s4 1934713408
        %v3897 = vunpack.c.0.s8 %v3896
        %v3898 = vlaneseq
        %v3899 = vshrl.u32 %v3898, 7
        %v3900 = vsub.s32 %v3897, %v3899
        %v3901 = vrot.slane %v3887, %v3900
        %v3902 = vcombine.high %v3878, 0.0
        %v3903 = vcombine.high %v3885, 0.0
        %v3904 = vcombine.high %v3894, 0.0
        %v3905 = vcombine.high %v3901, 0.0
        %v3906 = vcombine.low %v3878, %v3885
        %v3908 = vunpack.c.l.s4 1983009808
        %v3909 = vunpack.c.0.s8 %v3908
        %v3910 = vlaneseq
        %v3911 = vshrl.u32 %v3910, 7
        %v3912 = vsub.s32 %v3909, %v3911
        %v3913 = vrot.slane %v3906, %v3912
        %v3914 = vcombine.low %v3902, %v3903
        %v3916 = vunpack.c.l.s4 1983009808
        %v3917 = vunpack.c.0.s8 %v3916
        %v3918 = vlaneseq
        %v3919 = vshrl.u32 %v3918, 7
        %v3920 = vsub.s32 %v3917, %v3919
        %v3921 = vrot.slane %v3914, %v3920
        %v3922 = vcombine.low %v3894, %v3901
        %v3924 = vunpack.c.l.s4 1983009808
        %v3925 = vunpack.c.0.s8 %v3924
        %v3926 = vlaneseq
        %v3927 = vshrl.u32 %v3926, 7
        %v3928 = vsub.s32 %v3925, %v3927
        %v3929 = vrot.slane %v3922, %v3928
        %v3930 = vcombine.low %v3904, %v3905
        %v3932 = vunpack.c.l.s4 1983009808
        %v3933 = vunpack.c.0.s8 %v3932
        %v3934 = vlaneseq
        %v3935 = vshrl.u32 %v3934, 7
        %v3936 = vsub.s32 %v3933, %v3935
        %v3937 = vrot.slane %v3930, %v3936
        %v3938 = vcombine.low %v3913, %v3921
        %v3939 = vcombine.high %v3913, %v3921
        %v3941 = vunpack.c.l.s4 1934713408
        %v3942 = vunpack.c.0.s8 %v3941
        %v3943 = vlaneseq
        %v3944 = vshrl.u32 %v3943, 7
        %v3945 = vsub.s32 %v3942, %v3944
        %v3946 = vrot.slane %v3938, %v3945
        %v3948 = vunpack.c.l.s4 1934713408
        %v3949 = vunpack.c.0.s8 %v3948
        %v3950 = vlaneseq
        %v3951 = vshrl.u32 %v3950, 7
        %v3952 = vsub.s32 %v3949, %v3951
        %v3953 = vrot.slane %v3939, %v3952
        %v3954 = vcombine.low %v3929, %v3937
        %v3955 = vcombine.high %v3929, %v3937
        %v3957 = vunpack.c.l.s4 1934713408
        %v3958 = vunpack.c.0.s8 %v3957
        %v3959 = vlaneseq
        %v3960 = vshrl.u32 %v3959, 7
        %v3961 = vsub.s32 %v3958, %v3960
        %v3962 = vrot.slane %v3954, %v3961
        %v3964 = vunpack.c.l.s4 1934713408
        %v3965 = vunpack.c.0.s8 %v3964
        %v3966 = vlaneseq
        %v3967 = vshrl.u32 %v3966, 7
        %v3968 = vsub.s32 %v3965, %v3967
        %v3969 = vrot.slane %v3955, %v3968
        %v3970 = vcombine.low %v3946, %v3962
        %v3971 = vcombine.high %v3946, %v3962
        %v3972 = vcombine.low %v3953, %v3969
        %v3973 = vcombine.high %v3953, %v3969
        %3975 = vrot.lane.b32.xlu0 %v3971, 8
        %v3976 = vpop.permute.xlu0 %3975
        %3979 = vrot.lane.b32.xlu0 %v3972, 16
        %v3980 = vpop.permute.xlu0 %3979
        %3983 = vrot.lane.b32.xlu0 %v3973, 24
        %v3984 = vpop.permute.xlu0 %3983
        %v3986 = vsel %vm2637, %v3970, %v3976
        %v3987 = vsel %vm2847, %v3986, %v3980
        %vm3988 = vcmask 195584
        %v3989 = vsel %vm3988, %v3987, %v3984
        %v3990 = vpack.c.bf16 %v3989, %v3989
        %v3991 = vld [vmem:[%s7] sm:$0xf]
        %v3992 = vld [vmem:[%s7 + $0x4] sm:$0xf]
        %v3993 = vld [vmem:[%s7 + $0x8] sm:$0xf]
        %v3994 = vld [vmem:[%s7 + $0xc] sm:$0xf]
        %v3995 = vld [vmem:[%s8] sm:$0x1]
        %v3997 = vlaneseq
        %v3998 = vshrl.u32 %v3997, 7
        %v3999 = vsub.s32 0, %v3998
        %v4000 = vrot.slane %v3995, %v3999
        %v4006 = vunpack.c.l.b16 %v3991
        %v4007 = vunpack.c.l.b16 %v3992
        %v4008 = vunpack.c.l.b16 %v3993
        %v4009 = vunpack.c.l.b16 %v3994
        %v4010 = vpack.c.b16 %v4007, %v4006
        %v4011 = vpack.c.b16 %v4009, %v4008
        %vm4014 = vcmask 261120
        %v4016 = vsel %vm4014, %v3990, 0
        %4018 = vmatprep.subr.bf16.mxu0 0
        %4019 = vmatpush1.bf16.msra.mxu0 %v4010
        %4020 = vmatprep.subr.bf16.mxu0 0
        %4021 = vmatpush1.bf16.msra.mxu0 %v4011
        %4022 = vmatprep.subr.bf16.mxu0 0
        %4023 = vmatpush1.bf16.msra.mxu0 0
        %4024 = vmatprep.subr.bf16.mxu0 0
        %4025 = vmatpush1.bf16.msra.mxu0 0
        %4026 = vmatprep.subr.bf16.mxu0 0
        %4027 = vmatpush1.bf16.msra.mxu0 0
        %4028 = vmatprep.subr.bf16.mxu0 0
        %4029 = vmatpush1.bf16.msra.mxu0 0
        %4030 = vmatprep.subr.bf16.mxu0 0
        %4031 = vmatpush1.bf16.msra.mxu0 0
        %4032 = vmatprep.subr.bf16.mxu0 0
        %4033 = vmatpush1.bf16.msra.mxu0 0
        %4034 = vmatprep.subr.bf16.mxu0 0
        %4035 = vmatpush1.bf16.msra.mxu0 0
        %4036 = vmatprep.subr.bf16.mxu0 0
        %4037 = vmatpush1.bf16.msra.mxu0 0
        %4038 = vmatprep.subr.bf16.mxu0 0
        %4039 = vmatpush1.bf16.msra.mxu0 0
        %4040 = vmatprep.subr.bf16.mxu0 0
        %4041 = vmatpush1.bf16.msra.mxu0 0
        %4042 = vmatprep.subr.bf16.mxu0 0
        %4043 = vmatpush1.bf16.msra.mxu0 0
        %4044 = vmatprep.subr.bf16.mxu0 0
        %4045 = vmatpush1.bf16.msra.mxu0 0
        %4046 = vmatprep.subr.bf16.mxu0 0
        %4047 = vmatpush1.bf16.msra.mxu0 0
        %4048 = vmatprep.subr.bf16.mxu0 0
        %4049 = vmatpush1.bf16.msra.mxu0 0
        %4050 = vmatprep.mubr.bf16.mxu0 0
        %4051 = vmatmul.mubr.bf16.gmra.mrb[0].mxu0 %v4016
        %v4052 = vpop.f32.mrb[0].mxu0
        %v4053 = vadd.f32 %v4000, %v4052
        %v4054 = vpop.f32.mrb[0].mxu0
        %v4055 = vpop.f32.mrb[0].mxu0
        %v4056 = vpop.f32.mrb[0].mxu0
        %4057 = vdwg.mxu0
        %s4058 = scalar_lea.vmem %s506, %s1918
        %v4059 = vld [vmem:[%s4058] sm:$0xff]
        %v4060 = vadd.f32 %v4053, %v4059
        %v4061 = vld [vmem:[%s9] sm:$0x1]
        %v4062 = vld [vmem:[%s10] sm:$0x1]
        %v4063 = vsel %vm4014, %v4060, 0.0
        %4064 = vadd.xlane.f32.xlu0 %v4063
        %v4065 = vpop.xlane.xlu0 %4064
        %v4066 = vrcp.pop 32.0
        %v4067 = vmul.f32 %v4065, %v4066
        %v4068 = vsub.f32 %v4060, %v4067
        %v4069 = vmul.f32 %v4068, %v4068
        %v4070 = vsel %vm4014, %v4069, 0.0
        %4071 = vadd.xlane.f32.xlu0 %v4070
        %v4072 = vpop.xlane.xlu0 %4071
        %v4073 = vmul.f32 %v4072, %v4066
        %v4074 = vadd.f32 %v4073, 1e-05
        %v4075 = vrsqrt.pop %v4074
        %v4076 = vmul.f32 %v4068, %v4075
        %v4078 = vlaneseq
        %v4079 = vshrl.u32 %v4078, 7
        %v4080 = vsub.s32 0, %v4079
        %v4081 = vrot.slane %v4061, %v4080
        %v4083 = vmul.f32 %v4076, %v4081
        %v4085 = vlaneseq
        %v4086 = vshrl.u32 %v4085, 7
        %v4087 = vsub.s32 0, %v4086
        %v4088 = vrot.slane %v4062, %v4087
        %v4090 = vadd.f32 %v4083, %v4088
        %v4091 = vpack.c.bf16 %v4090, %v4090
        %v4092 = vld [vmem:[%s11] sm:$0xf]
        %v4093 = vld [vmem:[%s11 + $0x4] sm:$0xf]
        %v4094 = vld [vmem:[%s11 + $0x8] sm:$0xf]
        %v4095 = vld [vmem:[%s11 + $0xc] sm:$0xf]
        %v4096 = vld [vmem:[%s12] sm:$0x1]
        %v4098 = vlaneseq
        %v4099 = vshrl.u32 %v4098, 7
        %v4100 = vsub.s32 0, %v4099
        %v4101 = vrot.slane %v4096, %v4100
        %v4107 = vunpack.c.l.b16 %v4092
        %v4108 = vunpack.c.l.b16 %v4093
        %v4109 = vunpack.c.l.b16 %v4094
        %v4110 = vunpack.c.l.b16 %v4095
        %v4111 = vpack.c.b16 %v4108, %v4107
        %v4112 = vpack.c.b16 %v4110, %v4109
        %v4116 = vsel %vm4014, %v4091, 0
        %4118 = vmatprep.subr.bf16.mxu0 0
        %4119 = vmatpush1.bf16.msra.mxu0 %v4111
        %4120 = vmatprep.subr.bf16.mxu0 0
        %4121 = vmatpush1.bf16.msra.mxu0 %v4112
        %4122 = vmatprep.subr.bf16.mxu0 0
        %4123 = vmatpush1.bf16.msra.mxu0 0
        %4124 = vmatprep.subr.bf16.mxu0 0
        %4125 = vmatpush1.bf16.msra.mxu0 0
        %4126 = vmatprep.subr.bf16.mxu0 0
        %4127 = vmatpush1.bf16.msra.mxu0 0
        %4128 = vmatprep.subr.bf16.mxu0 0
        %4129 = vmatpush1.bf16.msra.mxu0 0
        %4130 = vmatprep.subr.bf16.mxu0 0
        %4131 = vmatpush1.bf16.msra.mxu0 0
        %4132 = vmatprep.subr.bf16.mxu0 0
        %4133 = vmatpush1.bf16.msra.mxu0 0
        %4134 = vmatprep.subr.bf16.mxu0 0
        %4135 = vmatpush1.bf16.msra.mxu0 0
        %4136 = vmatprep.subr.bf16.mxu0 0
        %4137 = vmatpush1.bf16.msra.mxu0 0
        %4138 = vmatprep.subr.bf16.mxu0 0
        %4139 = vmatpush1.bf16.msra.mxu0 0
        %4140 = vmatprep.subr.bf16.mxu0 0
        %4141 = vmatpush1.bf16.msra.mxu0 0
        %4142 = vmatprep.subr.bf16.mxu0 0
        %4143 = vmatpush1.bf16.msra.mxu0 0
        %4144 = vmatprep.subr.bf16.mxu0 0
        %4145 = vmatpush1.bf16.msra.mxu0 0
        %4146 = vmatprep.subr.bf16.mxu0 0
        %4147 = vmatpush1.bf16.msra.mxu0 0
        %4148 = vmatprep.subr.bf16.mxu0 0
        %4149 = vmatpush1.bf16.msra.mxu0 0
        %4150 = vmatprep.mubr.bf16.mxu0 0
        %4151 = vmatmul.mubr.bf16.gmra.mrb[0].mxu0 %v4116
        %v4152 = vpop.f32.mrb[0].mxu0
        %v4153 = vadd.f32 %v4101, %v4152
        %v4154 = vpop.f32.mrb[0].mxu0
        %v4155 = vpop.f32.mrb[0].mxu0
        %v4156 = vpop.f32.mrb[0].mxu0
        %4157 = vdwg.mxu0
        %v4158 = vmul.f32 %v4153, %v4153
        %v4159 = vmul.f32 %v4153, %v4158
        %v4160 = vmul.f32 %v4159, 0.044715
        %v4161 = vadd.f32 %v4153, %v4160
        %v4162 = vmul.f32 %v4161, 0.7978846
        %v4163 = vtanh.pop %v4162
        %v4164 = vadd.f32 %v4163, 1.0
        %v4165 = vmul.f32 %v4164, 0.5
        %v4166 = vmul.f32 %v4153, %v4165
        %v4167 = vpack.c.bf16 %v4166, %v4166
        %v4168 = vld [vmem:[%s13] sm:$0xf]
        %v4169 = vld [vmem:[%s13 + $0x4] sm:$0xf]
        %v4170 = vld [vmem:[%s13 + $0x8] sm:$0xf]
        %v4171 = vld [vmem:[%s13 + $0xc] sm:$0xf]
        %v4172 = vld [vmem:[%s13 + $0x10] sm:$0xf]
        %v4173 = vld [vmem:[%s13 + $0x14] sm:$0xf]
        %v4174 = vld [vmem:[%s13 + $0x18] sm:$0xf]
        %v4175 = vld [vmem:[%s13 + $0x1c] sm:$0xf]
        %v4176 = vld [vmem:[%s13 + $0x20] sm:$0xf]
        %v4177 = vld [vmem:[%s13 + $0x24] sm:$0xf]
        %v4178 = vld [vmem:[%s13 + $0x28] sm:$0xf]
        %v4179 = vld [vmem:[%s13 + $0x2c] sm:$0xf]
        %v4180 = vld [vmem:[%s13 + $0x30] sm:$0xf]
        %v4181 = vld [vmem:[%s13 + $0x34] sm:$0xf]
        %v4182 = vld [vmem:[%s13 + $0x38] sm:$0xf]
        %v4183 = vld [vmem:[%s13 + $0x3c] sm:$0xf]
        %v4184 = vld [vmem:[%s14] sm:$0x1]
        %v4186 = vlaneseq
        %v4187 = vshrl.u32 %v4186, 7
        %v4188 = vsub.s32 0, %v4187
        %v4189 = vrot.slane %v4184, %v4188
        %v4207 = vunpack.c.l.b16 %v4168
        %v4208 = vunpack.c.l.b16 %v4169
        %v4209 = vunpack.c.l.b16 %v4170
        %v4210 = vunpack.c.l.b16 %v4171
        %v4211 = vunpack.c.l.b16 %v4172
        %v4212 = vunpack.c.l.b16 %v4173
        %v4213 = vunpack.c.l.b16 %v4174
        %v4214 = vunpack.c.l.b16 %v4175
        %v4215 = vunpack.c.l.b16 %v4176
        %v4216 = vunpack.c.l.b16 %v4177
        %v4217 = vunpack.c.l.b16 %v4178
        %v4218 = vunpack.c.l.b16 %v4179
        %v4219 = vunpack.c.l.b16 %v4180
        %v4220 = vunpack.c.l.b16 %v4181
        %v4221 = vunpack.c.l.b16 %v4182
        %v4222 = vunpack.c.l.b16 %v4183
        %v4223 = vpack.c.b16 %v4208, %v4207
        %v4224 = vpack.c.b16 %v4210, %v4209
        %v4225 = vpack.c.b16 %v4212, %v4211
        %v4226 = vpack.c.b16 %v4214, %v4213
        %v4227 = vpack.c.b16 %v4216, %v4215
        %v4228 = vpack.c.b16 %v4218, %v4217
        %v4229 = vpack.c.b16 %v4220, %v4219
        %v4230 = vpack.c.b16 %v4222, %v4221
        %4239 = vmatprep.subr.bf16.mxu0 0
        %4240 = vmatpush1.bf16.msra.mxu0 %v4223
        %4241 = vmatprep.subr.bf16.mxu0 0
        %4242 = vmatpush1.bf16.msra.mxu0 %v4224
        %4243 = vmatprep.subr.bf16.mxu0 0
        %4244 = vmatpush1.bf16.msra.mxu0 %v4225
        %4245 = vmatprep.subr.bf16.mxu0 0
        %4246 = vmatpush1.bf16.msra.mxu0 %v4226
        %4247 = vmatprep.subr.bf16.mxu0 0
        %4248 = vmatpush1.bf16.msra.mxu0 %v4227
        %4249 = vmatprep.subr.bf16.mxu0 0
        %4250 = vmatpush1.bf16.msra.mxu0 %v4228
        %4251 = vmatprep.subr.bf16.mxu0 0
        %4252 = vmatpush1.bf16.msra.mxu0 %v4229
        %4253 = vmatprep.subr.bf16.mxu0 0
        %4254 = vmatpush1.bf16.msra.mxu0 %v4230
        %4255 = vmatprep.subr.bf16.mxu0 0
        %4256 = vmatpush1.bf16.msra.mxu0 0
        %4257 = vmatprep.subr.bf16.mxu0 0
        %4258 = vmatpush1.bf16.msra.mxu0 0
        %4259 = vmatprep.subr.bf16.mxu0 0
        %4260 = vmatpush1.bf16.msra.mxu0 0
        %4261 = vmatprep.subr.bf16.mxu0 0
        %4262 = vmatpush1.bf16.msra.mxu0 0
        %4263 = vmatprep.subr.bf16.mxu0 0
        %4264 = vmatpush1.bf16.msra.mxu0 0
        %4265 = vmatprep.subr.bf16.mxu0 0
        %4266 = vmatpush1.bf16.msra.mxu0 0
        %4267 = vmatprep.subr.bf16.mxu0 0
        %4268 = vmatpush1.bf16.msra.mxu0 0
        %4269 = vmatprep.subr.bf16.mxu0 0
        %4270 = vmatpush1.bf16.msra.mxu0 0
        %4271 = vmatprep.mubr.bf16.mxu0 0
        %4272 = vmatmul.mubr.bf16.gmra.mrb[0].mxu0 %v4167
        %v4273 = vpop.f32.mrb[0].mxu0
        %v4274 = vadd.f32 %v4189, %v4273
        %v4275 = vpop.f32.mrb[0].mxu0
        %v4276 = vpop.f32.mrb[0].mxu0
        %v4277 = vpop.f32.mrb[0].mxu0
        %4278 = vdwg.mxu0
        %v4279 = vadd.f32 %v4274, %v4060
        %4280 = vst.msk [vmem:[%s501] sm:$0xff] %vm4014, %v4279
        %s4281 = sand.u32 %s371, 1
        %s4282 = scalar_lea.sflag [#allocation6], %s4281
        %s4283 = sand.u32 %s371, 1
        %s4284 = smul.addr %s4283, 8
        %s4285 = scalar_lea.vmem [#allocation5], %s4284
        // Predicated region
        $region85: #{tpu_custom_call.1} parent=79 // pred_check
          %p4286 = pneg %p381
        $region86: #{tpu_custom_call.1} parent=79 // pred_check_branch
          %4288 = sbr.rel (%p4286) target = $region88
        $region87: #{tpu_custom_call.1} parent=79 // pred_region
          %s4290 = ssub.s32 128, 128
          %4291 = vsyncadd %s4282, %s4290
          %s4292 = smul.addr %s33, 2
          %s4293 = sadd.s32 %s34, %s4292
          %s4294 = smul.addr %s4293, 128
          %s4295 = scalar_lea.hbm %s15, %s4294
          %s4297 = sshll.u32 %s4285, 4
          %s4298 = int_to_ptr.vmem [resolvable:$true] %s4297
          %4300 = dma.vmem_to_hbm [thread:$0]  %s4298, 128, %s4295, %s4282
        $region88: #{tpu_custom_call.1} parent=79 // pred_fallthru
          _
      $region80: #{tpu_custom_call.1} parent=5 // pred_fallthru
        _
      %p4301 = scmp.le.s32.totalorder 2, %s24
      // Predicated region
      $region89: #{tpu_custom_call.1} parent=5 // pred_check
        %p4302 = pneg %p4301
      $region90: #{tpu_custom_call.1} parent=5 // pred_check_branch
        %4304 = sbr.rel (%p4302) target = $region92
      $region91: #{tpu_custom_call.1} parent=5 // pred_region
        %s4305 = ssub.s32 %s24, 2
        // Predicated region
        $region93: #{tpu_custom_call.1} parent=91 // pred_check
          %p4306 = pneg %p387
        $region94: #{tpu_custom_call.1} parent=91 // pred_check_branch
          %4308 = sbr.rel (%p4306) target = $region96
        $region95: #{tpu_custom_call.1} parent=91 // pred_region
          %s4309 = sand.u32 %s372, 1
          %s4310 = scalar_lea.sflag [#allocation6], %s4309
          %s4311 = sand.u32 %s372, 1
          %s4312 = smul.addr %s4311, 8
          %s4313 = scalar_lea.vmem [#allocation5], %s4312
          %4314 = dma.done %s4310, 128
        $region96: #{tpu_custom_call.1} parent=91 // pred_fallthru
          _
      $region92: #{tpu_custom_call.1} parent=5 // pred_fallthru
        _
    $region6: #{tpu_custom_call.1} parent=1 // loop_footer
      %s28 = sadd.s32 1, %s24
    $region7: #{tpu_custom_call.1} parent=1 // loop_footer_branch
      %23 = sbr.rel target = $region3
    $region8: #{tpu_custom_call.1} parent=1 // loop_exit
      _
    %4315 = vsyncpa [#allocation6], 1
    %s4316 = scalar_lea.sflag [#allocation6], 1
    %4317 = vsyncpa %s4316, 1

</llo_original>
